<compile_context>
chip_gen: v6e
topology: v6e:2x2x1
jax: 0.10.0
libtpu: 0.0.40
codegen_flags: <defaults>
</compile_context>

<pallas_src>
import functools

import jax
import jax.numpy as jnp
from jax.experimental import pallas as pl
from jax.experimental.pallas import tpu as pltpu


# ------------------------------ fused kernel ------------------------------- #

def _cross_attention_kernel(q_in_ref, k_in_ref, v_in_ref,
                            wq_ref, wk_ref, wv_ref, wo_ref,
                            g_ref, b_ref, o_ref,
                            *, batch, sq, sk, num_heads, scale, eps,
                            compute_dtype):
    """Single grid step: whole forward pass stays resident in VMEM."""

    def mm(a, b):
        return jnp.dot(a.astype(compute_dtype), b.astype(compute_dtype),
                       preferred_element_type=jnp.float32)

    x_q = q_in_ref[...]                     # (B*Sq, D) -- also the residual
    x_k = k_in_ref[...]                     # (B*Sk, D)
    x_v = v_in_ref[...]                     # (B*Sk, D)

    # Q/K/V projections (no bias): one full-M MXU pass each, f32 accumulation.
    q = mm(x_q, wq_ref[...])                # (B*Sq, D)
    k = mm(x_k, wk_ref[...])                # (B*Sk, D)
    v = mm(x_v, wv_ref[...])                # (B*Sk, D)

    d = q.shape[-1]
    dh = d // num_heads

    # Per-(batch, head) attention.  Static unroll is fine at B=2, H=8,
    # Sq=Sk=8; at production sizes move heads to a grid axis / fori_loop.
    attn_rows = []
    for b in range(batch):
        qb = q[b * sq:(b + 1) * sq, :]      # (Sq, D)  (8-sublane aligned slice)
        kb = k[b * sk:(b + 1) * sk, :]      # (Sk, D)
        vb = v[b * sk:(b + 1) * sk, :]
        heads = []
        for h in range(num_heads):
            lo, hi = h * dh, (h + 1) * dh
            # scores: contract dh directly (no explicit k.T / XLU transpose)
            s = jax.lax.dot_general(
                qb[:, lo:hi].astype(compute_dtype),
                kb[:, lo:hi].astype(compute_dtype),
                (((1,), (1,)), ((), ())),
                preferred_element_type=jnp.float32) * scale        # (Sq, Sk)

            # softmax over the QUERY axis (torch nn.Softmax(dim=2) on B,H,Sq,Sk)
            m = jnp.max(s, axis=0, keepdims=True)
            e = jnp.exp(s - m)
            p = e / jnp.sum(e, axis=0, keepdims=True)   # exact normalisation
            # attention dropout: identity at inference

            heads.append(mm(p, vb[:, lo:hi]))                       # (Sq, dh)
        attn_rows.append(jnp.concatenate(heads, axis=-1))           # (Sq, D)
    attn = jnp.concatenate(attn_rows, axis=0)                       # (B*Sq, D)

    # Head merge already done on the lane axis -> ONE K=D output projection.
    out = mm(attn, wo_ref[...])                                     # (B*Sq, D)
    # output dropout: identity at inference

    # Residual add + LayerNorm epilogue -> single contiguous HBM store.
    x = x_q + out
    mean = jnp.mean(x, axis=-1, keepdims=True)
    xc = x - mean
    var = jnp.mean(xc * xc, axis=-1, keepdims=True)
    xn = xc * jax.lax.rsqrt(var + eps)
    o_ref[...] = (xn * g_ref[...] + b_ref[...]).astype(o_ref.dtype)


# ------------------------------- forward pass ------------------------------ #

def cross_attention_forward(params, query, key, value, num_heads,
                            eps=1e-5, compute_dtype=jnp.float32):
    """Fused CrossAttention forward.  query/key/value: (B, S, D) float32."""
    B, Sq, D = query.shape
    Sk = key.shape[1]
    assert value.shape == (B, Sk, D)
    dh = D // num_heads
    scale = dh ** (-0.5)

    # Flatten batch into the row (sublane) axis: one grid step for everything.
    q2 = query.reshape(B * Sq, D)
    k2 = key.reshape(B * Sk, D)
    v2 = value.reshape(B * Sk, D)

    kern = functools.partial(
        _cross_attention_kernel,
        batch=B, sq=Sq, sk=Sk, num_heads=num_heads, scale=scale, eps=eps,
        compute_dtype=compute_dtype)

    flops = (2 * B * Sq * D * D            # Q projection
             + 2 * 2 * B * Sk * D * D      # K, V projections
             + 2 * 2 * B * num_heads * Sq * Sk * dh   # scores + attn @ V
             + 2 * B * Sq * D * D)         # output projection
    bytes_accessed = 4 * (B * Sq * D + 2 * B * Sk * D   # inputs
                          + 4 * D * D + 2 * D           # weights + ln params
                          + B * Sq * D)                 # output
    cost = pl.CostEstimate(flops=flops,
                           transcendentals=B * num_heads * Sq * Sk,
                           bytes_accessed=bytes_accessed)

    out2 = pl.pallas_call(
        kern,
        grid=(1,),
        in_specs=[
            pl.BlockSpec((B * Sq, D), lambda i: (0, 0)),   # query (residual)
            pl.BlockSpec((B * Sk, D), lambda i: (0, 0)),   # key
            pl.BlockSpec((B * Sk, D), lambda i: (0, 0)),   # value
            pl.BlockSpec((D, D), lambda i: (0, 0)),        # wq
            pl.BlockSpec((D, D), lambda i: (0, 0)),        # wk
            pl.BlockSpec((D, D), lambda i: (0, 0)),        # wv
            pl.BlockSpec((D, D), lambda i: (0, 0)),        # wo
            pl.BlockSpec((1, D), lambda i: (0, 0)),        # LayerNorm gamma
            pl.BlockSpec((1, D), lambda i: (0, 0)),        # LayerNorm beta
        ],
        out_specs=pl.BlockSpec((B * Sq, D), lambda i: (0, 0)),
        out_shape=jax.ShapeDtypeStruct((B * Sq, D), jnp.float32),
        compiler_params=pltpu.CompilerParams(
            dimension_semantics=("arbitrary",)),
        cost_estimate=cost,
    )(q2, k2, v2,
      params["wq"], params["wk"], params["wv"], params["wo"],
      params["ln_g"].reshape(1, D), params["ln_b"].reshape(1, D))

    return out2.reshape(B, Sq, D)


# --------------------------- pure-JAX reference ----------------------------- #

def reference_forward(params, query, key, value, num_heads):
    B, Sq, D = query.shape
    Sk = key.shape[1]
    dh = D // num_heads
    q = (query @ params["wq"]).reshape(B, Sq, num_heads, dh).transpose(0, 2, 1, 3)
    k = (key @ params["wk"]).reshape(B, Sk, num_heads, dh).transpose(0, 2, 1, 3)
    v = (value @ params["wv"]).reshape(B, Sk, num_heads, dh).transpose(0, 2, 1, 3)
    s = jnp.einsum("bhqd,bhkd->bhqk", q, k) * dh ** (-0.5)
    p = jax.nn.softmax(s, axis=2)                                # torch dim=2
    a = jnp.einsum("bhqk,bhkd->bhqd", p, v)
    a = a.transpose(0, 2, 1, 3).reshape(B, Sq, D)
    o = a @ params["wo"]
    x = query + o
    mean = x.mean(-1, keepdims=True)
    var = ((x - mean) ** 2).mean(-1, keepdims=True)
    return (x - mean) / jnp.sqrt(var + 1e-5) * params["ln_g"] + params["ln_b"]


# ----------------------------------- main ----------------------------------- #

if __name__ == "__main__":
    model_dim, num_heads = 32, 8            # dim_per_head = 4
    B, Sq, Sk = 2, 8, 8

    root = jax.random.PRNGKey(0)
    kq, kk, kv, kwq, kwk, kwv, kwo = jax.random.split(root, 7)

    query = jax.random.normal(kq, (B, Sq, model_dim), jnp.float32)
    key_in = jax.random.normal(kk, (B, Sk, model_dim), jnp.float32)
    value_in = jax.random.normal(kv, (B, Sk, model_dim), jnp.float32)

    params = {
        "wq": 0.05 * jax.random.normal(kwq, (model_dim, model_dim), jnp.float32),
        "wk": 0.05 * jax.random.normal(kwk, (model_dim, model_dim), jnp.float32),
        "wv": 0.05 * jax.random.normal(kwv, (model_dim, model_dim), jnp.float32),
        "wo": 0.05 * jax.random.normal(kwo, (model_dim, model_dim), jnp.float32),
        "ln_g": jnp.ones((model_dim,), jnp.float32),   # LayerNorm default init
        "ln_b": jnp.zeros((model_dim,), jnp.float32),
    }

    out = jax.block_until_ready(
        cross_attention_forward(params, query, key_in, value_in, num_heads))

    ref = jax.block_until_ready(
        reference_forward(params, query, key_in, value_in, num_heads))

    assert out.shape == (B, Sq, model_dim)
    assert jnp.allclose(out, ref, atol=1e-4, rtol=1e-4), "mismatch vs JAX reference"

    print("KERNEL_OK")
</pallas_src>

<mosaic_0001>
module attributes {stable_mosaic.version = 11 : i64} {
  func.func @_cross_attention_kernel(%arg0: i32, %arg1: memref<16x32xf32, #tpu.memory_space<vmem>>, %arg2: memref<16x32xf32, #tpu.memory_space<vmem>>, %arg3: memref<16x32xf32, #tpu.memory_space<vmem>>, %arg4: memref<32x32xf32, #tpu.memory_space<vmem>>, %arg5: memref<32x32xf32, #tpu.memory_space<vmem>>, %arg6: memref<32x32xf32, #tpu.memory_space<vmem>>, %arg7: memref<32x32xf32, #tpu.memory_space<vmem>>, %arg8: memref<1x32xf32, #tpu.memory_space<vmem>>, %arg9: memref<1x32xf32, #tpu.memory_space<vmem>>, %arg10: memref<16x32xf32, #tpu.memory_space<vmem>>) attributes {dimension_semantics = [#tpu.dimension_semantics<arbitrary>], iteration_bounds = array<i64: 1>, scalar_prefetch = 0 : i64, scratch_operands = 0 : i64, tpu.core_type = #tpu.core_type<tc>, window_params = [{pipeline_mode = #tpu.pipeline_mode<synchronous>, transform_indices = @transform_0, window_bounds = array<i64: 16, 32>}, {pipeline_mode = #tpu.pipeline_mode<synchronous>, transform_indices = @transform_1, window_bounds = array<i64: 16, 32>}, {pipeline_mode = #tpu.pipeline_mode<synchronous>, transform_indices = @transform_2, window_bounds = array<i64: 16, 32>}, {pipeline_mode = #tpu.pipeline_mode<synchronous>, transform_indices = @transform_3, window_bounds = array<i64: 32, 32>}, {pipeline_mode = #tpu.pipeline_mode<synchronous>, transform_indices = @transform_4, window_bounds = array<i64: 32, 32>}, {pipeline_mode = #tpu.pipeline_mode<synchronous>, transform_indices = @transform_5, window_bounds = array<i64: 32, 32>}, {pipeline_mode = #tpu.pipeline_mode<synchronous>, transform_indices = @transform_6, window_bounds = array<i64: 32, 32>}, {pipeline_mode = #tpu.pipeline_mode<synchronous>, transform_indices = @transform_7, window_bounds = array<i64: 1, 32>}, {pipeline_mode = #tpu.pipeline_mode<synchronous>, transform_indices = @transform_8, window_bounds = array<i64: 1, 32>}, {pipeline_mode = #tpu.pipeline_mode<synchronous>, transform_indices = @transform_9, window_bounds = array<i64: 16, 32>}]} {
    %c0 = arith.constant 0 : index
    %c0_0 = arith.constant 0 : index
    %0 = vector.load %arg1[%c0, %c0_0] : memref<16x32xf32, #tpu.memory_space<vmem>>, vector<16x32xf32>
    %c0_1 = arith.constant 0 : index
    %c0_2 = arith.constant 0 : index
    %1 = vector.load %arg2[%c0_1, %c0_2] : memref<16x32xf32, #tpu.memory_space<vmem>>, vector<16x32xf32>
    %c0_3 = arith.constant 0 : index
    %c0_4 = arith.constant 0 : index
    %2 = vector.load %arg3[%c0_3, %c0_4] : memref<16x32xf32, #tpu.memory_space<vmem>>, vector<16x32xf32>
    %c0_5 = arith.constant 0 : index
    %c0_6 = arith.constant 0 : index
    %3 = vector.load %arg4[%c0_5, %c0_6] : memref<32x32xf32, #tpu.memory_space<vmem>>, vector<32x32xf32>
    %cst = arith.constant dense<0.000000e+00> : vector<16x32xf32>
    %4 = tpu.matmul %0, %3, %cst {dimension_numbers = #tpu.dot_dimension_numbers<[1], [0], [0], [1], [0, 0, 1, 1], [], []>} : vector<16x32xf32>, vector<32x32xf32>, vector<16x32xf32> -> vector<16x32xf32>
    %c0_7 = arith.constant 0 : index
    %c0_8 = arith.constant 0 : index
    %5 = vector.load %arg5[%c0_7, %c0_8] : memref<32x32xf32, #tpu.memory_space<vmem>>, vector<32x32xf32>
    %cst_9 = arith.constant dense<0.000000e+00> : vector<16x32xf32>
    %6 = tpu.matmul %1, %5, %cst_9 {dimension_numbers = #tpu.dot_dimension_numbers<[1], [0], [0], [1], [0, 0, 1, 1], [], []>} : vector<16x32xf32>, vector<32x32xf32>, vector<16x32xf32> -> vector<16x32xf32>
    %c0_10 = arith.constant 0 : index
    %c0_11 = arith.constant 0 : index
    %7 = vector.load %arg6[%c0_10, %c0_11] : memref<32x32xf32, #tpu.memory_space<vmem>>, vector<32x32xf32>
    %cst_12 = arith.constant dense<0.000000e+00> : vector<16x32xf32>
    %8 = tpu.matmul %2, %7, %cst_12 {dimension_numbers = #tpu.dot_dimension_numbers<[1], [0], [0], [1], [0, 0, 1, 1], [], []>} : vector<16x32xf32>, vector<32x32xf32>, vector<16x32xf32> -> vector<16x32xf32>
    %9 = vector.extract_strided_slice %4 {offsets = [0, 0], sizes = [8, 32], strides = [1, 1]} : vector<16x32xf32> to vector<8x32xf32>
    %10 = vector.extract_strided_slice %6 {offsets = [0, 0], sizes = [8, 32], strides = [1, 1]} : vector<16x32xf32> to vector<8x32xf32>
    %11 = vector.extract_strided_slice %8 {offsets = [0, 0], sizes = [8, 32], strides = [1, 1]} : vector<16x32xf32> to vector<8x32xf32>
    %12 = vector.extract_strided_slice %9 {offsets = [0, 0], sizes = [8, 4], strides = [1, 1]} : vector<8x32xf32> to vector<8x4xf32>
    %13 = vector.extract_strided_slice %10 {offsets = [0, 0], sizes = [8, 4], strides = [1, 1]} : vector<8x32xf32> to vector<8x4xf32>
    %cst_13 = arith.constant dense<0.000000e+00> : vector<8x8xf32>
    %14 = tpu.matmul %12, %13, %cst_13 {dimension_numbers = #tpu.dot_dimension_numbers<[1], [1], [0], [0], [0, 0, 1, 0], [], []>} : vector<8x4xf32>, vector<8x4xf32>, vector<8x8xf32> -> vector<8x8xf32>
    %cst_14 = arith.constant 5.000000e-01 : f32
    %15 = vector.broadcast %cst_14 : f32 to vector<8x8xf32>
    %16 = arith.mulf %14, %15 : vector<8x8xf32>
    %cst_15 = arith.constant dense<0xFF800000> : vector<8xf32>
    %17 = vector.multi_reduction <maximumf>, %16, %cst_15 [0] : vector<8x8xf32> to vector<8xf32>
    %18 = vector.shape_cast %17 : vector<8xf32> to vector<1x8xf32>
    %19 = vector.broadcast %18 : vector<1x8xf32> to vector<8x8xf32>
    %20 = arith.subf %16, %19 : vector<8x8xf32>
    %21 = math.exp %20 : vector<8x8xf32>
    %cst_16 = arith.constant dense<0.000000e+00> : vector<8xf32>
    %22 = vector.multi_reduction <add>, %21, %cst_16 [0] : vector<8x8xf32> to vector<8xf32>
    %23 = vector.shape_cast %22 : vector<8xf32> to vector<1x8xf32>
    %24 = vector.broadcast %23 : vector<1x8xf32> to vector<8x8xf32>
    %25 = arith.divf %21, %24 : vector<8x8xf32>
    %26 = vector.extract_strided_slice %11 {offsets = [0, 0], sizes = [8, 4], strides = [1, 1]} : vector<8x32xf32> to vector<8x4xf32>
    %cst_17 = arith.constant dense<0.000000e+00> : vector<8x4xf32>
    %27 = tpu.matmul %25, %26, %cst_17 {dimension_numbers = #tpu.dot_dimension_numbers<[1], [0], [0], [1], [0, 0, 1, 1], [], []>} : vector<8x8xf32>, vector<8x4xf32>, vector<8x4xf32> -> vector<8x4xf32>
    %28 = vector.extract_strided_slice %9 {offsets = [0, 4], sizes = [8, 4], strides = [1, 1]} : vector<8x32xf32> to vector<8x4xf32>
    %29 = vector.extract_strided_slice %10 {offsets = [0, 4], sizes = [8, 4], strides = [1, 1]} : vector<8x32xf32> to vector<8x4xf32>
    %cst_18 = arith.constant dense<0.000000e+00> : vector<8x8xf32>
    %30 = tpu.matmul %28, %29, %cst_18 {dimension_numbers = #tpu.dot_dimension_numbers<[1], [1], [0], [0], [0, 0, 1, 0], [], []>} : vector<8x4xf32>, vector<8x4xf32>, vector<8x8xf32> -> vector<8x8xf32>
    %cst_19 = arith.constant 5.000000e-01 : f32
    %31 = vector.broadcast %cst_19 : f32 to vector<8x8xf32>
    %32 = arith.mulf %30, %31 : vector<8x8xf32>
    %cst_20 = arith.constant dense<0xFF800000> : vector<8xf32>
    %33 = vector.multi_reduction <maximumf>, %32, %cst_20 [0] : vector<8x8xf32> to vector<8xf32>
    %34 = vector.shape_cast %33 : vector<8xf32> to vector<1x8xf32>
    %35 = vector.broadcast %34 : vector<1x8xf32> to vector<8x8xf32>
    %36 = arith.subf %32, %35 : vector<8x8xf32>
    %37 = math.exp %36 : vector<8x8xf32>
    %cst_21 = arith.constant dense<0.000000e+00> : vector<8xf32>
    %38 = vector.multi_reduction <add>, %37, %cst_21 [0] : vector<8x8xf32> to vector<8xf32>
    %39 = vector.shape_cast %38 : vector<8xf32> to vector<1x8xf32>
    %40 = vector.broadcast %39 : vector<1x8xf32> to vector<8x8xf32>
    %41 = arith.divf %37, %40 : vector<8x8xf32>
    %42 = vector.extract_strided_slice %11 {offsets = [0, 4], sizes = [8, 4], strides = [1, 1]} : vector<8x32xf32> to vector<8x4xf32>
    %cst_22 = arith.constant dense<0.000000e+00> : vector<8x4xf32>
    %43 = tpu.matmul %41, %42, %cst_22 {dimension_numbers = #tpu.dot_dimension_numbers<[1], [0], [0], [1], [0, 0, 1, 1], [], []>} : vector<8x8xf32>, vector<8x4xf32>, vector<8x4xf32> -> vector<8x4xf32>
    %44 = vector.extract_strided_slice %9 {offsets = [0, 8], sizes = [8, 4], strides = [1, 1]} : vector<8x32xf32> to vector<8x4xf32>
    %45 = vector.extract_strided_slice %10 {offsets = [0, 8], sizes = [8, 4], strides = [1, 1]} : vector<8x32xf32> to vector<8x4xf32>
    %cst_23 = arith.constant dense<0.000000e+00> : vector<8x8xf32>
    %46 = tpu.matmul %44, %45, %cst_23 {dimension_numbers = #tpu.dot_dimension_numbers<[1], [1], [0], [0], [0, 0, 1, 0], [], []>} : vector<8x4xf32>, vector<8x4xf32>, vector<8x8xf32> -> vector<8x8xf32>
    %cst_24 = arith.constant 5.000000e-01 : f32
    %47 = vector.broadcast %cst_24 : f32 to vector<8x8xf32>
    %48 = arith.mulf %46, %47 : vector<8x8xf32>
    %cst_25 = arith.constant dense<0xFF800000> : vector<8xf32>
    %49 = vector.multi_reduction <maximumf>, %48, %cst_25 [0] : vector<8x8xf32> to vector<8xf32>
    %50 = vector.shape_cast %49 : vector<8xf32> to vector<1x8xf32>
    %51 = vector.broadcast %50 : vector<1x8xf32> to vector<8x8xf32>
    %52 = arith.subf %48, %51 : vector<8x8xf32>
    %53 = math.exp %52 : vector<8x8xf32>
    %cst_26 = arith.constant dense<0.000000e+00> : vector<8xf32>
    %54 = vector.multi_reduction <add>, %53, %cst_26 [0] : vector<8x8xf32> to vector<8xf32>
    %55 = vector.shape_cast %54 : vector<8xf32> to vector<1x8xf32>
    %56 = vector.broadcast %55 : vector<1x8xf32> to vector<8x8xf32>
    %57 = arith.divf %53, %56 : vector<8x8xf32>
    %58 = vector.extract_strided_slice %11 {offsets = [0, 8], sizes = [8, 4], strides = [1, 1]} : vector<8x32xf32> to vector<8x4xf32>
    %cst_27 = arith.constant dense<0.000000e+00> : vector<8x4xf32>
    %59 = tpu.matmul %57, %58, %cst_27 {dimension_numbers = #tpu.dot_dimension_numbers<[1], [0], [0], [1], [0, 0, 1, 1], [], []>} : vector<8x8xf32>, vector<8x4xf32>, vector<8x4xf32> -> vector<8x4xf32>
    %60 = vector.extract_strided_slice %9 {offsets = [0, 12], sizes = [8, 4], strides = [1, 1]} : vector<8x32xf32> to vector<8x4xf32>
    %61 = vector.extract_strided_slice %10 {offsets = [0, 12], sizes = [8, 4], strides = [1, 1]} : vector<8x32xf32> to vector<8x4xf32>
    %cst_28 = arith.constant dense<0.000000e+00> : vector<8x8xf32>
    %62 = tpu.matmul %60, %61, %cst_28 {dimension_numbers = #tpu.dot_dimension_numbers<[1], [1], [0], [0], [0, 0, 1, 0], [], []>} : vector<8x4xf32>, vector<8x4xf32>, vector<8x8xf32> -> vector<8x8xf32>
    %cst_29 = arith.constant 5.000000e-01 : f32
    %63 = vector.broadcast %cst_29 : f32 to vector<8x8xf32>
    %64 = arith.mulf %62, %63 : vector<8x8xf32>
    %cst_30 = arith.constant dense<0xFF800000> : vector<8xf32>
    %65 = vector.multi_reduction <maximumf>, %64, %cst_30 [0] : vector<8x8xf32> to vector<8xf32>
    %66 = vector.shape_cast %65 : vector<8xf32> to vector<1x8xf32>
    %67 = vector.broadcast %66 : vector<1x8xf32> to vector<8x8xf32>
    %68 = arith.subf %64, %67 : vector<8x8xf32>
    %69 = math.exp %68 : vector<8x8xf32>
    %cst_31 = arith.constant dense<0.000000e+00> : vector<8xf32>
    %70 = vector.multi_reduction <add>, %69, %cst_31 [0] : vector<8x8xf32> to vector<8xf32>
    %71 = vector.shape_cast %70 : vector<8xf32> to vector<1x8xf32>
    %72 = vector.broadcast %71 : vector<1x8xf32> to vector<8x8xf32>
    %73 = arith.divf %69, %72 : vector<8x8xf32>
    %74 = vector.extract_strided_slice %11 {offsets = [0, 12], sizes = [8, 4], strides = [1, 1]} : vector<8x32xf32> to vector<8x4xf32>
    %cst_32 = arith.constant dense<0.000000e+00> : vector<8x4xf32>
    %75 = tpu.matmul %73, %74, %cst_32 {dimension_numbers = #tpu.dot_dimension_numbers<[1], [0], [0], [1], [0, 0, 1, 1], [], []>} : vector<8x8xf32>, vector<8x4xf32>, vector<8x4xf32> -> vector<8x4xf32>
    %76 = vector.extract_strided_slice %9 {offsets = [0, 16], sizes = [8, 4], strides = [1, 1]} : vector<8x32xf32> to vector<8x4xf32>
    %77 = vector.extract_strided_slice %10 {offsets = [0, 16], sizes = [8, 4], strides = [1, 1]} : vector<8x32xf32> to vector<8x4xf32>
    %cst_33 = arith.constant dense<0.000000e+00> : vector<8x8xf32>
    %78 = tpu.matmul %76, %77, %cst_33 {dimension_numbers = #tpu.dot_dimension_numbers<[1], [1], [0], [0], [0, 0, 1, 0], [], []>} : vector<8x4xf32>, vector<8x4xf32>, vector<8x8xf32> -> vector<8x8xf32>
    %cst_34 = arith.constant 5.000000e-01 : f32
    %79 = vector.broadcast %cst_34 : f32 to vector<8x8xf32>
    %80 = arith.mulf %78, %79 : vector<8x8xf32>
    %cst_35 = arith.constant dense<0xFF800000> : vector<8xf32>
    %81 = vector.multi_reduction <maximumf>, %80, %cst_35 [0] : vector<8x8xf32> to vector<8xf32>
    %82 = vector.shape_cast %81 : vector<8xf32> to vector<1x8xf32>
    %83 = vector.broadcast %82 : vector<1x8xf32> to vector<8x8xf32>
    %84 = arith.subf %80, %83 : vector<8x8xf32>
    %85 = math.exp %84 : vector<8x8xf32>
    %cst_36 = arith.constant dense<0.000000e+00> : vector<8xf32>
    %86 = vector.multi_reduction <add>, %85, %cst_36 [0] : vector<8x8xf32> to vector<8xf32>
    %87 = vector.shape_cast %86 : vector<8xf32> to vector<1x8xf32>
    %88 = vector.broadcast %87 : vector<1x8xf32> to vector<8x8xf32>
    %89 = arith.divf %85, %88 : vector<8x8xf32>
    %90 = vector.extract_strided_slice %11 {offsets = [0, 16], sizes = [8, 4], strides = [1, 1]} : vector<8x32xf32> to vector<8x4xf32>
    %cst_37 = arith.constant dense<0.000000e+00> : vector<8x4xf32>
    %91 = tpu.matmul %89, %90, %cst_37 {dimension_numbers = #tpu.dot_dimension_numbers<[1], [0], [0], [1], [0, 0, 1, 1], [], []>} : vector<8x8xf32>, vector<8x4xf32>, vector<8x4xf32> -> vector<8x4xf32>
    %92 = vector.extract_strided_slice %9 {offsets = [0, 20], sizes = [8, 4], strides = [1, 1]} : vector<8x32xf32> to vector<8x4xf32>
    %93 = vector.extract_strided_slice %10 {offsets = [0, 20], sizes = [8, 4], strides = [1, 1]} : vector<8x32xf32> to vector<8x4xf32>
    %cst_38 = arith.constant dense<0.000000e+00> : vector<8x8xf32>
    %94 = tpu.matmul %92, %93, %cst_38 {dimension_numbers = #tpu.dot_dimension_numbers<[1], [1], [0], [0], [0, 0, 1, 0], [], []>} : vector<8x4xf32>, vector<8x4xf32>, vector<8x8xf32> -> vector<8x8xf32>
    %cst_39 = arith.constant 5.000000e-01 : f32
    %95 = vector.broadcast %cst_39 : f32 to vector<8x8xf32>
    %96 = arith.mulf %94, %95 : vector<8x8xf32>
    %cst_40 = arith.constant dense<0xFF800000> : vector<8xf32>
    %97 = vector.multi_reduction <maximumf>, %96, %cst_40 [0] : vector<8x8xf32> to vector<8xf32>
    %98 = vector.shape_cast %97 : vector<8xf32> to vector<1x8xf32>
    %99 = vector.broadcast %98 : vector<1x8xf32> to vector<8x8xf32>
    %100 = arith.subf %96, %99 : vector<8x8xf32>
    %101 = math.exp %100 : vector<8x8xf32>
    %cst_41 = arith.constant dense<0.000000e+00> : vector<8xf32>
    %102 = vector.multi_reduction <add>, %101, %cst_41 [0] : vector<8x8xf32> to vector<8xf32>
    %103 = vector.shape_cast %102 : vector<8xf32> to vector<1x8xf32>
    %104 = vector.broadcast %103 : vector<1x8xf32> to vector<8x8xf32>
    %105 = arith.divf %101, %104 : vector<8x8xf32>
    %106 = vector.extract_strided_slice %11 {offsets = [0, 20], sizes = [8, 4], strides = [1, 1]} : vector<8x32xf32> to vector<8x4xf32>
    %cst_42 = arith.constant dense<0.000000e+00> : vector<8x4xf32>
    %107 = tpu.matmul %105, %106, %cst_42 {dimension_numbers = #tpu.dot_dimension_numbers<[1], [0], [0], [1], [0, 0, 1, 1], [], []>} : vector<8x8xf32>, vector<8x4xf32>, vector<8x4xf32> -> vector<8x4xf32>
    %108 = vector.extract_strided_slice %9 {offsets = [0, 24], sizes = [8, 4], strides = [1, 1]} : vector<8x32xf32> to vector<8x4xf32>
    %109 = vector.extract_strided_slice %10 {offsets = [0, 24], sizes = [8, 4], strides = [1, 1]} : vector<8x32xf32> to vector<8x4xf32>
    %cst_43 = arith.constant dense<0.000000e+00> : vector<8x8xf32>
    %110 = tpu.matmul %108, %109, %cst_43 {dimension_numbers = #tpu.dot_dimension_numbers<[1], [1], [0], [0], [0, 0, 1, 0], [], []>} : vector<8x4xf32>, vector<8x4xf32>, vector<8x8xf32> -> vector<8x8xf32>
    %cst_44 = arith.constant 5.000000e-01 : f32
    %111 = vector.broadcast %cst_44 : f32 to vector<8x8xf32>
    %112 = arith.mulf %110, %111 : vector<8x8xf32>
    %cst_45 = arith.constant dense<0xFF800000> : vector<8xf32>
    %113 = vector.multi_reduction <maximumf>, %112, %cst_45 [0] : vector<8x8xf32> to vector<8xf32>
    %114 = vector.shape_cast %113 : vector<8xf32> to vector<1x8xf32>
    %115 = vector.broadcast %114 : vector<1x8xf32> to vector<8x8xf32>
    %116 = arith.subf %112, %115 : vector<8x8xf32>
    %117 = math.exp %116 : vector<8x8xf32>
    %cst_46 = arith.constant dense<0.000000e+00> : vector<8xf32>
    %118 = vector.multi_reduction <add>, %117, %cst_46 [0] : vector<8x8xf32> to vector<8xf32>
    %119 = vector.shape_cast %118 : vector<8xf32> to vector<1x8xf32>
    %120 = vector.broadcast %119 : vector<1x8xf32> to vector<8x8xf32>
    %121 = arith.divf %117, %120 : vector<8x8xf32>
    %122 = vector.extract_strided_slice %11 {offsets = [0, 24], sizes = [8, 4], strides = [1, 1]} : vector<8x32xf32> to vector<8x4xf32>
    %cst_47 = arith.constant dense<0.000000e+00> : vector<8x4xf32>
    %123 = tpu.matmul %121, %122, %cst_47 {dimension_numbers = #tpu.dot_dimension_numbers<[1], [0], [0], [1], [0, 0, 1, 1], [], []>} : vector<8x8xf32>, vector<8x4xf32>, vector<8x4xf32> -> vector<8x4xf32>
    %124 = vector.extract_strided_slice %9 {offsets = [0, 28], sizes = [8, 4], strides = [1, 1]} : vector<8x32xf32> to vector<8x4xf32>
    %125 = vector.extract_strided_slice %10 {offsets = [0, 28], sizes = [8, 4], strides = [1, 1]} : vector<8x32xf32> to vector<8x4xf32>
    %cst_48 = arith.constant dense<0.000000e+00> : vector<8x8xf32>
    %126 = tpu.matmul %124, %125, %cst_48 {dimension_numbers = #tpu.dot_dimension_numbers<[1], [1], [0], [0], [0, 0, 1, 0], [], []>} : vector<8x4xf32>, vector<8x4xf32>, vector<8x8xf32> -> vector<8x8xf32>
    %cst_49 = arith.constant 5.000000e-01 : f32
    %127 = vector.broadcast %cst_49 : f32 to vector<8x8xf32>
    %128 = arith.mulf %126, %127 : vector<8x8xf32>
    %cst_50 = arith.constant dense<0xFF800000> : vector<8xf32>
    %129 = vector.multi_reduction <maximumf>, %128, %cst_50 [0] : vector<8x8xf32> to vector<8xf32>
    %130 = vector.shape_cast %129 : vector<8xf32> to vector<1x8xf32>
    %131 = vector.broadcast %130 : vector<1x8xf32> to vector<8x8xf32>
    %132 = arith.subf %128, %131 : vector<8x8xf32>
    %133 = math.exp %132 : vector<8x8xf32>
    %cst_51 = arith.constant dense<0.000000e+00> : vector<8xf32>
    %134 = vector.multi_reduction <add>, %133, %cst_51 [0] : vector<8x8xf32> to vector<8xf32>
    %135 = vector.shape_cast %134 : vector<8xf32> to vector<1x8xf32>
    %136 = vector.broadcast %135 : vector<1x8xf32> to vector<8x8xf32>
    %137 = arith.divf %133, %136 : vector<8x8xf32>
    %138 = vector.extract_strided_slice %11 {offsets = [0, 28], sizes = [8, 4], strides = [1, 1]} : vector<8x32xf32> to vector<8x4xf32>
    %cst_52 = arith.constant dense<0.000000e+00> : vector<8x4xf32>
    %139 = tpu.matmul %137, %138, %cst_52 {dimension_numbers = #tpu.dot_dimension_numbers<[1], [0], [0], [1], [0, 0, 1, 1], [], []>} : vector<8x8xf32>, vector<8x4xf32>, vector<8x4xf32> -> vector<8x4xf32>
    %140 = tpu.concatenate %27, %43, %59, %75, %91, %107, %123, %139 in 1 : vector<8x4xf32>, vector<8x4xf32>, vector<8x4xf32>, vector<8x4xf32>, vector<8x4xf32>, vector<8x4xf32>, vector<8x4xf32>, vector<8x4xf32> -> vector<8x32xf32>
    %141 = vector.extract_strided_slice %4 {offsets = [8, 0], sizes = [8, 32], strides = [1, 1]} : vector<16x32xf32> to vector<8x32xf32>
    %142 = vector.extract_strided_slice %6 {offsets = [8, 0], sizes = [8, 32], strides = [1, 1]} : vector<16x32xf32> to vector<8x32xf32>
    %143 = vector.extract_strided_slice %8 {offsets = [8, 0], sizes = [8, 32], strides = [1, 1]} : vector<16x32xf32> to vector<8x32xf32>
    %144 = vector.extract_strided_slice %141 {offsets = [0, 0], sizes = [8, 4], strides = [1, 1]} : vector<8x32xf32> to vector<8x4xf32>
    %145 = vector.extract_strided_slice %142 {offsets = [0, 0], sizes = [8, 4], strides = [1, 1]} : vector<8x32xf32> to vector<8x4xf32>
    %cst_53 = arith.constant dense<0.000000e+00> : vector<8x8xf32>
    %146 = tpu.matmul %144, %145, %cst_53 {dimension_numbers = #tpu.dot_dimension_numbers<[1], [1], [0], [0], [0, 0, 1, 0], [], []>} : vector<8x4xf32>, vector<8x4xf32>, vector<8x8xf32> -> vector<8x8xf32>
    %cst_54 = arith.constant 5.000000e-01 : f32
    %147 = vector.broadcast %cst_54 : f32 to vector<8x8xf32>
    %148 = arith.mulf %146, %147 : vector<8x8xf32>
    %cst_55 = arith.constant dense<0xFF800000> : vector<8xf32>
    %149 = vector.multi_reduction <maximumf>, %148, %cst_55 [0] : vector<8x8xf32> to vector<8xf32>
    %150 = vector.shape_cast %149 : vector<8xf32> to vector<1x8xf32>
    %151 = vector.broadcast %150 : vector<1x8xf32> to vector<8x8xf32>
    %152 = arith.subf %148, %151 : vector<8x8xf32>
    %153 = math.exp %152 : vector<8x8xf32>
    %cst_56 = arith.constant dense<0.000000e+00> : vector<8xf32>
    %154 = vector.multi_reduction <add>, %153, %cst_56 [0] : vector<8x8xf32> to vector<8xf32>
    %155 = vector.shape_cast %154 : vector<8xf32> to vector<1x8xf32>
    %156 = vector.broadcast %155 : vector<1x8xf32> to vector<8x8xf32>
    %157 = arith.divf %153, %156 : vector<8x8xf32>
    %158 = vector.extract_strided_slice %143 {offsets = [0, 0], sizes = [8, 4], strides = [1, 1]} : vector<8x32xf32> to vector<8x4xf32>
    %cst_57 = arith.constant dense<0.000000e+00> : vector<8x4xf32>
    %159 = tpu.matmul %157, %158, %cst_57 {dimension_numbers = #tpu.dot_dimension_numbers<[1], [0], [0], [1], [0, 0, 1, 1], [], []>} : vector<8x8xf32>, vector<8x4xf32>, vector<8x4xf32> -> vector<8x4xf32>
    %160 = vector.extract_strided_slice %141 {offsets = [0, 4], sizes = [8, 4], strides = [1, 1]} : vector<8x32xf32> to vector<8x4xf32>
    %161 = vector.extract_strided_slice %142 {offsets = [0, 4], sizes = [8, 4], strides = [1, 1]} : vector<8x32xf32> to vector<8x4xf32>
    %cst_58 = arith.constant dense<0.000000e+00> : vector<8x8xf32>
    %162 = tpu.matmul %160, %161, %cst_58 {dimension_numbers = #tpu.dot_dimension_numbers<[1], [1], [0], [0], [0, 0, 1, 0], [], []>} : vector<8x4xf32>, vector<8x4xf32>, vector<8x8xf32> -> vector<8x8xf32>
    %cst_59 = arith.constant 5.000000e-01 : f32
    %163 = vector.broadcast %cst_59 : f32 to vector<8x8xf32>
    %164 = arith.mulf %162, %163 : vector<8x8xf32>
    %cst_60 = arith.constant dense<0xFF800000> : vector<8xf32>
    %165 = vector.multi_reduction <maximumf>, %164, %cst_60 [0] : vector<8x8xf32> to vector<8xf32>
    %166 = vector.shape_cast %165 : vector<8xf32> to vector<1x8xf32>
    %167 = vector.broadcast %166 : vector<1x8xf32> to vector<8x8xf32>
    %168 = arith.subf %164, %167 : vector<8x8xf32>
    %169 = math.exp %168 : vector<8x8xf32>
    %cst_61 = arith.constant dense<0.000000e+00> : vector<8xf32>
    %170 = vector.multi_reduction <add>, %169, %cst_61 [0] : vector<8x8xf32> to vector<8xf32>
    %171 = vector.shape_cast %170 : vector<8xf32> to vector<1x8xf32>
    %172 = vector.broadcast %171 : vector<1x8xf32> to vector<8x8xf32>
    %173 = arith.divf %169, %172 : vector<8x8xf32>
    %174 = vector.extract_strided_slice %143 {offsets = [0, 4], sizes = [8, 4], strides = [1, 1]} : vector<8x32xf32> to vector<8x4xf32>
    %cst_62 = arith.constant dense<0.000000e+00> : vector<8x4xf32>
    %175 = tpu.matmul %173, %174, %cst_62 {dimension_numbers = #tpu.dot_dimension_numbers<[1], [0], [0], [1], [0, 0, 1, 1], [], []>} : vector<8x8xf32>, vector<8x4xf32>, vector<8x4xf32> -> vector<8x4xf32>
    %176 = vector.extract_strided_slice %141 {offsets = [0, 8], sizes = [8, 4], strides = [1, 1]} : vector<8x32xf32> to vector<8x4xf32>
    %177 = vector.extract_strided_slice %142 {offsets = [0, 8], sizes = [8, 4], strides = [1, 1]} : vector<8x32xf32> to vector<8x4xf32>
    %cst_63 = arith.constant dense<0.000000e+00> : vector<8x8xf32>
    %178 = tpu.matmul %176, %177, %cst_63 {dimension_numbers = #tpu.dot_dimension_numbers<[1], [1], [0], [0], [0, 0, 1, 0], [], []>} : vector<8x4xf32>, vector<8x4xf32>, vector<8x8xf32> -> vector<8x8xf32>
    %cst_64 = arith.constant 5.000000e-01 : f32
    %179 = vector.broadcast %cst_64 : f32 to vector<8x8xf32>
    %180 = arith.mulf %178, %179 : vector<8x8xf32>
    %cst_65 = arith.constant dense<0xFF800000> : vector<8xf32>
    %181 = vector.multi_reduction <maximumf>, %180, %cst_65 [0] : vector<8x8xf32> to vector<8xf32>
    %182 = vector.shape_cast %181 : vector<8xf32> to vector<1x8xf32>
    %183 = vector.broadcast %182 : vector<1x8xf32> to vector<8x8xf32>
    %184 = arith.subf %180, %183 : vector<8x8xf32>
    %185 = math.exp %184 : vector<8x8xf32>
    %cst_66 = arith.constant dense<0.000000e+00> : vector<8xf32>
    %186 = vector.multi_reduction <add>, %185, %cst_66 [0] : vector<8x8xf32> to vector<8xf32>
    %187 = vector.shape_cast %186 : vector<8xf32> to vector<1x8xf32>
    %188 = vector.broadcast %187 : vector<1x8xf32> to vector<8x8xf32>
    %189 = arith.divf %185, %188 : vector<8x8xf32>
    %190 = vector.extract_strided_slice %143 {offsets = [0, 8], sizes = [8, 4], strides = [1, 1]} : vector<8x32xf32> to vector<8x4xf32>
    %cst_67 = arith.constant dense<0.000000e+00> : vector<8x4xf32>
    %191 = tpu.matmul %189, %190, %cst_67 {dimension_numbers = #tpu.dot_dimension_numbers<[1], [0], [0], [1], [0, 0, 1, 1], [], []>} : vector<8x8xf32>, vector<8x4xf32>, vector<8x4xf32> -> vector<8x4xf32>
    %192 = vector.extract_strided_slice %141 {offsets = [0, 12], sizes = [8, 4], strides = [1, 1]} : vector<8x32xf32> to vector<8x4xf32>
    %193 = vector.extract_strided_slice %142 {offsets = [0, 12], sizes = [8, 4], strides = [1, 1]} : vector<8x32xf32> to vector<8x4xf32>
    %cst_68 = arith.constant dense<0.000000e+00> : vector<8x8xf32>
    %194 = tpu.matmul %192, %193, %cst_68 {dimension_numbers = #tpu.dot_dimension_numbers<[1], [1], [0], [0], [0, 0, 1, 0], [], []>} : vector<8x4xf32>, vector<8x4xf32>, vector<8x8xf32> -> vector<8x8xf32>
    %cst_69 = arith.constant 5.000000e-01 : f32
    %195 = vector.broadcast %cst_69 : f32 to vector<8x8xf32>
    %196 = arith.mulf %194, %195 : vector<8x8xf32>
    %cst_70 = arith.constant dense<0xFF800000> : vector<8xf32>
    %197 = vector.multi_reduction <maximumf>, %196, %cst_70 [0] : vector<8x8xf32> to vector<8xf32>
    %198 = vector.shape_cast %197 : vector<8xf32> to vector<1x8xf32>
    %199 = vector.broadcast %198 : vector<1x8xf32> to vector<8x8xf32>
    %200 = arith.subf %196, %199 : vector<8x8xf32>
    %201 = math.exp %200 : vector<8x8xf32>
    %cst_71 = arith.constant dense<0.000000e+00> : vector<8xf32>
    %202 = vector.multi_reduction <add>, %201, %cst_71 [0] : vector<8x8xf32> to vector<8xf32>
    %203 = vector.shape_cast %202 : vector<8xf32> to vector<1x8xf32>
    %204 = vector.broadcast %203 : vector<1x8xf32> to vector<8x8xf32>
    %205 = arith.divf %201, %204 : vector<8x8xf32>
    %206 = vector.extract_strided_slice %143 {offsets = [0, 12], sizes = [8, 4], strides = [1, 1]} : vector<8x32xf32> to vector<8x4xf32>
    %cst_72 = arith.constant dense<0.000000e+00> : vector<8x4xf32>
    %207 = tpu.matmul %205, %206, %cst_72 {dimension_numbers = #tpu.dot_dimension_numbers<[1], [0], [0], [1], [0, 0, 1, 1], [], []>} : vector<8x8xf32>, vector<8x4xf32>, vector<8x4xf32> -> vector<8x4xf32>
    %208 = vector.extract_strided_slice %141 {offsets = [0, 16], sizes = [8, 4], strides = [1, 1]} : vector<8x32xf32> to vector<8x4xf32>
    %209 = vector.extract_strided_slice %142 {offsets = [0, 16], sizes = [8, 4], strides = [1, 1]} : vector<8x32xf32> to vector<8x4xf32>
    %cst_73 = arith.constant dense<0.000000e+00> : vector<8x8xf32>
    %210 = tpu.matmul %208, %209, %cst_73 {dimension_numbers = #tpu.dot_dimension_numbers<[1], [1], [0], [0], [0, 0, 1, 0], [], []>} : vector<8x4xf32>, vector<8x4xf32>, vector<8x8xf32> -> vector<8x8xf32>
    %cst_74 = arith.constant 5.000000e-01 : f32
    %211 = vector.broadcast %cst_74 : f32 to vector<8x8xf32>
    %212 = arith.mulf %210, %211 : vector<8x8xf32>
    %cst_75 = arith.constant dense<0xFF800000> : vector<8xf32>
    %213 = vector.multi_reduction <maximumf>, %212, %cst_75 [0] : vector<8x8xf32> to vector<8xf32>
    %214 = vector.shape_cast %213 : vector<8xf32> to vector<1x8xf32>
    %215 = vector.broadcast %214 : vector<1x8xf32> to vector<8x8xf32>
    %216 = arith.subf %212, %215 : vector<8x8xf32>
    %217 = math.exp %216 : vector<8x8xf32>
    %cst_76 = arith.constant dense<0.000000e+00> : vector<8xf32>
    %218 = vector.multi_reduction <add>, %217, %cst_76 [0] : vector<8x8xf32> to vector<8xf32>
    %219 = vector.shape_cast %218 : vector<8xf32> to vector<1x8xf32>
    %220 = vector.broadcast %219 : vector<1x8xf32> to vector<8x8xf32>
    %221 = arith.divf %217, %220 : vector<8x8xf32>
    %222 = vector.extract_strided_slice %143 {offsets = [0, 16], sizes = [8, 4], strides = [1, 1]} : vector<8x32xf32> to vector<8x4xf32>
    %cst_77 = arith.constant dense<0.000000e+00> : vector<8x4xf32>
    %223 = tpu.matmul %221, %222, %cst_77 {dimension_numbers = #tpu.dot_dimension_numbers<[1], [0], [0], [1], [0, 0, 1, 1], [], []>} : vector<8x8xf32>, vector<8x4xf32>, vector<8x4xf32> -> vector<8x4xf32>
    %224 = vector.extract_strided_slice %141 {offsets = [0, 20], sizes = [8, 4], strides = [1, 1]} : vector<8x32xf32> to vector<8x4xf32>
    %225 = vector.extract_strided_slice %142 {offsets = [0, 20], sizes = [8, 4], strides = [1, 1]} : vector<8x32xf32> to vector<8x4xf32>
    %cst_78 = arith.constant dense<0.000000e+00> : vector<8x8xf32>
    %226 = tpu.matmul %224, %225, %cst_78 {dimension_numbers = #tpu.dot_dimension_numbers<[1], [1], [0], [0], [0, 0, 1, 0], [], []>} : vector<8x4xf32>, vector<8x4xf32>, vector<8x8xf32> -> vector<8x8xf32>
    %cst_79 = arith.constant 5.000000e-01 : f32
    %227 = vector.broadcast %cst_79 : f32 to vector<8x8xf32>
    %228 = arith.mulf %226, %227 : vector<8x8xf32>
    %cst_80 = arith.constant dense<0xFF800000> : vector<8xf32>
    %229 = vector.multi_reduction <maximumf>, %228, %cst_80 [0] : vector<8x8xf32> to vector<8xf32>
    %230 = vector.shape_cast %229 : vector<8xf32> to vector<1x8xf32>
    %231 = vector.broadcast %230 : vector<1x8xf32> to vector<8x8xf32>
    %232 = arith.subf %228, %231 : vector<8x8xf32>
    %233 = math.exp %232 : vector<8x8xf32>
    %cst_81 = arith.constant dense<0.000000e+00> : vector<8xf32>
    %234 = vector.multi_reduction <add>, %233, %cst_81 [0] : vector<8x8xf32> to vector<8xf32>
    %235 = vector.shape_cast %234 : vector<8xf32> to vector<1x8xf32>
    %236 = vector.broadcast %235 : vector<1x8xf32> to vector<8x8xf32>
    %237 = arith.divf %233, %236 : vector<8x8xf32>
    %238 = vector.extract_strided_slice %143 {offsets = [0, 20], sizes = [8, 4], strides = [1, 1]} : vector<8x32xf32> to vector<8x4xf32>
    %cst_82 = arith.constant dense<0.000000e+00> : vector<8x4xf32>
    %239 = tpu.matmul %237, %238, %cst_82 {dimension_numbers = #tpu.dot_dimension_numbers<[1], [0], [0], [1], [0, 0, 1, 1], [], []>} : vector<8x8xf32>, vector<8x4xf32>, vector<8x4xf32> -> vector<8x4xf32>
    %240 = vector.extract_strided_slice %141 {offsets = [0, 24], sizes = [8, 4], strides = [1, 1]} : vector<8x32xf32> to vector<8x4xf32>
    %241 = vector.extract_strided_slice %142 {offsets = [0, 24], sizes = [8, 4], strides = [1, 1]} : vector<8x32xf32> to vector<8x4xf32>
    %cst_83 = arith.constant dense<0.000000e+00> : vector<8x8xf32>
    %242 = tpu.matmul %240, %241, %cst_83 {dimension_numbers = #tpu.dot_dimension_numbers<[1], [1], [0], [0], [0, 0, 1, 0], [], []>} : vector<8x4xf32>, vector<8x4xf32>, vector<8x8xf32> -> vector<8x8xf32>
    %cst_84 = arith.constant 5.000000e-01 : f32
    %243 = vector.broadcast %cst_84 : f32 to vector<8x8xf32>
    %244 = arith.mulf %242, %243 : vector<8x8xf32>
    %cst_85 = arith.constant dense<0xFF800000> : vector<8xf32>
    %245 = vector.multi_reduction <maximumf>, %244, %cst_85 [0] : vector<8x8xf32> to vector<8xf32>
    %246 = vector.shape_cast %245 : vector<8xf32> to vector<1x8xf32>
    %247 = vector.broadcast %246 : vector<1x8xf32> to vector<8x8xf32>
    %248 = arith.subf %244, %247 : vector<8x8xf32>
    %249 = math.exp %248 : vector<8x8xf32>
    %cst_86 = arith.constant dense<0.000000e+00> : vector<8xf32>
    %250 = vector.multi_reduction <add>, %249, %cst_86 [0] : vector<8x8xf32> to vector<8xf32>
    %251 = vector.shape_cast %250 : vector<8xf32> to vector<1x8xf32>
    %252 = vector.broadcast %251 : vector<1x8xf32> to vector<8x8xf32>
    %253 = arith.divf %249, %252 : vector<8x8xf32>
    %254 = vector.extract_strided_slice %143 {offsets = [0, 24], sizes = [8, 4], strides = [1, 1]} : vector<8x32xf32> to vector<8x4xf32>
    %cst_87 = arith.constant dense<0.000000e+00> : vector<8x4xf32>
    %255 = tpu.matmul %253, %254, %cst_87 {dimension_numbers = #tpu.dot_dimension_numbers<[1], [0], [0], [1], [0, 0, 1, 1], [], []>} : vector<8x8xf32>, vector<8x4xf32>, vector<8x4xf32> -> vector<8x4xf32>
    %256 = vector.extract_strided_slice %141 {offsets = [0, 28], sizes = [8, 4], strides = [1, 1]} : vector<8x32xf32> to vector<8x4xf32>
    %257 = vector.extract_strided_slice %142 {offsets = [0, 28], sizes = [8, 4], strides = [1, 1]} : vector<8x32xf32> to vector<8x4xf32>
    %cst_88 = arith.constant dense<0.000000e+00> : vector<8x8xf32>
    %258 = tpu.matmul %256, %257, %cst_88 {dimension_numbers = #tpu.dot_dimension_numbers<[1], [1], [0], [0], [0, 0, 1, 0], [], []>} : vector<8x4xf32>, vector<8x4xf32>, vector<8x8xf32> -> vector<8x8xf32>
    %cst_89 = arith.constant 5.000000e-01 : f32
    %259 = vector.broadcast %cst_89 : f32 to vector<8x8xf32>
    %260 = arith.mulf %258, %259 : vector<8x8xf32>
    %cst_90 = arith.constant dense<0xFF800000> : vector<8xf32>
    %261 = vector.multi_reduction <maximumf>, %260, %cst_90 [0] : vector<8x8xf32> to vector<8xf32>
    %262 = vector.shape_cast %261 : vector<8xf32> to vector<1x8xf32>
    %263 = vector.broadcast %262 : vector<1x8xf32> to vector<8x8xf32>
    %264 = arith.subf %260, %263 : vector<8x8xf32>
    %265 = math.exp %264 : vector<8x8xf32>
    %cst_91 = arith.constant dense<0.000000e+00> : vector<8xf32>
    %266 = vector.multi_reduction <add>, %265, %cst_91 [0] : vector<8x8xf32> to vector<8xf32>
    %267 = vector.shape_cast %266 : vector<8xf32> to vector<1x8xf32>
    %268 = vector.broadcast %267 : vector<1x8xf32> to vector<8x8xf32>
    %269 = arith.divf %265, %268 : vector<8x8xf32>
    %270 = vector.extract_strided_slice %143 {offsets = [0, 28], sizes = [8, 4], strides = [1, 1]} : vector<8x32xf32> to vector<8x4xf32>
    %cst_92 = arith.constant dense<0.000000e+00> : vector<8x4xf32>
    %271 = tpu.matmul %269, %270, %cst_92 {dimension_numbers = #tpu.dot_dimension_numbers<[1], [0], [0], [1], [0, 0, 1, 1], [], []>} : vector<8x8xf32>, vector<8x4xf32>, vector<8x4xf32> -> vector<8x4xf32>
    %272 = tpu.concatenate %159, %175, %191, %207, %223, %239, %255, %271 in 1 : vector<8x4xf32>, vector<8x4xf32>, vector<8x4xf32>, vector<8x4xf32>, vector<8x4xf32>, vector<8x4xf32>, vector<8x4xf32>, vector<8x4xf32> -> vector<8x32xf32>
    %273 = tpu.concatenate %140, %272 in 0 : vector<8x32xf32>, vector<8x32xf32> -> vector<16x32xf32>
    %c0_93 = arith.constant 0 : index
    %c0_94 = arith.constant 0 : index
    %274 = vector.load %arg7[%c0_93, %c0_94] : memref<32x32xf32, #tpu.memory_space<vmem>>, vector<32x32xf32>
    %cst_95 = arith.constant dense<0.000000e+00> : vector<16x32xf32>
    %275 = tpu.matmul %273, %274, %cst_95 {dimension_numbers = #tpu.dot_dimension_numbers<[1], [0], [0], [1], [0, 0, 1, 1], [], []>} : vector<16x32xf32>, vector<32x32xf32>, vector<16x32xf32> -> vector<16x32xf32>
    %276 = arith.addf %0, %275 : vector<16x32xf32>
    %cst_96 = arith.constant dense<0.000000e+00> : vector<16xf32>
    %277 = vector.multi_reduction <add>, %276, %cst_96 [1] : vector<16x32xf32> to vector<16xf32>
    %278 = vector.shape_cast %277 : vector<16xf32> to vector<16x1xf32>
    %cst_97 = arith.constant 3.200000e+01 : f32
    %279 = vector.broadcast %cst_97 : f32 to vector<16x1xf32>
    %280 = arith.divf %278, %279 : vector<16x1xf32>
    %281 = vector.broadcast %280 : vector<16x1xf32> to vector<16x32xf32>
    %282 = arith.subf %276, %281 : vector<16x32xf32>
    %283 = arith.mulf %282, %282 : vector<16x32xf32>
    %cst_98 = arith.constant dense<0.000000e+00> : vector<16xf32>
    %284 = vector.multi_reduction <add>, %283, %cst_98 [1] : vector<16x32xf32> to vector<16xf32>
    %285 = vector.shape_cast %284 : vector<16xf32> to vector<16x1xf32>
    %cst_99 = arith.constant 3.200000e+01 : f32
    %286 = vector.broadcast %cst_99 : f32 to vector<16x1xf32>
    %287 = arith.divf %285, %286 : vector<16x1xf32>
    %cst_100 = arith.constant 9.99999974E-6 : f32
    %288 = vector.broadcast %cst_100 : f32 to vector<16x1xf32>
    %289 = arith.addf %287, %288 : vector<16x1xf32>
    %290 = math.rsqrt %289 : vector<16x1xf32>
    %291 = vector.broadcast %290 : vector<16x1xf32> to vector<16x32xf32>
    %292 = arith.mulf %282, %291 : vector<16x32xf32>
    %c0_101 = arith.constant 0 : index
    %c0_102 = arith.constant 0 : index
    %293 = vector.load %arg8[%c0_101, %c0_102] : memref<1x32xf32, #tpu.memory_space<vmem>>, vector<1x32xf32>
    %294 = vector.broadcast %293 : vector<1x32xf32> to vector<16x32xf32>
    %295 = arith.mulf %292, %294 : vector<16x32xf32>
    %c0_103 = arith.constant 0 : index
    %c0_104 = arith.constant 0 : index
    %296 = vector.load %arg9[%c0_103, %c0_104] : memref<1x32xf32, #tpu.memory_space<vmem>>, vector<1x32xf32>
    %297 = vector.broadcast %296 : vector<1x32xf32> to vector<16x32xf32>
    %298 = arith.addf %295, %297 : vector<16x32xf32>
    %c0_105 = arith.constant 0 : index
    %c0_106 = arith.constant 0 : index
    %299 = vector.load %arg10[%c0_105, %c0_106] : memref<16x32xf32, #tpu.memory_space<vmem>>, vector<16x32xf32>
    tpu.vector_store %arg10[%c0_105, %c0_106], %298 {strides = array<i32>} : memref<16x32xf32, #tpu.memory_space<vmem>>, vector<16x32xf32>,
    return
  }
  func.func @transform_0(%arg0: i32) -> (i32, i32) {
    %c0_i32 = arith.constant 0 : i32
    %c0_i32_0 = arith.constant 0 : i32
    %c0_i32_1 = arith.constant 0 : i32
    return %c0_i32, %c0_i32_0 : i32, i32
  }
  func.func @transform_1(%arg0: i32) -> (i32, i32) {
    %c0_i32 = arith.constant 0 : i32
    %c0_i32_0 = arith.constant 0 : i32
    %c0_i32_1 = arith.constant 0 : i32
    return %c0_i32, %c0_i32_0 : i32, i32
  }
  func.func @transform_2(%arg0: i32) -> (i32, i32) {
    %c0_i32 = arith.constant 0 : i32
    %c0_i32_0 = arith.constant 0 : i32
    %c0_i32_1 = arith.constant 0 : i32
    return %c0_i32, %c0_i32_0 : i32, i32
  }
  func.func @transform_3(%arg0: i32) -> (i32, i32) {
    %c0_i32 = arith.constant 0 : i32
    %c0_i32_0 = arith.constant 0 : i32
    %c0_i32_1 = arith.constant 0 : i32
    return %c0_i32, %c0_i32_0 : i32, i32
  }
  func.func @transform_4(%arg0: i32) -> (i32, i32) {
    %c0_i32 = arith.constant 0 : i32
    %c0_i32_0 = arith.constant 0 : i32
    %c0_i32_1 = arith.constant 0 : i32
    return %c0_i32, %c0_i32_0 : i32, i32
  }
  func.func @transform_5(%arg0: i32) -> (i32, i32) {
    %c0_i32 = arith.constant 0 : i32
    %c0_i32_0 = arith.constant 0 : i32
    %c0_i32_1 = arith.constant 0 : i32
    return %c0_i32, %c0_i32_0 : i32, i32
  }
  func.func @transform_6(%arg0: i32) -> (i32, i32) {
    %c0_i32 = arith.constant 0 : i32
    %c0_i32_0 = arith.constant 0 : i32
    %c0_i32_1 = arith.constant 0 : i32
    return %c0_i32, %c0_i32_0 : i32, i32
  }
  func.func @transform_7(%arg0: i32) -> (i32, i32) {
    %c0_i32 = arith.constant 0 : i32
    %c0_i32_0 = arith.constant 0 : i32
    %c0_i32_1 = arith.constant 0 : i32
    return %c0_i32, %c0_i32_0 : i32, i32
  }
  func.func @transform_8(%arg0: i32) -> (i32, i32) {
    %c0_i32 = arith.constant 0 : i32
    %c0_i32_0 = arith.constant 0 : i32
    %c0_i32_1 = arith.constant 0 : i32
    return %c0_i32, %c0_i32_0 : i32, i32
  }
  func.func @transform_9(%arg0: i32) -> (i32, i32) {
    %c0_i32 = arith.constant 0 : i32
    %c0_i32_0 = arith.constant 0 : i32
    %c0_i32_1 = arith.constant 0 : i32
    return %c0_i32, %c0_i32_0 : i32, i32
  }
}

</mosaic_0001>

<llo_original>
// kernel: tpu_custom_call.1
$region0: #{tpu_custom_call.1}
  #allocation0 [shape = 'u32[]', space=smem, size = 0x4, offset = 0x4, fixed_abs, tag = 'smem constant byte address 0x4 - core index']
  #allocation1 [shape = 'u32[144,128]{1,0:T(1,128)}', space=vmem, size = 0x12000, scoped, tag = 'internal scratch']
  %s0 = inlined_call_operand.hbm [shape: f32[16,32], index: 0, kind: input, shape index: {}]
  %s1 = inlined_call_operand.hbm [shape: f32[16,32], index: 1, kind: input, shape index: {}]
  %s2 = inlined_call_operand.hbm [shape: f32[16,32], index: 2, kind: input, shape index: {}]
  %s3 = inlined_call_operand.hbm [shape: f32[32,32], index: 3, kind: input, shape index: {}]
  %s4 = inlined_call_operand.hbm [shape: f32[32,32], index: 4, kind: input, shape index: {}]
  %s5 = inlined_call_operand.hbm [shape: f32[32,32], index: 5, kind: input, shape index: {}]
  %s6 = inlined_call_operand.hbm [shape: f32[32,32], index: 6, kind: input, shape index: {}]
  %s7 = inlined_call_operand.vmem [shape: f32[1,32], index: 7, kind: input, shape index: {}]
  %s8 = inlined_call_operand.vmem [shape: f32[1,32], index: 8, kind: input, shape index: {}]
  %s9 = inlined_call_operand.hbm [shape: f32[16,32], index: 9, kind: output, shape index: {}]
  %s10 = sld [smem:[#allocation0]]
  $region74: #{tpu_custom_call.1} parent=0
    _
  %s12 = ssub.s32 1, %s10
  %s13 = scalar_select 0, %s12, %s10
  $region1: #{tpu_custom_call.1} parent=0
    #allocation2 [shape = 'u8[8192]{0}', space=vmem, size = 0x2000, scoped, tag = 'input window, operand 0, single buffered']
    #allocation3 [shape = 's32[1]{0}', space=sflag, size = 0x4, scoped, tag = 'scoped memory for tpu_custom_call.1']
    #allocation4 [shape = 's32[1]{0}', space=sflag, size = 0x4, scoped, tag = 'scoped memory for tpu_custom_call.1']
    #allocation5 [shape = 'u8[8192]{0}', space=vmem, size = 0x2000, scoped, tag = 'input window, operand 1, single buffered']
    #allocation6 [shape = 's32[1]{0}', space=sflag, size = 0x4, scoped, tag = 'scoped memory for tpu_custom_call.1']
    #allocation7 [shape = 'u8[8192]{0}', space=vmem, size = 0x2000, scoped, tag = 'input window, operand 2, single buffered']
    #allocation8 [shape = 'u8[16384]{0}', space=vmem, size = 0x4000, scoped, tag = 'input window, operand 3, single buffered']
    #allocation9 [shape = 's32[1]{0}', space=sflag, size = 0x4, scoped, tag = 'scoped memory for tpu_custom_call.1']
    #allocation10 [shape = 'u8[16384]{0}', space=vmem, size = 0x4000, scoped, tag = 'input window, operand 4, single buffered']
    #allocation11 [shape = 'u8[16384]{0}', space=vmem, size = 0x4000, scoped, tag = 'input window, operand 5, single buffered']
    #allocation12 [shape = 's32[1]{0}', space=sflag, size = 0x4, scoped, tag = 'scoped memory for tpu_custom_call.1']
    #allocation13 [shape = 'u8[16384]{0}', space=vmem, size = 0x4000, scoped, tag = 'input window, operand 6, single buffered']
    #allocation14 [shape = 'u8[8192]{0}', space=vmem, size = 0x2000, scoped, tag = 'output window, operand 0, single buffered']
    %14 = vsyncpa [#allocation3], 0
    %15 = vsyncpa [#allocation6], 0
    %16 = vsyncpa [#allocation9], 0
    %17 = vsyncpa [#allocation12], 0
    %18 = vsyncpa [#allocation4], 0
    // Predicated region
    $region2: #{tpu_custom_call.1} parent=1 // pred_check
      _
    $region3: #{tpu_custom_call.1} parent=1 // pred_check_branch
      %20 = sbr.rel (0) target = $region5
    $region4: #{tpu_custom_call.1} parent=1 // pred_region
      %s22 = ssub.s32 256, 256
      %23 = vsyncadd [#allocation3], %s22
      %s24 = sshll.u32 [#allocation2], 4
      %s25 = int_to_ptr.vmem [resolvable:$true] %s24
      %30 = dma.hbm_to_vmem [thread:$0]  %s0, 256, %s25, [#allocation3], 128, 128, 8
    $region5: #{tpu_custom_call.1} parent=1 // pred_fallthru
      _
    // Predicated region
    $region6: #{tpu_custom_call.1} parent=1 // pred_check
      _
    $region7: #{tpu_custom_call.1} parent=1 // pred_check_branch
      %32 = sbr.rel (0) target = $region9
    $region8: #{tpu_custom_call.1} parent=1 // pred_region
      %s34 = ssub.s32 256, 256
      %35 = vsyncadd [#allocation6], %s34
      %s36 = sshll.u32 [#allocation5], 4
      %s37 = int_to_ptr.vmem [resolvable:$true] %s36
      %42 = dma.hbm_to_vmem [thread:$0]  %s1, 256, %s37, [#allocation6], 128, 128, 8
    $region9: #{tpu_custom_call.1} parent=1 // pred_fallthru
      _
    // Predicated region
    $region10: #{tpu_custom_call.1} parent=1 // pred_check
      _
    $region11: #{tpu_custom_call.1} parent=1 // pred_check_branch
      %44 = sbr.rel (0) target = $region13
    $region12: #{tpu_custom_call.1} parent=1 // pred_region
      %s46 = ssub.s32 256, 256
      %47 = vsyncadd [#allocation6], %s46
      %s48 = sshll.u32 [#allocation7], 4
      %s49 = int_to_ptr.vmem [resolvable:$true] %s48
      %54 = dma.hbm_to_vmem [thread:$0]  %s2, 256, %s49, [#allocation6], 128, 128, 8
    $region13: #{tpu_custom_call.1} parent=1 // pred_fallthru
      _
    // Predicated region
    $region14: #{tpu_custom_call.1} parent=1 // pred_check
      _
    $region15: #{tpu_custom_call.1} parent=1 // pred_check_branch
      %56 = sbr.rel (0) target = $region17
    $region16: #{tpu_custom_call.1} parent=1 // pred_region
      %s58 = ssub.s32 512, 512
      %59 = vsyncadd [#allocation9], %s58
      %s60 = sshll.u32 [#allocation8], 4
      %s61 = int_to_ptr.vmem [resolvable:$true] %s60
      %66 = dma.hbm_to_vmem [thread:$0]  %s3, 512, %s61, [#allocation9], 128, 128, 8
    $region17: #{tpu_custom_call.1} parent=1 // pred_fallthru
      _
    // Predicated region
    $region18: #{tpu_custom_call.1} parent=1 // pred_check
      _
    $region19: #{tpu_custom_call.1} parent=1 // pred_check_branch
      %68 = sbr.rel (0) target = $region21
    $region20: #{tpu_custom_call.1} parent=1 // pred_region
      %s70 = ssub.s32 512, 512
      %71 = vsyncadd [#allocation9], %s70
      %s72 = sshll.u32 [#allocation10], 4
      %s73 = int_to_ptr.vmem [resolvable:$true] %s72
      %78 = dma.hbm_to_vmem [thread:$0]  %s4, 512, %s73, [#allocation9], 128, 128, 8
    $region21: #{tpu_custom_call.1} parent=1 // pred_fallthru
      _
    // Predicated region
    $region22: #{tpu_custom_call.1} parent=1 // pred_check
      _
    $region23: #{tpu_custom_call.1} parent=1 // pred_check_branch
      %80 = sbr.rel (0) target = $region25
    $region24: #{tpu_custom_call.1} parent=1 // pred_region
      %s82 = ssub.s32 512, 512
      %83 = vsyncadd [#allocation12], %s82
      %s84 = sshll.u32 [#allocation11], 4
      %s85 = int_to_ptr.vmem [resolvable:$true] %s84
      %90 = dma.hbm_to_vmem [thread:$0]  %s5, 512, %s85, [#allocation12], 128, 128, 8
    $region25: #{tpu_custom_call.1} parent=1 // pred_fallthru
      _
    // Predicated region
    $region26: #{tpu_custom_call.1} parent=1 // pred_check
      _
    $region27: #{tpu_custom_call.1} parent=1 // pred_check_branch
      %92 = sbr.rel (0) target = $region29
    $region28: #{tpu_custom_call.1} parent=1 // pred_region
      %s94 = ssub.s32 512, 512
      %95 = vsyncadd [#allocation12], %s94
      %s96 = sshll.u32 [#allocation13], 4
      %s97 = int_to_ptr.vmem [resolvable:$true] %s96
      %102 = dma.hbm_to_vmem [thread:$0]  %s6, 512, %s97, [#allocation12], 128, 128, 8
    $region29: #{tpu_custom_call.1} parent=1 // pred_fallthru
      _
    // Predicated region
    $region30: #{tpu_custom_call.1} parent=1 // pred_check
      _
    $region31: #{tpu_custom_call.1} parent=1 // pred_check_branch
      %104 = sbr.rel (0) target = $region33
    $region32: #{tpu_custom_call.1} parent=1 // pred_region
      _
    $region33: #{tpu_custom_call.1} parent=1 // pred_fallthru
      _
    // Predicated region
    $region34: #{tpu_custom_call.1} parent=1 // pred_check
      _
    $region35: #{tpu_custom_call.1} parent=1 // pred_check_branch
      %106 = sbr.rel (0) target = $region37
    $region36: #{tpu_custom_call.1} parent=1 // pred_region
      _
    $region37: #{tpu_custom_call.1} parent=1 // pred_fallthru
      _
    // Predicated region
    $region38: #{tpu_custom_call.1} parent=1 // pred_check
      _
    $region39: #{tpu_custom_call.1} parent=1 // pred_check_branch
      %108 = sbr.rel (0) target = $region41
    $region40: #{tpu_custom_call.1} parent=1 // pred_region
      %109 = dma.done [#allocation3], 256
    $region41: #{tpu_custom_call.1} parent=1 // pred_fallthru
      _
    // Predicated region
    $region42: #{tpu_custom_call.1} parent=1 // pred_check
      _
    $region43: #{tpu_custom_call.1} parent=1 // pred_check_branch
      %111 = sbr.rel (0) target = $region45
    $region44: #{tpu_custom_call.1} parent=1 // pred_region
      %112 = dma.done [#allocation6], 256
    $region45: #{tpu_custom_call.1} parent=1 // pred_fallthru
      _
    // Predicated region
    $region46: #{tpu_custom_call.1} parent=1 // pred_check
      _
    $region47: #{tpu_custom_call.1} parent=1 // pred_check_branch
      %114 = sbr.rel (0) target = $region49
    $region48: #{tpu_custom_call.1} parent=1 // pred_region
      %115 = dma.done [#allocation6], 256
    $region49: #{tpu_custom_call.1} parent=1 // pred_fallthru
      _
    // Predicated region
    $region50: #{tpu_custom_call.1} parent=1 // pred_check
      _
    $region51: #{tpu_custom_call.1} parent=1 // pred_check_branch
      %117 = sbr.rel (0) target = $region53
    $region52: #{tpu_custom_call.1} parent=1 // pred_region
      %118 = dma.done [#allocation9], 512
    $region53: #{tpu_custom_call.1} parent=1 // pred_fallthru
      _
    // Predicated region
    $region54: #{tpu_custom_call.1} parent=1 // pred_check
      _
    $region55: #{tpu_custom_call.1} parent=1 // pred_check_branch
      %120 = sbr.rel (0) target = $region57
    $region56: #{tpu_custom_call.1} parent=1 // pred_region
      %121 = dma.done [#allocation9], 512
    $region57: #{tpu_custom_call.1} parent=1 // pred_fallthru
      _
    // Predicated region
    $region58: #{tpu_custom_call.1} parent=1 // pred_check
      _
    $region59: #{tpu_custom_call.1} parent=1 // pred_check_branch
      %123 = sbr.rel (0) target = $region61
    $region60: #{tpu_custom_call.1} parent=1 // pred_region
      %124 = dma.done [#allocation12], 512
    $region61: #{tpu_custom_call.1} parent=1 // pred_fallthru
      _
    // Predicated region
    $region62: #{tpu_custom_call.1} parent=1 // pred_check
      _
    $region63: #{tpu_custom_call.1} parent=1 // pred_check_branch
      %126 = sbr.rel (0) target = $region65
    $region64: #{tpu_custom_call.1} parent=1 // pred_region
      %127 = dma.done [#allocation12], 512
    $region65: #{tpu_custom_call.1} parent=1 // pred_fallthru
      _
    %v128 = vld [vmem:[#allocation2] sm:$0xff]
    %v129 = vld [vmem:[#allocation2 + $0x8] sm:$0xff]
    %v130 = vld [vmem:[#allocation5] sm:$0xff]
    %v131 = vld [vmem:[#allocation5 + $0x8] sm:$0xff]
    %v132 = vld [vmem:[#allocation7] sm:$0xff]
    %v133 = vld [vmem:[#allocation7 + $0x8] sm:$0xff]
    %v134 = vld [vmem:[#allocation8] sm:$0xff]
    %v135 = vld [vmem:[#allocation8 + $0x8] sm:$0xff]
    %v136 = vld [vmem:[#allocation8 + $0x10] sm:$0xff]
    %v137 = vld [vmem:[#allocation8 + $0x18] sm:$0xff]
    %vm138 = vcmask 261120
    %v140 = vsel %vm138, %v128, 0
    %v143 = vsel %vm138, %v129, 0
    %145 = vmatprep.subr.mxu0 0.0
    %146 = vmatpush1.msra.mxu0 0.0
    %147 = vmatprep.subr.mxu0 0.0
    %148 = vmatpush1.msra.mxu0 0.0
    %149 = vmatprep.subr.mxu0 0.0
    %150 = vmatpush1.msra.mxu0 0.0
    %151 = vmatprep.subr.mxu0 0.0
    %152 = vmatpush1.msra.mxu0 0.0
    %153 = vmatprep.subr.mxu0 0.0
    %154 = vmatpush1.msra.mxu0 0.0
    %155 = vmatprep.subr.mxu0 0.0
    %156 = vmatpush1.msra.mxu0 0.0
    %157 = vmatprep.subr.mxu0 0.0
    %158 = vmatpush1.msra.mxu0 0.0
    %159 = vmatprep.subr.mxu0 0.0
    %160 = vmatpush1.msra.mxu0 0.0
    %161 = vmatprep.subr.mxu0 0.0
    %162 = vmatpush1.msra.mxu0 0.0
    %163 = vmatprep.subr.mxu0 0.0
    %164 = vmatpush1.msra.mxu0 0.0
    %165 = vmatprep.subr.mxu0 0.0
    %166 = vmatpush1.msra.mxu0 0.0
    %167 = vmatprep.subr.mxu0 0.0
    %168 = vmatpush1.msra.mxu0 0.0
    %169 = vmatprep.subr.mxu0 0.0
    %170 = vmatpush1.msra.mxu0 %v137
    %171 = vmatprep.subr.mxu0 0.0
    %172 = vmatpush1.msra.mxu0 %v136
    %173 = vmatprep.subr.mxu0 0.0
    %174 = vmatpush1.msra.mxu0 %v135
    %175 = vmatprep.subr.mxu0 0.0
    %176 = vmatpush1.msra.mxu0 %v134
    %177 = vmatprep.subr.mxu0 0.0
    %178 = vmatpush2.msra.mxu0 0.0
    %179 = vmatprep.subr.mxu0 0.0
    %180 = vmatpush2.msra.mxu0 0.0
    %181 = vmatprep.subr.mxu0 0.0
    %182 = vmatpush2.msra.mxu0 0.0
    %183 = vmatprep.subr.mxu0 0.0
    %184 = vmatpush2.msra.mxu0 0.0
    %185 = vmatprep.subr.mxu0 0.0
    %186 = vmatpush2.msra.mxu0 0.0
    %187 = vmatprep.subr.mxu0 0.0
    %188 = vmatpush2.msra.mxu0 0.0
    %189 = vmatprep.subr.mxu0 0.0
    %190 = vmatpush2.msra.mxu0 0.0
    %191 = vmatprep.subr.mxu0 0.0
    %192 = vmatpush2.msra.mxu0 0.0
    %193 = vmatprep.subr.mxu0 0.0
    %194 = vmatpush2.msra.mxu0 0.0
    %195 = vmatprep.subr.mxu0 0.0
    %196 = vmatpush2.msra.mxu0 0.0
    %197 = vmatprep.subr.mxu0 0.0
    %198 = vmatpush2.msra.mxu0 0.0
    %199 = vmatprep.subr.mxu0 0.0
    %200 = vmatpush2.msra.mxu0 0.0
    %201 = vmatprep.subr.mxu0 0.0
    %202 = vmatpush2.msra.mxu0 0.0
    %203 = vmatprep.subr.mxu0 0.0
    %204 = vmatpush2.msra.mxu0 0.0
    %205 = vmatprep.subr.mxu0 0.0
    %206 = vmatpush2.msra.mxu0 0.0
    %207 = vmatprep.subr.mxu0 0.0
    %208 = vmatpush2.msra.mxu0 0.0
    %209 = vmatprep.mubr.f32.mxu0 0.0
    %210 = vmatmul.mubr.f32.gmra.mxu0 %v140
    %v211 = vpop.f32.mrf.mxu0
    %v212 = vadd.f32 0.0, %v211
    %v213 = vpop.f32.mrf.mxu0
    %214 = vmatprep.mubr.f32.mxu0 0.0
    %215 = vmatmul.mubr.f32.gmra.mxu0 %v143
    %v216 = vpop.f32.mrf.mxu0
    %v217 = vadd.f32 0.0, %v216
    %v218 = vpop.f32.mrf.mxu0
    %219 = vdwg.mxu0
    %v220 = vld [vmem:[#allocation10] sm:$0xff]
    %v221 = vld [vmem:[#allocation10 + $0x8] sm:$0xff]
    %v222 = vld [vmem:[#allocation10 + $0x10] sm:$0xff]
    %v223 = vld [vmem:[#allocation10 + $0x18] sm:$0xff]
    %v225 = vsel %vm138, %v130, 0
    %v228 = vsel %vm138, %v131, 0
    %230 = vmatprep.subr.mxu0 0.0
    %231 = vmatpush1.msra.mxu0 0.0
    %232 = vmatprep.subr.mxu0 0.0
    %233 = vmatpush1.msra.mxu0 0.0
    %234 = vmatprep.subr.mxu0 0.0
    %235 = vmatpush1.msra.mxu0 0.0
    %236 = vmatprep.subr.mxu0 0.0
    %237 = vmatpush1.msra.mxu0 0.0
    %238 = vmatprep.subr.mxu0 0.0
    %239 = vmatpush1.msra.mxu0 0.0
    %240 = vmatprep.subr.mxu0 0.0
    %241 = vmatpush1.msra.mxu0 0.0
    %242 = vmatprep.subr.mxu0 0.0
    %243 = vmatpush1.msra.mxu0 0.0
    %244 = vmatprep.subr.mxu0 0.0
    %245 = vmatpush1.msra.mxu0 0.0
    %246 = vmatprep.subr.mxu0 0.0
    %247 = vmatpush1.msra.mxu0 0.0
    %248 = vmatprep.subr.mxu0 0.0
    %249 = vmatpush1.msra.mxu0 0.0
    %250 = vmatprep.subr.mxu0 0.0
    %251 = vmatpush1.msra.mxu0 0.0
    %252 = vmatprep.subr.mxu0 0.0
    %253 = vmatpush1.msra.mxu0 0.0
    %254 = vmatprep.subr.mxu0 0.0
    %255 = vmatpush1.msra.mxu0 %v223
    %256 = vmatprep.subr.mxu0 0.0
    %257 = vmatpush1.msra.mxu0 %v222
    %258 = vmatprep.subr.mxu0 0.0
    %259 = vmatpush1.msra.mxu0 %v221
    %260 = vmatprep.subr.mxu0 0.0
    %261 = vmatpush1.msra.mxu0 %v220
    %262 = vmatprep.subr.mxu0 0.0
    %263 = vmatpush2.msra.mxu0 0.0
    %264 = vmatprep.subr.mxu0 0.0
    %265 = vmatpush2.msra.mxu0 0.0
    %266 = vmatprep.subr.mxu0 0.0
    %267 = vmatpush2.msra.mxu0 0.0
    %268 = vmatprep.subr.mxu0 0.0
    %269 = vmatpush2.msra.mxu0 0.0
    %270 = vmatprep.subr.mxu0 0.0
    %271 = vmatpush2.msra.mxu0 0.0
    %272 = vmatprep.subr.mxu0 0.0
    %273 = vmatpush2.msra.mxu0 0.0
    %274 = vmatprep.subr.mxu0 0.0
    %275 = vmatpush2.msra.mxu0 0.0
    %276 = vmatprep.subr.mxu0 0.0
    %277 = vmatpush2.msra.mxu0 0.0
    %278 = vmatprep.subr.mxu0 0.0
    %279 = vmatpush2.msra.mxu0 0.0
    %280 = vmatprep.subr.mxu0 0.0
    %281 = vmatpush2.msra.mxu0 0.0
    %282 = vmatprep.subr.mxu0 0.0
    %283 = vmatpush2.msra.mxu0 0.0
    %284 = vmatprep.subr.mxu0 0.0
    %285 = vmatpush2.msra.mxu0 0.0
    %286 = vmatprep.subr.mxu0 0.0
    %287 = vmatpush2.msra.mxu0 0.0
    %288 = vmatprep.subr.mxu0 0.0
    %289 = vmatpush2.msra.mxu0 0.0
    %290 = vmatprep.subr.mxu0 0.0
    %291 = vmatpush2.msra.mxu0 0.0
    %292 = vmatprep.subr.mxu0 0.0
    %293 = vmatpush2.msra.mxu0 0.0
    %294 = vmatprep.mubr.f32.mxu0 0.0
    %295 = vmatmul.mubr.f32.gmra.mxu0 %v225
    %v296 = vpop.f32.mrf.mxu0
    %v297 = vadd.f32 0.0, %v296
    %v298 = vpop.f32.mrf.mxu0
    %299 = vmatprep.mubr.f32.mxu0 0.0
    %300 = vmatmul.mubr.f32.gmra.mxu0 %v228
    %v301 = vpop.f32.mrf.mxu0
    %v302 = vadd.f32 0.0, %v301
    %v303 = vpop.f32.mrf.mxu0
    %304 = vdwg.mxu0
    %v305 = vld [vmem:[#allocation11] sm:$0xff]
    %v306 = vld [vmem:[#allocation11 + $0x8] sm:$0xff]
    %v307 = vld [vmem:[#allocation11 + $0x10] sm:$0xff]
    %v308 = vld [vmem:[#allocation11 + $0x18] sm:$0xff]
    %v310 = vsel %vm138, %v132, 0
    %v313 = vsel %vm138, %v133, 0
    %315 = vmatprep.subr.mxu0 0.0
    %316 = vmatpush1.msra.mxu0 0.0
    %317 = vmatprep.subr.mxu0 0.0
    %318 = vmatpush1.msra.mxu0 0.0
    %319 = vmatprep.subr.mxu0 0.0
    %320 = vmatpush1.msra.mxu0 0.0
    %321 = vmatprep.subr.mxu0 0.0
    %322 = vmatpush1.msra.mxu0 0.0
    %323 = vmatprep.subr.mxu0 0.0
    %324 = vmatpush1.msra.mxu0 0.0
    %325 = vmatprep.subr.mxu0 0.0
    %326 = vmatpush1.msra.mxu0 0.0
    %327 = vmatprep.subr.mxu0 0.0
    %328 = vmatpush1.msra.mxu0 0.0
    %329 = vmatprep.subr.mxu0 0.0
    %330 = vmatpush1.msra.mxu0 0.0
    %331 = vmatprep.subr.mxu0 0.0
    %332 = vmatpush1.msra.mxu0 0.0
    %333 = vmatprep.subr.mxu0 0.0
    %334 = vmatpush1.msra.mxu0 0.0
    %335 = vmatprep.subr.mxu0 0.0
    %336 = vmatpush1.msra.mxu0 0.0
    %337 = vmatprep.subr.mxu0 0.0
    %338 = vmatpush1.msra.mxu0 0.0
    %339 = vmatprep.subr.mxu0 0.0
    %340 = vmatpush1.msra.mxu0 %v308
    %341 = vmatprep.subr.mxu0 0.0
    %342 = vmatpush1.msra.mxu0 %v307
    %343 = vmatprep.subr.mxu0 0.0
    %344 = vmatpush1.msra.mxu0 %v306
    %345 = vmatprep.subr.mxu0 0.0
    %346 = vmatpush1.msra.mxu0 %v305
    %347 = vmatprep.subr.mxu0 0.0
    %348 = vmatpush2.msra.mxu0 0.0
    %349 = vmatprep.subr.mxu0 0.0
    %350 = vmatpush2.msra.mxu0 0.0
    %351 = vmatprep.subr.mxu0 0.0
    %352 = vmatpush2.msra.mxu0 0.0
    %353 = vmatprep.subr.mxu0 0.0
    %354 = vmatpush2.msra.mxu0 0.0
    %355 = vmatprep.subr.mxu0 0.0
    %356 = vmatpush2.msra.mxu0 0.0
    %357 = vmatprep.subr.mxu0 0.0
    %358 = vmatpush2.msra.mxu0 0.0
    %359 = vmatprep.subr.mxu0 0.0
    %360 = vmatpush2.msra.mxu0 0.0
    %361 = vmatprep.subr.mxu0 0.0
    %362 = vmatpush2.msra.mxu0 0.0
    %363 = vmatprep.subr.mxu0 0.0
    %364 = vmatpush2.msra.mxu0 0.0
    %365 = vmatprep.subr.mxu0 0.0
    %366 = vmatpush2.msra.mxu0 0.0
    %367 = vmatprep.subr.mxu0 0.0
    %368 = vmatpush2.msra.mxu0 0.0
    %369 = vmatprep.subr.mxu0 0.0
    %370 = vmatpush2.msra.mxu0 0.0
    %371 = vmatprep.subr.mxu0 0.0
    %372 = vmatpush2.msra.mxu0 0.0
    %373 = vmatprep.subr.mxu0 0.0
    %374 = vmatpush2.msra.mxu0 0.0
    %375 = vmatprep.subr.mxu0 0.0
    %376 = vmatpush2.msra.mxu0 0.0
    %377 = vmatprep.subr.mxu0 0.0
    %378 = vmatpush2.msra.mxu0 0.0
    %379 = vmatprep.mubr.f32.mxu0 0.0
    %380 = vmatmul.mubr.f32.gmra.mxu0 %v310
    %v381 = vpop.f32.mrf.mxu0
    %v382 = vadd.f32 0.0, %v381
    %v383 = vpop.f32.mrf.mxu0
    %384 = vmatprep.mubr.f32.mxu0 0.0
    %385 = vmatmul.mubr.f32.gmra.mxu0 %v313
    %v386 = vpop.f32.mrf.mxu0
    %v387 = vadd.f32 0.0, %v386
    %v388 = vpop.f32.mrf.mxu0
    %389 = vdwg.mxu0
    %vm390 = vcmask 31744
    %v392 = vsel %vm390, %v212, 0
    %v395 = vsel %vm390, %v297, 0
    %397 = vmatprep.subr.mxu0 0.0
    %398 = vmatpush1.xpose.msra.mxu0 0.0
    %399 = vmatprep.subr.mxu0 0.0
    %400 = vmatpush1.xpose.msra.mxu0 0.0
    %401 = vmatprep.subr.mxu0 0.0
    %402 = vmatpush1.xpose.msra.mxu0 0.0
    %403 = vmatprep.subr.mxu0 0.0
    %404 = vmatpush1.xpose.msra.mxu0 0.0
    %405 = vmatprep.subr.mxu0 0.0
    %406 = vmatpush1.xpose.msra.mxu0 0.0
    %407 = vmatprep.subr.mxu0 0.0
    %408 = vmatpush1.xpose.msra.mxu0 0.0
    %409 = vmatprep.subr.mxu0 0.0
    %410 = vmatpush1.xpose.msra.mxu0 0.0
    %411 = vmatprep.subr.mxu0 0.0
    %412 = vmatpush1.xpose.msra.mxu0 0.0
    %413 = vmatprep.subr.mxu0 0.0
    %414 = vmatpush1.xpose.msra.mxu0 0.0
    %415 = vmatprep.subr.mxu0 0.0
    %416 = vmatpush1.xpose.msra.mxu0 0.0
    %417 = vmatprep.subr.mxu0 0.0
    %418 = vmatpush1.xpose.msra.mxu0 0.0
    %419 = vmatprep.subr.mxu0 0.0
    %420 = vmatpush1.xpose.msra.mxu0 0.0
    %421 = vmatprep.subr.mxu0 0.0
    %422 = vmatpush1.xpose.msra.mxu0 0.0
    %423 = vmatprep.subr.mxu0 0.0
    %424 = vmatpush1.xpose.msra.mxu0 0.0
    %425 = vmatprep.subr.mxu0 0.0
    %426 = vmatpush1.xpose.msra.mxu0 0.0
    %427 = vmatprep.subr.mxu0 0.0
    %428 = vmatpush1.xpose.msra.mxu0 %v395
    %429 = vmatprep.subr.mxu0 0.0
    %430 = vmatpush2.xpose.msra.mxu0 0.0
    %431 = vmatprep.subr.mxu0 0.0
    %432 = vmatpush2.xpose.msra.mxu0 0.0
    %433 = vmatprep.subr.mxu0 0.0
    %434 = vmatpush2.xpose.msra.mxu0 0.0
    %435 = vmatprep.subr.mxu0 0.0
    %436 = vmatpush2.xpose.msra.mxu0 0.0
    %437 = vmatprep.subr.mxu0 0.0
    %438 = vmatpush2.xpose.msra.mxu0 0.0
    %439 = vmatprep.subr.mxu0 0.0
    %440 = vmatpush2.xpose.msra.mxu0 0.0
    %441 = vmatprep.subr.mxu0 0.0
    %442 = vmatpush2.xpose.msra.mxu0 0.0
    %443 = vmatprep.subr.mxu0 0.0
    %444 = vmatpush2.xpose.msra.mxu0 0.0
    %445 = vmatprep.subr.mxu0 0.0
    %446 = vmatpush2.xpose.msra.mxu0 0.0
    %447 = vmatprep.subr.mxu0 0.0
    %448 = vmatpush2.xpose.msra.mxu0 0.0
    %449 = vmatprep.subr.mxu0 0.0
    %450 = vmatpush2.xpose.msra.mxu0 0.0
    %451 = vmatprep.subr.mxu0 0.0
    %452 = vmatpush2.xpose.msra.mxu0 0.0
    %453 = vmatprep.subr.mxu0 0.0
    %454 = vmatpush2.xpose.msra.mxu0 0.0
    %455 = vmatprep.subr.mxu0 0.0
    %456 = vmatpush2.xpose.msra.mxu0 0.0
    %457 = vmatprep.subr.mxu0 0.0
    %458 = vmatpush2.xpose.msra.mxu0 0.0
    %459 = vmatprep.subr.mxu0 0.0
    %460 = vmatpush2.xpose.msra.mxu0 0.0
    %461 = vmatprep.mubr.f32.mxu0 0.0
    %462 = vmatmul.mubr.f32.gmra.mxu0 %v392
    %v463 = vpop.f32.mrf.mxu0
    %v464 = vadd.f32 0.0, %v463
    %v465 = vpop.f32.mrf.mxu0
    %466 = vdwg.mxu0
    %v467 = vmul.f32 %v464, 0.5
    %vm468 = vcmask 64512
    %v469 = vsel %vm468, %v467, -inf
    %v470 = vrot.slane %v469, 4
    %v471 = vmax.f32 %v469, %v470
    %v472 = vrot.slane %v471, 2
    %v473 = vmax.f32 %v471, %v472
    %v474 = vrot.slane %v473, 1
    %v475 = vmax.f32 %v473, %v474
    %v476 = vsub.f32 %v467, %v475
    %v477 = vmul.f32 %v476, 1.442695
    %v478 = vpow.pop %v477
    %v479 = vsel %vm468, %v478, 0.0
    %v480 = vrot.slane %v479, 4
    %v481 = vadd.f32 %v479, %v480
    %v482 = vrot.slane %v481, 2
    %v483 = vadd.f32 %v481, %v482
    %v484 = vrot.slane %v483, 1
    %v485 = vadd.f32 %v483, %v484
    %v486 = vrcp.pop %v485
    %v487 = vmul.f32 %v478, %v486
    %v489 = vsel %vm468, %v487, 0
    %491 = vmatprep.subr.mxu0 0.0
    %492 = vmatpush1.msra.mxu0 0.0
    %493 = vmatprep.subr.mxu0 0.0
    %494 = vmatpush1.msra.mxu0 0.0
    %495 = vmatprep.subr.mxu0 0.0
    %496 = vmatpush1.msra.mxu0 0.0
    %497 = vmatprep.subr.mxu0 0.0
    %498 = vmatpush1.msra.mxu0 0.0
    %499 = vmatprep.subr.mxu0 0.0
    %500 = vmatpush1.msra.mxu0 0.0
    %501 = vmatprep.subr.mxu0 0.0
    %502 = vmatpush1.msra.mxu0 0.0
    %503 = vmatprep.subr.mxu0 0.0
    %504 = vmatpush1.msra.mxu0 0.0
    %505 = vmatprep.subr.mxu0 0.0
    %506 = vmatpush1.msra.mxu0 0.0
    %507 = vmatprep.subr.mxu0 0.0
    %508 = vmatpush1.msra.mxu0 0.0
    %509 = vmatprep.subr.mxu0 0.0
    %510 = vmatpush1.msra.mxu0 0.0
    %511 = vmatprep.subr.mxu0 0.0
    %512 = vmatpush1.msra.mxu0 0.0
    %513 = vmatprep.subr.mxu0 0.0
    %514 = vmatpush1.msra.mxu0 0.0
    %515 = vmatprep.subr.mxu0 0.0
    %516 = vmatpush1.msra.mxu0 0.0
    %517 = vmatprep.subr.mxu0 0.0
    %518 = vmatpush1.msra.mxu0 0.0
    %519 = vmatprep.subr.mxu0 0.0
    %520 = vmatpush1.msra.mxu0 0.0
    %521 = vmatprep.subr.mxu0 0.0
    %522 = vmatpush1.msra.mxu0 %v382
    %523 = vmatprep.subr.mxu0 0.0
    %524 = vmatpush2.msra.mxu0 0.0
    %525 = vmatprep.subr.mxu0 0.0
    %526 = vmatpush2.msra.mxu0 0.0
    %527 = vmatprep.subr.mxu0 0.0
    %528 = vmatpush2.msra.mxu0 0.0
    %529 = vmatprep.subr.mxu0 0.0
    %530 = vmatpush2.msra.mxu0 0.0
    %531 = vmatprep.subr.mxu0 0.0
    %532 = vmatpush2.msra.mxu0 0.0
    %533 = vmatprep.subr.mxu0 0.0
    %534 = vmatpush2.msra.mxu0 0.0
    %535 = vmatprep.subr.mxu0 0.0
    %536 = vmatpush2.msra.mxu0 0.0
    %537 = vmatprep.subr.mxu0 0.0
    %538 = vmatpush2.msra.mxu0 0.0
    %539 = vmatprep.subr.mxu0 0.0
    %540 = vmatpush2.msra.mxu0 0.0
    %541 = vmatprep.subr.mxu0 0.0
    %542 = vmatpush2.msra.mxu0 0.0
    %543 = vmatprep.subr.mxu0 0.0
    %544 = vmatpush2.msra.mxu0 0.0
    %545 = vmatprep.subr.mxu0 0.0
    %546 = vmatpush2.msra.mxu0 0.0
    %547 = vmatprep.subr.mxu0 0.0
    %548 = vmatpush2.msra.mxu0 0.0
    %549 = vmatprep.subr.mxu0 0.0
    %550 = vmatpush2.msra.mxu0 0.0
    %551 = vmatprep.subr.mxu0 0.0
    %552 = vmatpush2.msra.mxu0 0.0
    %553 = vmatprep.subr.mxu0 0.0
    %554 = vmatpush2.msra.mxu0 0.0
    %555 = vmatprep.mubr.f32.mxu0 0.0
    %556 = vmatmul.mubr.f32.gmra.mxu0 %v489
    %v557 = vpop.f32.mrf.mxu0
    %v558 = vadd.f32 0.0, %v557
    %v559 = vpop.f32.mrf.mxu0
    %560 = vdwg.mxu0
    %561 = vrot.lane.b32.xlu0 %v212, 124
    %v562 = vpop.permute.xlu0 %561
    %563 = vrot.lane.b32.xlu0 %v297, 124
    %v564 = vpop.permute.xlu0 %563
    %v565 = vsel %vm390, %v562, 0
    %v567 = vsel %vm390, %v564, 0
    %569 = vmatprep.subr.mxu0 0.0
    %570 = vmatpush1.xpose.msra.mxu0 0.0
    %571 = vmatprep.subr.mxu0 0.0
    %572 = vmatpush1.xpose.msra.mxu0 0.0
    %573 = vmatprep.subr.mxu0 0.0
    %574 = vmatpush1.xpose.msra.mxu0 0.0
    %575 = vmatprep.subr.mxu0 0.0
    %576 = vmatpush1.xpose.msra.mxu0 0.0
    %577 = vmatprep.subr.mxu0 0.0
    %578 = vmatpush1.xpose.msra.mxu0 0.0
    %579 = vmatprep.subr.mxu0 0.0
    %580 = vmatpush1.xpose.msra.mxu0 0.0
    %581 = vmatprep.subr.mxu0 0.0
    %582 = vmatpush1.xpose.msra.mxu0 0.0
    %583 = vmatprep.subr.mxu0 0.0
    %584 = vmatpush1.xpose.msra.mxu0 0.0
    %585 = vmatprep.subr.mxu0 0.0
    %586 = vmatpush1.xpose.msra.mxu0 0.0
    %587 = vmatprep.subr.mxu0 0.0
    %588 = vmatpush1.xpose.msra.mxu0 0.0
    %589 = vmatprep.subr.mxu0 0.0
    %590 = vmatpush1.xpose.msra.mxu0 0.0
    %591 = vmatprep.subr.mxu0 0.0
    %592 = vmatpush1.xpose.msra.mxu0 0.0
    %593 = vmatprep.subr.mxu0 0.0
    %594 = vmatpush1.xpose.msra.mxu0 0.0
    %595 = vmatprep.subr.mxu0 0.0
    %596 = vmatpush1.xpose.msra.mxu0 0.0
    %597 = vmatprep.subr.mxu0 0.0
    %598 = vmatpush1.xpose.msra.mxu0 0.0
    %599 = vmatprep.subr.mxu0 0.0
    %600 = vmatpush1.xpose.msra.mxu0 %v567
    %601 = vmatprep.subr.mxu0 0.0
    %602 = vmatpush2.xpose.msra.mxu0 0.0
    %603 = vmatprep.subr.mxu0 0.0
    %604 = vmatpush2.xpose.msra.mxu0 0.0
    %605 = vmatprep.subr.mxu0 0.0
    %606 = vmatpush2.xpose.msra.mxu0 0.0
    %607 = vmatprep.subr.mxu0 0.0
    %608 = vmatpush2.xpose.msra.mxu0 0.0
    %609 = vmatprep.subr.mxu0 0.0
    %610 = vmatpush2.xpose.msra.mxu0 0.0
    %611 = vmatprep.subr.mxu0 0.0
    %612 = vmatpush2.xpose.msra.mxu0 0.0
    %613 = vmatprep.subr.mxu0 0.0
    %614 = vmatpush2.xpose.msra.mxu0 0.0
    %615 = vmatprep.subr.mxu0 0.0
    %616 = vmatpush2.xpose.msra.mxu0 0.0
    %617 = vmatprep.subr.mxu0 0.0
    %618 = vmatpush2.xpose.msra.mxu0 0.0
    %619 = vmatprep.subr.mxu0 0.0
    %620 = vmatpush2.xpose.msra.mxu0 0.0
    %621 = vmatprep.subr.mxu0 0.0
    %622 = vmatpush2.xpose.msra.mxu0 0.0
    %623 = vmatprep.subr.mxu0 0.0
    %624 = vmatpush2.xpose.msra.mxu0 0.0
    %625 = vmatprep.subr.mxu0 0.0
    %626 = vmatpush2.xpose.msra.mxu0 0.0
    %627 = vmatprep.subr.mxu0 0.0
    %628 = vmatpush2.xpose.msra.mxu0 0.0
    %629 = vmatprep.subr.mxu0 0.0
    %630 = vmatpush2.xpose.msra.mxu0 0.0
    %631 = vmatprep.subr.mxu0 0.0
    %632 = vmatpush2.xpose.msra.mxu0 0.0
    %633 = vmatprep.mubr.f32.mxu0 0.0
    %634 = vmatmul.mubr.f32.gmra.mxu0 %v565
    %v635 = vpop.f32.mrf.mxu0
    %v636 = vadd.f32 0.0, %v635
    %v637 = vpop.f32.mrf.mxu0
    %638 = vdwg.mxu0
    %v639 = vmul.f32 %v636, 0.5
    %v640 = vsel %vm468, %v639, -inf
    %v641 = vrot.slane %v640, 4
    %v642 = vmax.f32 %v640, %v641
    %v643 = vrot.slane %v642, 2
    %v644 = vmax.f32 %v642, %v643
    %v645 = vrot.slane %v644, 1
    %v646 = vmax.f32 %v644, %v645
    %v647 = vsub.f32 %v639, %v646
    %v648 = vmul.f32 %v647, 1.442695
    %v649 = vpow.pop %v648
    %v650 = vsel %vm468, %v649, 0.0
    %v651 = vrot.slane %v650, 4
    %v652 = vadd.f32 %v650, %v651
    %v653 = vrot.slane %v652, 2
    %v654 = vadd.f32 %v652, %v653
    %v655 = vrot.slane %v654, 1
    %v656 = vadd.f32 %v654, %v655
    %v657 = vrcp.pop %v656
    %v658 = vmul.f32 %v649, %v657
    %660 = vrot.lane.b32.xlu0 %v382, 124
    %v661 = vpop.permute.xlu0 %660
    %v664 = vsel %vm468, %v658, 0
    %666 = vmatprep.subr.mxu0 0.0
    %667 = vmatpush1.msra.mxu0 0.0
    %668 = vmatprep.subr.mxu0 0.0
    %669 = vmatpush1.msra.mxu0 0.0
    %670 = vmatprep.subr.mxu0 0.0
    %671 = vmatpush1.msra.mxu0 0.0
    %672 = vmatprep.subr.mxu0 0.0
    %673 = vmatpush1.msra.mxu0 0.0
    %674 = vmatprep.subr.mxu0 0.0
    %675 = vmatpush1.msra.mxu0 0.0
    %676 = vmatprep.subr.mxu0 0.0
    %677 = vmatpush1.msra.mxu0 0.0
    %678 = vmatprep.subr.mxu0 0.0
    %679 = vmatpush1.msra.mxu0 0.0
    %680 = vmatprep.subr.mxu0 0.0
    %681 = vmatpush1.msra.mxu0 0.0
    %682 = vmatprep.subr.mxu0 0.0
    %683 = vmatpush1.msra.mxu0 0.0
    %684 = vmatprep.subr.mxu0 0.0
    %685 = vmatpush1.msra.mxu0 0.0
    %686 = vmatprep.subr.mxu0 0.0
    %687 = vmatpush1.msra.mxu0 0.0
    %688 = vmatprep.subr.mxu0 0.0
    %689 = vmatpush1.msra.mxu0 0.0
    %690 = vmatprep.subr.mxu0 0.0
    %691 = vmatpush1.msra.mxu0 0.0
    %692 = vmatprep.subr.mxu0 0.0
    %693 = vmatpush1.msra.mxu0 0.0
    %694 = vmatprep.subr.mxu0 0.0
    %695 = vmatpush1.msra.mxu0 0.0
    %696 = vmatprep.subr.mxu0 0.0
    %697 = vmatpush1.msra.mxu0 %v661
    %698 = vmatprep.subr.mxu0 0.0
    %699 = vmatpush2.msra.mxu0 0.0
    %700 = vmatprep.subr.mxu0 0.0
    %701 = vmatpush2.msra.mxu0 0.0
    %702 = vmatprep.subr.mxu0 0.0
    %703 = vmatpush2.msra.mxu0 0.0
    %704 = vmatprep.subr.mxu0 0.0
    %705 = vmatpush2.msra.mxu0 0.0
    %706 = vmatprep.subr.mxu0 0.0
    %707 = vmatpush2.msra.mxu0 0.0
    %708 = vmatprep.subr.mxu0 0.0
    %709 = vmatpush2.msra.mxu0 0.0
    %710 = vmatprep.subr.mxu0 0.0
    %711 = vmatpush2.msra.mxu0 0.0
    %712 = vmatprep.subr.mxu0 0.0
    %713 = vmatpush2.msra.mxu0 0.0
    %714 = vmatprep.subr.mxu0 0.0
    %715 = vmatpush2.msra.mxu0 0.0
    %716 = vmatprep.subr.mxu0 0.0
    %717 = vmatpush2.msra.mxu0 0.0
    %718 = vmatprep.subr.mxu0 0.0
    %719 = vmatpush2.msra.mxu0 0.0
    %720 = vmatprep.subr.mxu0 0.0
    %721 = vmatpush2.msra.mxu0 0.0
    %722 = vmatprep.subr.mxu0 0.0
    %723 = vmatpush2.msra.mxu0 0.0
    %724 = vmatprep.subr.mxu0 0.0
    %725 = vmatpush2.msra.mxu0 0.0
    %726 = vmatprep.subr.mxu0 0.0
    %727 = vmatpush2.msra.mxu0 0.0
    %728 = vmatprep.subr.mxu0 0.0
    %729 = vmatpush2.msra.mxu0 0.0
    %730 = vmatprep.mubr.f32.mxu0 0.0
    %731 = vmatmul.mubr.f32.gmra.mxu0 %v664
    %v732 = vpop.f32.mrf.mxu0
    %v733 = vadd.f32 0.0, %v732
    %v734 = vpop.f32.mrf.mxu0
    %735 = vdwg.mxu0
    %736 = vrot.lane.b32.xlu0 %v212, 120
    %v737 = vpop.permute.xlu0 %736
    %738 = vrot.lane.b32.xlu0 %v297, 120
    %v739 = vpop.permute.xlu0 %738
    %v740 = vsel %vm390, %v737, 0
    %v742 = vsel %vm390, %v739, 0
    %744 = vmatprep.subr.mxu0 0.0
    %745 = vmatpush1.xpose.msra.mxu0 0.0
    %746 = vmatprep.subr.mxu0 0.0
    %747 = vmatpush1.xpose.msra.mxu0 0.0
    %748 = vmatprep.subr.mxu0 0.0
    %749 = vmatpush1.xpose.msra.mxu0 0.0
    %750 = vmatprep.subr.mxu0 0.0
    %751 = vmatpush1.xpose.msra.mxu0 0.0
    %752 = vmatprep.subr.mxu0 0.0
    %753 = vmatpush1.xpose.msra.mxu0 0.0
    %754 = vmatprep.subr.mxu0 0.0
    %755 = vmatpush1.xpose.msra.mxu0 0.0
    %756 = vmatprep.subr.mxu0 0.0
    %757 = vmatpush1.xpose.msra.mxu0 0.0
    %758 = vmatprep.subr.mxu0 0.0
    %759 = vmatpush1.xpose.msra.mxu0 0.0
    %760 = vmatprep.subr.mxu0 0.0
    %761 = vmatpush1.xpose.msra.mxu0 0.0
    %762 = vmatprep.subr.mxu0 0.0
    %763 = vmatpush1.xpose.msra.mxu0 0.0
    %764 = vmatprep.subr.mxu0 0.0
    %765 = vmatpush1.xpose.msra.mxu0 0.0
    %766 = vmatprep.subr.mxu0 0.0
    %767 = vmatpush1.xpose.msra.mxu0 0.0
    %768 = vmatprep.subr.mxu0 0.0
    %769 = vmatpush1.xpose.msra.mxu0 0.0
    %770 = vmatprep.subr.mxu0 0.0
    %771 = vmatpush1.xpose.msra.mxu0 0.0
    %772 = vmatprep.subr.mxu0 0.0
    %773 = vmatpush1.xpose.msra.mxu0 0.0
    %774 = vmatprep.subr.mxu0 0.0
    %775 = vmatpush1.xpose.msra.mxu0 %v742
    %776 = vmatprep.subr.mxu0 0.0
    %777 = vmatpush2.xpose.msra.mxu0 0.0
    %778 = vmatprep.subr.mxu0 0.0
    %779 = vmatpush2.xpose.msra.mxu0 0.0
    %780 = vmatprep.subr.mxu0 0.0
    %781 = vmatpush2.xpose.msra.mxu0 0.0
    %782 = vmatprep.subr.mxu0 0.0
    %783 = vmatpush2.xpose.msra.mxu0 0.0
    %784 = vmatprep.subr.mxu0 0.0
    %785 = vmatpush2.xpose.msra.mxu0 0.0
    %786 = vmatprep.subr.mxu0 0.0
    %787 = vmatpush2.xpose.msra.mxu0 0.0
    %788 = vmatprep.subr.mxu0 0.0
    %789 = vmatpush2.xpose.msra.mxu0 0.0
    %790 = vmatprep.subr.mxu0 0.0
    %791 = vmatpush2.xpose.msra.mxu0 0.0
    %792 = vmatprep.subr.mxu0 0.0
    %793 = vmatpush2.xpose.msra.mxu0 0.0
    %794 = vmatprep.subr.mxu0 0.0
    %795 = vmatpush2.xpose.msra.mxu0 0.0
    %796 = vmatprep.subr.mxu0 0.0
    %797 = vmatpush2.xpose.msra.mxu0 0.0
    %798 = vmatprep.subr.mxu0 0.0
    %799 = vmatpush2.xpose.msra.mxu0 0.0
    %800 = vmatprep.subr.mxu0 0.0
    %801 = vmatpush2.xpose.msra.mxu0 0.0
    %802 = vmatprep.subr.mxu0 0.0
    %803 = vmatpush2.xpose.msra.mxu0 0.0
    %804 = vmatprep.subr.mxu0 0.0
    %805 = vmatpush2.xpose.msra.mxu0 0.0
    %806 = vmatprep.subr.mxu0 0.0
    %807 = vmatpush2.xpose.msra.mxu0 0.0
    %808 = vmatprep.mubr.f32.mxu0 0.0
    %809 = vmatmul.mubr.f32.gmra.mxu0 %v740
    %v810 = vpop.f32.mrf.mxu0
    %v811 = vadd.f32 0.0, %v810
    %v812 = vpop.f32.mrf.mxu0
    %813 = vdwg.mxu0
    %v814 = vmul.f32 %v811, 0.5
    %v815 = vsel %vm468, %v814, -inf
    %v816 = vrot.slane %v815, 4
    %v817 = vmax.f32 %v815, %v816
    %v818 = vrot.slane %v817, 2
    %v819 = vmax.f32 %v817, %v818
    %v820 = vrot.slane %v819, 1
    %v821 = vmax.f32 %v819, %v820
    %v822 = vsub.f32 %v814, %v821
    %v823 = vmul.f32 %v822, 1.442695
    %v824 = vpow.pop %v823
    %v825 = vsel %vm468, %v824, 0.0
    %v826 = vrot.slane %v825, 4
    %v827 = vadd.f32 %v825, %v826
    %v828 = vrot.slane %v827, 2
    %v829 = vadd.f32 %v827, %v828
    %v830 = vrot.slane %v829, 1
    %v831 = vadd.f32 %v829, %v830
    %v832 = vrcp.pop %v831
    %v833 = vmul.f32 %v824, %v832
    %834 = vrot.lane.b32.xlu0 %v382, 120
    %v835 = vpop.permute.xlu0 %834
    %v838 = vsel %vm468, %v833, 0
    %840 = vmatprep.subr.mxu0 0.0
    %841 = vmatpush1.msra.mxu0 0.0
    %842 = vmatprep.subr.mxu0 0.0
    %843 = vmatpush1.msra.mxu0 0.0
    %844 = vmatprep.subr.mxu0 0.0
    %845 = vmatpush1.msra.mxu0 0.0
    %846 = vmatprep.subr.mxu0 0.0
    %847 = vmatpush1.msra.mxu0 0.0
    %848 = vmatprep.subr.mxu0 0.0
    %849 = vmatpush1.msra.mxu0 0.0
    %850 = vmatprep.subr.mxu0 0.0
    %851 = vmatpush1.msra.mxu0 0.0
    %852 = vmatprep.subr.mxu0 0.0
    %853 = vmatpush1.msra.mxu0 0.0
    %854 = vmatprep.subr.mxu0 0.0
    %855 = vmatpush1.msra.mxu0 0.0
    %856 = vmatprep.subr.mxu0 0.0
    %857 = vmatpush1.msra.mxu0 0.0
    %858 = vmatprep.subr.mxu0 0.0
    %859 = vmatpush1.msra.mxu0 0.0
    %860 = vmatprep.subr.mxu0 0.0
    %861 = vmatpush1.msra.mxu0 0.0
    %862 = vmatprep.subr.mxu0 0.0
    %863 = vmatpush1.msra.mxu0 0.0
    %864 = vmatprep.subr.mxu0 0.0
    %865 = vmatpush1.msra.mxu0 0.0
    %866 = vmatprep.subr.mxu0 0.0
    %867 = vmatpush1.msra.mxu0 0.0
    %868 = vmatprep.subr.mxu0 0.0
    %869 = vmatpush1.msra.mxu0 0.0
    %870 = vmatprep.subr.mxu0 0.0
    %871 = vmatpush1.msra.mxu0 %v835
    %872 = vmatprep.subr.mxu0 0.0
    %873 = vmatpush2.msra.mxu0 0.0
    %874 = vmatprep.subr.mxu0 0.0
    %875 = vmatpush2.msra.mxu0 0.0
    %876 = vmatprep.subr.mxu0 0.0
    %877 = vmatpush2.msra.mxu0 0.0
    %878 = vmatprep.subr.mxu0 0.0
    %879 = vmatpush2.msra.mxu0 0.0
    %880 = vmatprep.subr.mxu0 0.0
    %881 = vmatpush2.msra.mxu0 0.0
    %882 = vmatprep.subr.mxu0 0.0
    %883 = vmatpush2.msra.mxu0 0.0
    %884 = vmatprep.subr.mxu0 0.0
    %885 = vmatpush2.msra.mxu0 0.0
    %886 = vmatprep.subr.mxu0 0.0
    %887 = vmatpush2.msra.mxu0 0.0
    %888 = vmatprep.subr.mxu0 0.0
    %889 = vmatpush2.msra.mxu0 0.0
    %890 = vmatprep.subr.mxu0 0.0
    %891 = vmatpush2.msra.mxu0 0.0
    %892 = vmatprep.subr.mxu0 0.0
    %893 = vmatpush2.msra.mxu0 0.0
    %894 = vmatprep.subr.mxu0 0.0
    %895 = vmatpush2.msra.mxu0 0.0
    %896 = vmatprep.subr.mxu0 0.0
    %897 = vmatpush2.msra.mxu0 0.0
    %898 = vmatprep.subr.mxu0 0.0
    %899 = vmatpush2.msra.mxu0 0.0
    %900 = vmatprep.subr.mxu0 0.0
    %901 = vmatpush2.msra.mxu0 0.0
    %902 = vmatprep.subr.mxu0 0.0
    %903 = vmatpush2.msra.mxu0 0.0
    %904 = vmatprep.mubr.f32.mxu0 0.0
    %905 = vmatmul.mubr.f32.gmra.mxu0 %v838
    %v906 = vpop.f32.mrf.mxu0
    %v907 = vadd.f32 0.0, %v906
    %v908 = vpop.f32.mrf.mxu0
    %909 = vdwg.mxu0
    %910 = vrot.lane.b32.xlu0 %v212, 116
    %v911 = vpop.permute.xlu0 %910
    %912 = vrot.lane.b32.xlu0 %v297, 116
    %v913 = vpop.permute.xlu0 %912
    %v914 = vsel %vm390, %v911, 0
    %v916 = vsel %vm390, %v913, 0
    %918 = vmatprep.subr.mxu0 0.0
    %919 = vmatpush1.xpose.msra.mxu0 0.0
    %920 = vmatprep.subr.mxu0 0.0
    %921 = vmatpush1.xpose.msra.mxu0 0.0
    %922 = vmatprep.subr.mxu0 0.0
    %923 = vmatpush1.xpose.msra.mxu0 0.0
    %924 = vmatprep.subr.mxu0 0.0
    %925 = vmatpush1.xpose.msra.mxu0 0.0
    %926 = vmatprep.subr.mxu0 0.0
    %927 = vmatpush1.xpose.msra.mxu0 0.0
    %928 = vmatprep.subr.mxu0 0.0
    %929 = vmatpush1.xpose.msra.mxu0 0.0
    %930 = vmatprep.subr.mxu0 0.0
    %931 = vmatpush1.xpose.msra.mxu0 0.0
    %932 = vmatprep.subr.mxu0 0.0
    %933 = vmatpush1.xpose.msra.mxu0 0.0
    %934 = vmatprep.subr.mxu0 0.0
    %935 = vmatpush1.xpose.msra.mxu0 0.0
    %936 = vmatprep.subr.mxu0 0.0
    %937 = vmatpush1.xpose.msra.mxu0 0.0
    %938 = vmatprep.subr.mxu0 0.0
    %939 = vmatpush1.xpose.msra.mxu0 0.0
    %940 = vmatprep.subr.mxu0 0.0
    %941 = vmatpush1.xpose.msra.mxu0 0.0
    %942 = vmatprep.subr.mxu0 0.0
    %943 = vmatpush1.xpose.msra.mxu0 0.0
    %944 = vmatprep.subr.mxu0 0.0
    %945 = vmatpush1.xpose.msra.mxu0 0.0
    %946 = vmatprep.subr.mxu0 0.0
    %947 = vmatpush1.xpose.msra.mxu0 0.0
    %948 = vmatprep.subr.mxu0 0.0
    %949 = vmatpush1.xpose.msra.mxu0 %v916
    %950 = vmatprep.subr.mxu0 0.0
    %951 = vmatpush2.xpose.msra.mxu0 0.0
    %952 = vmatprep.subr.mxu0 0.0
    %953 = vmatpush2.xpose.msra.mxu0 0.0
    %954 = vmatprep.subr.mxu0 0.0
    %955 = vmatpush2.xpose.msra.mxu0 0.0
    %956 = vmatprep.subr.mxu0 0.0
    %957 = vmatpush2.xpose.msra.mxu0 0.0
    %958 = vmatprep.subr.mxu0 0.0
    %959 = vmatpush2.xpose.msra.mxu0 0.0
    %960 = vmatprep.subr.mxu0 0.0
    %961 = vmatpush2.xpose.msra.mxu0 0.0
    %962 = vmatprep.subr.mxu0 0.0
    %963 = vmatpush2.xpose.msra.mxu0 0.0
    %964 = vmatprep.subr.mxu0 0.0
    %965 = vmatpush2.xpose.msra.mxu0 0.0
    %966 = vmatprep.subr.mxu0 0.0
    %967 = vmatpush2.xpose.msra.mxu0 0.0
    %968 = vmatprep.subr.mxu0 0.0
    %969 = vmatpush2.xpose.msra.mxu0 0.0
    %970 = vmatprep.subr.mxu0 0.0
    %971 = vmatpush2.xpose.msra.mxu0 0.0
    %972 = vmatprep.subr.mxu0 0.0
    %973 = vmatpush2.xpose.msra.mxu0 0.0
    %974 = vmatprep.subr.mxu0 0.0
    %975 = vmatpush2.xpose.msra.mxu0 0.0
    %976 = vmatprep.subr.mxu0 0.0
    %977 = vmatpush2.xpose.msra.mxu0 0.0
    %978 = vmatprep.subr.mxu0 0.0
    %979 = vmatpush2.xpose.msra.mxu0 0.0
    %980 = vmatprep.subr.mxu0 0.0
    %981 = vmatpush2.xpose.msra.mxu0 0.0
    %982 = vmatprep.mubr.f32.mxu0 0.0
    %983 = vmatmul.mubr.f32.gmra.mxu0 %v914
    %v984 = vpop.f32.mrf.mxu0
    %v985 = vadd.f32 0.0, %v984
    %v986 = vpop.f32.mrf.mxu0
    %987 = vdwg.mxu0
    %v988 = vmul.f32 %v985, 0.5
    %v989 = vsel %vm468, %v988, -inf
    %v990 = vrot.slane %v989, 4
    %v991 = vmax.f32 %v989, %v990
    %v992 = vrot.slane %v991, 2
    %v993 = vmax.f32 %v991, %v992
    %v994 = vrot.slane %v993, 1
    %v995 = vmax.f32 %v993, %v994
    %v996 = vsub.f32 %v988, %v995
    %v997 = vmul.f32 %v996, 1.442695
    %v998 = vpow.pop %v997
    %v999 = vsel %vm468, %v998, 0.0
    %v1000 = vrot.slane %v999, 4
    %v1001 = vadd.f32 %v999, %v1000
    %v1002 = vrot.slane %v1001, 2
    %v1003 = vadd.f32 %v1001, %v1002
    %v1004 = vrot.slane %v1003, 1
    %v1005 = vadd.f32 %v1003, %v1004
    %v1006 = vrcp.pop %v1005
    %v1007 = vmul.f32 %v998, %v1006
    %1008 = vrot.lane.b32.xlu0 %v382, 116
    %v1009 = vpop.permute.xlu0 %1008
    %v1012 = vsel %vm468, %v1007, 0
    %1014 = vmatprep.subr.mxu0 0.0
    %1015 = vmatpush1.msra.mxu0 0.0
    %1016 = vmatprep.subr.mxu0 0.0
    %1017 = vmatpush1.msra.mxu0 0.0
    %1018 = vmatprep.subr.mxu0 0.0
    %1019 = vmatpush1.msra.mxu0 0.0
    %1020 = vmatprep.subr.mxu0 0.0
    %1021 = vmatpush1.msra.mxu0 0.0
    %1022 = vmatprep.subr.mxu0 0.0
    %1023 = vmatpush1.msra.mxu0 0.0
    %1024 = vmatprep.subr.mxu0 0.0
    %1025 = vmatpush1.msra.mxu0 0.0
    %1026 = vmatprep.subr.mxu0 0.0
    %1027 = vmatpush1.msra.mxu0 0.0
    %1028 = vmatprep.subr.mxu0 0.0
    %1029 = vmatpush1.msra.mxu0 0.0
    %1030 = vmatprep.subr.mxu0 0.0
    %1031 = vmatpush1.msra.mxu0 0.0
    %1032 = vmatprep.subr.mxu0 0.0
    %1033 = vmatpush1.msra.mxu0 0.0
    %1034 = vmatprep.subr.mxu0 0.0
    %1035 = vmatpush1.msra.mxu0 0.0
    %1036 = vmatprep.subr.mxu0 0.0
    %1037 = vmatpush1.msra.mxu0 0.0
    %1038 = vmatprep.subr.mxu0 0.0
    %1039 = vmatpush1.msra.mxu0 0.0
    %1040 = vmatprep.subr.mxu0 0.0
    %1041 = vmatpush1.msra.mxu0 0.0
    %1042 = vmatprep.subr.mxu0 0.0
    %1043 = vmatpush1.msra.mxu0 0.0
    %1044 = vmatprep.subr.mxu0 0.0
    %1045 = vmatpush1.msra.mxu0 %v1009
    %1046 = vmatprep.subr.mxu0 0.0
    %1047 = vmatpush2.msra.mxu0 0.0
    %1048 = vmatprep.subr.mxu0 0.0
    %1049 = vmatpush2.msra.mxu0 0.0
    %1050 = vmatprep.subr.mxu0 0.0
    %1051 = vmatpush2.msra.mxu0 0.0
    %1052 = vmatprep.subr.mxu0 0.0
    %1053 = vmatpush2.msra.mxu0 0.0
    %1054 = vmatprep.subr.mxu0 0.0
    %1055 = vmatpush2.msra.mxu0 0.0
    %1056 = vmatprep.subr.mxu0 0.0
    %1057 = vmatpush2.msra.mxu0 0.0
    %1058 = vmatprep.subr.mxu0 0.0
    %1059 = vmatpush2.msra.mxu0 0.0
    %1060 = vmatprep.subr.mxu0 0.0
    %1061 = vmatpush2.msra.mxu0 0.0
    %1062 = vmatprep.subr.mxu0 0.0
    %1063 = vmatpush2.msra.mxu0 0.0
    %1064 = vmatprep.subr.mxu0 0.0
    %1065 = vmatpush2.msra.mxu0 0.0
    %1066 = vmatprep.subr.mxu0 0.0
    %1067 = vmatpush2.msra.mxu0 0.0
    %1068 = vmatprep.subr.mxu0 0.0
    %1069 = vmatpush2.msra.mxu0 0.0
    %1070 = vmatprep.subr.mxu0 0.0
    %1071 = vmatpush2.msra.mxu0 0.0
    %1072 = vmatprep.subr.mxu0 0.0
    %1073 = vmatpush2.msra.mxu0 0.0
    %1074 = vmatprep.subr.mxu0 0.0
    %1075 = vmatpush2.msra.mxu0 0.0
    %1076 = vmatprep.subr.mxu0 0.0
    %1077 = vmatpush2.msra.mxu0 0.0
    %1078 = vmatprep.mubr.f32.mxu0 0.0
    %1079 = vmatmul.mubr.f32.gmra.mxu0 %v1012
    %v1080 = vpop.f32.mrf.mxu0
    %v1081 = vadd.f32 0.0, %v1080
    %v1082 = vpop.f32.mrf.mxu0
    %1083 = vdwg.mxu0
    %1084 = vrot.lane.b32.xlu0 %v212, 112
    %v1085 = vpop.permute.xlu0 %1084
    %1086 = vrot.lane.b32.xlu0 %v297, 112
    %v1087 = vpop.permute.xlu0 %1086
    %v1088 = vsel %vm390, %v1085, 0
    %v1090 = vsel %vm390, %v1087, 0
    %1092 = vmatprep.subr.mxu0 0.0
    %1093 = vmatpush1.xpose.msra.mxu0 0.0
    %1094 = vmatprep.subr.mxu0 0.0
    %1095 = vmatpush1.xpose.msra.mxu0 0.0
    %1096 = vmatprep.subr.mxu0 0.0
    %1097 = vmatpush1.xpose.msra.mxu0 0.0
    %1098 = vmatprep.subr.mxu0 0.0
    %1099 = vmatpush1.xpose.msra.mxu0 0.0
    %1100 = vmatprep.subr.mxu0 0.0
    %1101 = vmatpush1.xpose.msra.mxu0 0.0
    %1102 = vmatprep.subr.mxu0 0.0
    %1103 = vmatpush1.xpose.msra.mxu0 0.0
    %1104 = vmatprep.subr.mxu0 0.0
    %1105 = vmatpush1.xpose.msra.mxu0 0.0
    %1106 = vmatprep.subr.mxu0 0.0
    %1107 = vmatpush1.xpose.msra.mxu0 0.0
    %1108 = vmatprep.subr.mxu0 0.0
    %1109 = vmatpush1.xpose.msra.mxu0 0.0
    %1110 = vmatprep.subr.mxu0 0.0
    %1111 = vmatpush1.xpose.msra.mxu0 0.0
    %1112 = vmatprep.subr.mxu0 0.0
    %1113 = vmatpush1.xpose.msra.mxu0 0.0
    %1114 = vmatprep.subr.mxu0 0.0
    %1115 = vmatpush1.xpose.msra.mxu0 0.0
    %1116 = vmatprep.subr.mxu0 0.0
    %1117 = vmatpush1.xpose.msra.mxu0 0.0
    %1118 = vmatprep.subr.mxu0 0.0
    %1119 = vmatpush1.xpose.msra.mxu0 0.0
    %1120 = vmatprep.subr.mxu0 0.0
    %1121 = vmatpush1.xpose.msra.mxu0 0.0
    %1122 = vmatprep.subr.mxu0 0.0
    %1123 = vmatpush1.xpose.msra.mxu0 %v1090
    %1124 = vmatprep.subr.mxu0 0.0
    %1125 = vmatpush2.xpose.msra.mxu0 0.0
    %1126 = vmatprep.subr.mxu0 0.0
    %1127 = vmatpush2.xpose.msra.mxu0 0.0
    %1128 = vmatprep.subr.mxu0 0.0
    %1129 = vmatpush2.xpose.msra.mxu0 0.0
    %1130 = vmatprep.subr.mxu0 0.0
    %1131 = vmatpush2.xpose.msra.mxu0 0.0
    %1132 = vmatprep.subr.mxu0 0.0
    %1133 = vmatpush2.xpose.msra.mxu0 0.0
    %1134 = vmatprep.subr.mxu0 0.0
    %1135 = vmatpush2.xpose.msra.mxu0 0.0
    %1136 = vmatprep.subr.mxu0 0.0
    %1137 = vmatpush2.xpose.msra.mxu0 0.0
    %1138 = vmatprep.subr.mxu0 0.0
    %1139 = vmatpush2.xpose.msra.mxu0 0.0
    %1140 = vmatprep.subr.mxu0 0.0
    %1141 = vmatpush2.xpose.msra.mxu0 0.0
    %1142 = vmatprep.subr.mxu0 0.0
    %1143 = vmatpush2.xpose.msra.mxu0 0.0
    %1144 = vmatprep.subr.mxu0 0.0
    %1145 = vmatpush2.xpose.msra.mxu0 0.0
    %1146 = vmatprep.subr.mxu0 0.0
    %1147 = vmatpush2.xpose.msra.mxu0 0.0
    %1148 = vmatprep.subr.mxu0 0.0
    %1149 = vmatpush2.xpose.msra.mxu0 0.0
    %1150 = vmatprep.subr.mxu0 0.0
    %1151 = vmatpush2.xpose.msra.mxu0 0.0
    %1152 = vmatprep.subr.mxu0 0.0
    %1153 = vmatpush2.xpose.msra.mxu0 0.0
    %1154 = vmatprep.subr.mxu0 0.0
    %1155 = vmatpush2.xpose.msra.mxu0 0.0
    %1156 = vmatprep.mubr.f32.mxu0 0.0
    %1157 = vmatmul.mubr.f32.gmra.mxu0 %v1088
    %v1158 = vpop.f32.mrf.mxu0
    %v1159 = vadd.f32 0.0, %v1158
    %v1160 = vpop.f32.mrf.mxu0
    %1161 = vdwg.mxu0
    %v1162 = vmul.f32 %v1159, 0.5
    %v1163 = vsel %vm468, %v1162, -inf
    %v1164 = vrot.slane %v1163, 4
    %v1165 = vmax.f32 %v1163, %v1164
    %v1166 = vrot.slane %v1165, 2
    %v1167 = vmax.f32 %v1165, %v1166
    %v1168 = vrot.slane %v1167, 1
    %v1169 = vmax.f32 %v1167, %v1168
    %v1170 = vsub.f32 %v1162, %v1169
    %v1171 = vmul.f32 %v1170, 1.442695
    %v1172 = vpow.pop %v1171
    %v1173 = vsel %vm468, %v1172, 0.0
    %v1174 = vrot.slane %v1173, 4
    %v1175 = vadd.f32 %v1173, %v1174
    %v1176 = vrot.slane %v1175, 2
    %v1177 = vadd.f32 %v1175, %v1176
    %v1178 = vrot.slane %v1177, 1
    %v1179 = vadd.f32 %v1177, %v1178
    %v1180 = vrcp.pop %v1179
    %v1181 = vmul.f32 %v1172, %v1180
    %1182 = vrot.lane.b32.xlu0 %v382, 112
    %v1183 = vpop.permute.xlu0 %1182
    %v1186 = vsel %vm468, %v1181, 0
    %1188 = vmatprep.subr.mxu0 0.0
    %1189 = vmatpush1.msra.mxu0 0.0
    %1190 = vmatprep.subr.mxu0 0.0
    %1191 = vmatpush1.msra.mxu0 0.0
    %1192 = vmatprep.subr.mxu0 0.0
    %1193 = vmatpush1.msra.mxu0 0.0
    %1194 = vmatprep.subr.mxu0 0.0
    %1195 = vmatpush1.msra.mxu0 0.0
    %1196 = vmatprep.subr.mxu0 0.0
    %1197 = vmatpush1.msra.mxu0 0.0
    %1198 = vmatprep.subr.mxu0 0.0
    %1199 = vmatpush1.msra.mxu0 0.0
    %1200 = vmatprep.subr.mxu0 0.0
    %1201 = vmatpush1.msra.mxu0 0.0
    %1202 = vmatprep.subr.mxu0 0.0
    %1203 = vmatpush1.msra.mxu0 0.0
    %1204 = vmatprep.subr.mxu0 0.0
    %1205 = vmatpush1.msra.mxu0 0.0
    %1206 = vmatprep.subr.mxu0 0.0
    %1207 = vmatpush1.msra.mxu0 0.0
    %1208 = vmatprep.subr.mxu0 0.0
    %1209 = vmatpush1.msra.mxu0 0.0
    %1210 = vmatprep.subr.mxu0 0.0
    %1211 = vmatpush1.msra.mxu0 0.0
    %1212 = vmatprep.subr.mxu0 0.0
    %1213 = vmatpush1.msra.mxu0 0.0
    %1214 = vmatprep.subr.mxu0 0.0
    %1215 = vmatpush1.msra.mxu0 0.0
    %1216 = vmatprep.subr.mxu0 0.0
    %1217 = vmatpush1.msra.mxu0 0.0
    %1218 = vmatprep.subr.mxu0 0.0
    %1219 = vmatpush1.msra.mxu0 %v1183
    %1220 = vmatprep.subr.mxu0 0.0
    %1221 = vmatpush2.msra.mxu0 0.0
    %1222 = vmatprep.subr.mxu0 0.0
    %1223 = vmatpush2.msra.mxu0 0.0
    %1224 = vmatprep.subr.mxu0 0.0
    %1225 = vmatpush2.msra.mxu0 0.0
    %1226 = vmatprep.subr.mxu0 0.0
    %1227 = vmatpush2.msra.mxu0 0.0
    %1228 = vmatprep.subr.mxu0 0.0
    %1229 = vmatpush2.msra.mxu0 0.0
    %1230 = vmatprep.subr.mxu0 0.0
    %1231 = vmatpush2.msra.mxu0 0.0
    %1232 = vmatprep.subr.mxu0 0.0
    %1233 = vmatpush2.msra.mxu0 0.0
    %1234 = vmatprep.subr.mxu0 0.0
    %1235 = vmatpush2.msra.mxu0 0.0
    %1236 = vmatprep.subr.mxu0 0.0
    %1237 = vmatpush2.msra.mxu0 0.0
    %1238 = vmatprep.subr.mxu0 0.0
    %1239 = vmatpush2.msra.mxu0 0.0
    %1240 = vmatprep.subr.mxu0 0.0
    %1241 = vmatpush2.msra.mxu0 0.0
    %1242 = vmatprep.subr.mxu0 0.0
    %1243 = vmatpush2.msra.mxu0 0.0
    %1244 = vmatprep.subr.mxu0 0.0
    %1245 = vmatpush2.msra.mxu0 0.0
    %1246 = vmatprep.subr.mxu0 0.0
    %1247 = vmatpush2.msra.mxu0 0.0
    %1248 = vmatprep.subr.mxu0 0.0
    %1249 = vmatpush2.msra.mxu0 0.0
    %1250 = vmatprep.subr.mxu0 0.0
    %1251 = vmatpush2.msra.mxu0 0.0
    %1252 = vmatprep.mubr.f32.mxu0 0.0
    %1253 = vmatmul.mubr.f32.gmra.mxu0 %v1186
    %v1254 = vpop.f32.mrf.mxu0
    %v1255 = vadd.f32 0.0, %v1254
    %v1256 = vpop.f32.mrf.mxu0
    %1257 = vdwg.mxu0
    %1258 = vrot.lane.b32.xlu0 %v212, 108
    %v1259 = vpop.permute.xlu0 %1258
    %1260 = vrot.lane.b32.xlu0 %v297, 108
    %v1261 = vpop.permute.xlu0 %1260
    %v1262 = vsel %vm390, %v1259, 0
    %v1264 = vsel %vm390, %v1261, 0
    %1266 = vmatprep.subr.mxu0 0.0
    %1267 = vmatpush1.xpose.msra.mxu0 0.0
    %1268 = vmatprep.subr.mxu0 0.0
    %1269 = vmatpush1.xpose.msra.mxu0 0.0
    %1270 = vmatprep.subr.mxu0 0.0
    %1271 = vmatpush1.xpose.msra.mxu0 0.0
    %1272 = vmatprep.subr.mxu0 0.0
    %1273 = vmatpush1.xpose.msra.mxu0 0.0
    %1274 = vmatprep.subr.mxu0 0.0
    %1275 = vmatpush1.xpose.msra.mxu0 0.0
    %1276 = vmatprep.subr.mxu0 0.0
    %1277 = vmatpush1.xpose.msra.mxu0 0.0
    %1278 = vmatprep.subr.mxu0 0.0
    %1279 = vmatpush1.xpose.msra.mxu0 0.0
    %1280 = vmatprep.subr.mxu0 0.0
    %1281 = vmatpush1.xpose.msra.mxu0 0.0
    %1282 = vmatprep.subr.mxu0 0.0
    %1283 = vmatpush1.xpose.msra.mxu0 0.0
    %1284 = vmatprep.subr.mxu0 0.0
    %1285 = vmatpush1.xpose.msra.mxu0 0.0
    %1286 = vmatprep.subr.mxu0 0.0
    %1287 = vmatpush1.xpose.msra.mxu0 0.0
    %1288 = vmatprep.subr.mxu0 0.0
    %1289 = vmatpush1.xpose.msra.mxu0 0.0
    %1290 = vmatprep.subr.mxu0 0.0
    %1291 = vmatpush1.xpose.msra.mxu0 0.0
    %1292 = vmatprep.subr.mxu0 0.0
    %1293 = vmatpush1.xpose.msra.mxu0 0.0
    %1294 = vmatprep.subr.mxu0 0.0
    %1295 = vmatpush1.xpose.msra.mxu0 0.0
    %1296 = vmatprep.subr.mxu0 0.0
    %1297 = vmatpush1.xpose.msra.mxu0 %v1264
    %1298 = vmatprep.subr.mxu0 0.0
    %1299 = vmatpush2.xpose.msra.mxu0 0.0
    %1300 = vmatprep.subr.mxu0 0.0
    %1301 = vmatpush2.xpose.msra.mxu0 0.0
    %1302 = vmatprep.subr.mxu0 0.0
    %1303 = vmatpush2.xpose.msra.mxu0 0.0
    %1304 = vmatprep.subr.mxu0 0.0
    %1305 = vmatpush2.xpose.msra.mxu0 0.0
    %1306 = vmatprep.subr.mxu0 0.0
    %1307 = vmatpush2.xpose.msra.mxu0 0.0
    %1308 = vmatprep.subr.mxu0 0.0
    %1309 = vmatpush2.xpose.msra.mxu0 0.0
    %1310 = vmatprep.subr.mxu0 0.0
    %1311 = vmatpush2.xpose.msra.mxu0 0.0
    %1312 = vmatprep.subr.mxu0 0.0
    %1313 = vmatpush2.xpose.msra.mxu0 0.0
    %1314 = vmatprep.subr.mxu0 0.0
    %1315 = vmatpush2.xpose.msra.mxu0 0.0
    %1316 = vmatprep.subr.mxu0 0.0
    %1317 = vmatpush2.xpose.msra.mxu0 0.0
    %1318 = vmatprep.subr.mxu0 0.0
    %1319 = vmatpush2.xpose.msra.mxu0 0.0
    %1320 = vmatprep.subr.mxu0 0.0
    %1321 = vmatpush2.xpose.msra.mxu0 0.0
    %1322 = vmatprep.subr.mxu0 0.0
    %1323 = vmatpush2.xpose.msra.mxu0 0.0
    %1324 = vmatprep.subr.mxu0 0.0
    %1325 = vmatpush2.xpose.msra.mxu0 0.0
    %1326 = vmatprep.subr.mxu0 0.0
    %1327 = vmatpush2.xpose.msra.mxu0 0.0
    %1328 = vmatprep.subr.mxu0 0.0
    %1329 = vmatpush2.xpose.msra.mxu0 0.0
    %1330 = vmatprep.mubr.f32.mxu0 0.0
    %1331 = vmatmul.mubr.f32.gmra.mxu0 %v1262
    %v1332 = vpop.f32.mrf.mxu0
    %v1333 = vadd.f32 0.0, %v1332
    %v1334 = vpop.f32.mrf.mxu0
    %1335 = vdwg.mxu0
    %v1336 = vmul.f32 %v1333, 0.5
    %v1337 = vsel %vm468, %v1336, -inf
    %v1338 = vrot.slane %v1337, 4
    %v1339 = vmax.f32 %v1337, %v1338
    %v1340 = vrot.slane %v1339, 2
    %v1341 = vmax.f32 %v1339, %v1340
    %v1342 = vrot.slane %v1341, 1
    %v1343 = vmax.f32 %v1341, %v1342
    %v1344 = vsub.f32 %v1336, %v1343
    %v1345 = vmul.f32 %v1344, 1.442695
    %v1346 = vpow.pop %v1345
    %v1347 = vsel %vm468, %v1346, 0.0
    %v1348 = vrot.slane %v1347, 4
    %v1349 = vadd.f32 %v1347, %v1348
    %v1350 = vrot.slane %v1349, 2
    %v1351 = vadd.f32 %v1349, %v1350
    %v1352 = vrot.slane %v1351, 1
    %v1353 = vadd.f32 %v1351, %v1352
    %v1354 = vrcp.pop %v1353
    %v1355 = vmul.f32 %v1346, %v1354
    %1356 = vrot.lane.b32.xlu0 %v382, 108
    %v1357 = vpop.permute.xlu0 %1356
    %v1360 = vsel %vm468, %v1355, 0
    %1362 = vmatprep.subr.mxu0 0.0
    %1363 = vmatpush1.msra.mxu0 0.0
    %1364 = vmatprep.subr.mxu0 0.0
    %1365 = vmatpush1.msra.mxu0 0.0
    %1366 = vmatprep.subr.mxu0 0.0
    %1367 = vmatpush1.msra.mxu0 0.0
    %1368 = vmatprep.subr.mxu0 0.0
    %1369 = vmatpush1.msra.mxu0 0.0
    %1370 = vmatprep.subr.mxu0 0.0
    %1371 = vmatpush1.msra.mxu0 0.0
    %1372 = vmatprep.subr.mxu0 0.0
    %1373 = vmatpush1.msra.mxu0 0.0
    %1374 = vmatprep.subr.mxu0 0.0
    %1375 = vmatpush1.msra.mxu0 0.0
    %1376 = vmatprep.subr.mxu0 0.0
    %1377 = vmatpush1.msra.mxu0 0.0
    %1378 = vmatprep.subr.mxu0 0.0
    %1379 = vmatpush1.msra.mxu0 0.0
    %1380 = vmatprep.subr.mxu0 0.0
    %1381 = vmatpush1.msra.mxu0 0.0
    %1382 = vmatprep.subr.mxu0 0.0
    %1383 = vmatpush1.msra.mxu0 0.0
    %1384 = vmatprep.subr.mxu0 0.0
    %1385 = vmatpush1.msra.mxu0 0.0
    %1386 = vmatprep.subr.mxu0 0.0
    %1387 = vmatpush1.msra.mxu0 0.0
    %1388 = vmatprep.subr.mxu0 0.0
    %1389 = vmatpush1.msra.mxu0 0.0
    %1390 = vmatprep.subr.mxu0 0.0
    %1391 = vmatpush1.msra.mxu0 0.0
    %1392 = vmatprep.subr.mxu0 0.0
    %1393 = vmatpush1.msra.mxu0 %v1357
    %1394 = vmatprep.subr.mxu0 0.0
    %1395 = vmatpush2.msra.mxu0 0.0
    %1396 = vmatprep.subr.mxu0 0.0
    %1397 = vmatpush2.msra.mxu0 0.0
    %1398 = vmatprep.subr.mxu0 0.0
    %1399 = vmatpush2.msra.mxu0 0.0
    %1400 = vmatprep.subr.mxu0 0.0
    %1401 = vmatpush2.msra.mxu0 0.0
    %1402 = vmatprep.subr.mxu0 0.0
    %1403 = vmatpush2.msra.mxu0 0.0
    %1404 = vmatprep.subr.mxu0 0.0
    %1405 = vmatpush2.msra.mxu0 0.0
    %1406 = vmatprep.subr.mxu0 0.0
    %1407 = vmatpush2.msra.mxu0 0.0
    %1408 = vmatprep.subr.mxu0 0.0
    %1409 = vmatpush2.msra.mxu0 0.0
    %1410 = vmatprep.subr.mxu0 0.0
    %1411 = vmatpush2.msra.mxu0 0.0
    %1412 = vmatprep.subr.mxu0 0.0
    %1413 = vmatpush2.msra.mxu0 0.0
    %1414 = vmatprep.subr.mxu0 0.0
    %1415 = vmatpush2.msra.mxu0 0.0
    %1416 = vmatprep.subr.mxu0 0.0
    %1417 = vmatpush2.msra.mxu0 0.0
    %1418 = vmatprep.subr.mxu0 0.0
    %1419 = vmatpush2.msra.mxu0 0.0
    %1420 = vmatprep.subr.mxu0 0.0
    %1421 = vmatpush2.msra.mxu0 0.0
    %1422 = vmatprep.subr.mxu0 0.0
    %1423 = vmatpush2.msra.mxu0 0.0
    %1424 = vmatprep.subr.mxu0 0.0
    %1425 = vmatpush2.msra.mxu0 0.0
    %1426 = vmatprep.mubr.f32.mxu0 0.0
    %1427 = vmatmul.mubr.f32.gmra.mxu0 %v1360
    %v1428 = vpop.f32.mrf.mxu0
    %v1429 = vadd.f32 0.0, %v1428
    %v1430 = vpop.f32.mrf.mxu0
    %1431 = vdwg.mxu0
    %1432 = vrot.lane.b32.xlu0 %v212, 104
    %v1433 = vpop.permute.xlu0 %1432
    %1434 = vrot.lane.b32.xlu0 %v297, 104
    %v1435 = vpop.permute.xlu0 %1434
    %v1436 = vsel %vm390, %v1433, 0
    %v1438 = vsel %vm390, %v1435, 0
    %1440 = vmatprep.subr.mxu0 0.0
    %1441 = vmatpush1.xpose.msra.mxu0 0.0
    %1442 = vmatprep.subr.mxu0 0.0
    %1443 = vmatpush1.xpose.msra.mxu0 0.0
    %1444 = vmatprep.subr.mxu0 0.0
    %1445 = vmatpush1.xpose.msra.mxu0 0.0
    %1446 = vmatprep.subr.mxu0 0.0
    %1447 = vmatpush1.xpose.msra.mxu0 0.0
    %1448 = vmatprep.subr.mxu0 0.0
    %1449 = vmatpush1.xpose.msra.mxu0 0.0
    %1450 = vmatprep.subr.mxu0 0.0
    %1451 = vmatpush1.xpose.msra.mxu0 0.0
    %1452 = vmatprep.subr.mxu0 0.0
    %1453 = vmatpush1.xpose.msra.mxu0 0.0
    %1454 = vmatprep.subr.mxu0 0.0
    %1455 = vmatpush1.xpose.msra.mxu0 0.0
    %1456 = vmatprep.subr.mxu0 0.0
    %1457 = vmatpush1.xpose.msra.mxu0 0.0
    %1458 = vmatprep.subr.mxu0 0.0
    %1459 = vmatpush1.xpose.msra.mxu0 0.0
    %1460 = vmatprep.subr.mxu0 0.0
    %1461 = vmatpush1.xpose.msra.mxu0 0.0
    %1462 = vmatprep.subr.mxu0 0.0
    %1463 = vmatpush1.xpose.msra.mxu0 0.0
    %1464 = vmatprep.subr.mxu0 0.0
    %1465 = vmatpush1.xpose.msra.mxu0 0.0
    %1466 = vmatprep.subr.mxu0 0.0
    %1467 = vmatpush1.xpose.msra.mxu0 0.0
    %1468 = vmatprep.subr.mxu0 0.0
    %1469 = vmatpush1.xpose.msra.mxu0 0.0
    %1470 = vmatprep.subr.mxu0 0.0
    %1471 = vmatpush1.xpose.msra.mxu0 %v1438
    %1472 = vmatprep.subr.mxu0 0.0
    %1473 = vmatpush2.xpose.msra.mxu0 0.0
    %1474 = vmatprep.subr.mxu0 0.0
    %1475 = vmatpush2.xpose.msra.mxu0 0.0
    %1476 = vmatprep.subr.mxu0 0.0
    %1477 = vmatpush2.xpose.msra.mxu0 0.0
    %1478 = vmatprep.subr.mxu0 0.0
    %1479 = vmatpush2.xpose.msra.mxu0 0.0
    %1480 = vmatprep.subr.mxu0 0.0
    %1481 = vmatpush2.xpose.msra.mxu0 0.0
    %1482 = vmatprep.subr.mxu0 0.0
    %1483 = vmatpush2.xpose.msra.mxu0 0.0
    %1484 = vmatprep.subr.mxu0 0.0
    %1485 = vmatpush2.xpose.msra.mxu0 0.0
    %1486 = vmatprep.subr.mxu0 0.0
    %1487 = vmatpush2.xpose.msra.mxu0 0.0
    %1488 = vmatprep.subr.mxu0 0.0
    %1489 = vmatpush2.xpose.msra.mxu0 0.0
    %1490 = vmatprep.subr.mxu0 0.0
    %1491 = vmatpush2.xpose.msra.mxu0 0.0
    %1492 = vmatprep.subr.mxu0 0.0
    %1493 = vmatpush2.xpose.msra.mxu0 0.0
    %1494 = vmatprep.subr.mxu0 0.0
    %1495 = vmatpush2.xpose.msra.mxu0 0.0
    %1496 = vmatprep.subr.mxu0 0.0
    %1497 = vmatpush2.xpose.msra.mxu0 0.0
    %1498 = vmatprep.subr.mxu0 0.0
    %1499 = vmatpush2.xpose.msra.mxu0 0.0
    %1500 = vmatprep.subr.mxu0 0.0
    %1501 = vmatpush2.xpose.msra.mxu0 0.0
    %1502 = vmatprep.subr.mxu0 0.0
    %1503 = vmatpush2.xpose.msra.mxu0 0.0
    %1504 = vmatprep.mubr.f32.mxu0 0.0
    %1505 = vmatmul.mubr.f32.gmra.mxu0 %v1436
    %v1506 = vpop.f32.mrf.mxu0
    %v1507 = vadd.f32 0.0, %v1506
    %v1508 = vpop.f32.mrf.mxu0
    %1509 = vdwg.mxu0
    %v1510 = vmul.f32 %v1507, 0.5
    %v1511 = vsel %vm468, %v1510, -inf
    %v1512 = vrot.slane %v1511, 4
    %v1513 = vmax.f32 %v1511, %v1512
    %v1514 = vrot.slane %v1513, 2
    %v1515 = vmax.f32 %v1513, %v1514
    %v1516 = vrot.slane %v1515, 1
    %v1517 = vmax.f32 %v1515, %v1516
    %v1518 = vsub.f32 %v1510, %v1517
    %v1519 = vmul.f32 %v1518, 1.442695
    %v1520 = vpow.pop %v1519
    %v1521 = vsel %vm468, %v1520, 0.0
    %v1522 = vrot.slane %v1521, 4
    %v1523 = vadd.f32 %v1521, %v1522
    %v1524 = vrot.slane %v1523, 2
    %v1525 = vadd.f32 %v1523, %v1524
    %v1526 = vrot.slane %v1525, 1
    %v1527 = vadd.f32 %v1525, %v1526
    %v1528 = vrcp.pop %v1527
    %v1529 = vmul.f32 %v1520, %v1528
    %1530 = vrot.lane.b32.xlu0 %v382, 104
    %v1531 = vpop.permute.xlu0 %1530
    %v1534 = vsel %vm468, %v1529, 0
    %1536 = vmatprep.subr.mxu0 0.0
    %1537 = vmatpush1.msra.mxu0 0.0
    %1538 = vmatprep.subr.mxu0 0.0
    %1539 = vmatpush1.msra.mxu0 0.0
    %1540 = vmatprep.subr.mxu0 0.0
    %1541 = vmatpush1.msra.mxu0 0.0
    %1542 = vmatprep.subr.mxu0 0.0
    %1543 = vmatpush1.msra.mxu0 0.0
    %1544 = vmatprep.subr.mxu0 0.0
    %1545 = vmatpush1.msra.mxu0 0.0
    %1546 = vmatprep.subr.mxu0 0.0
    %1547 = vmatpush1.msra.mxu0 0.0
    %1548 = vmatprep.subr.mxu0 0.0
    %1549 = vmatpush1.msra.mxu0 0.0
    %1550 = vmatprep.subr.mxu0 0.0
    %1551 = vmatpush1.msra.mxu0 0.0
    %1552 = vmatprep.subr.mxu0 0.0
    %1553 = vmatpush1.msra.mxu0 0.0
    %1554 = vmatprep.subr.mxu0 0.0
    %1555 = vmatpush1.msra.mxu0 0.0
    %1556 = vmatprep.subr.mxu0 0.0
    %1557 = vmatpush1.msra.mxu0 0.0
    %1558 = vmatprep.subr.mxu0 0.0
    %1559 = vmatpush1.msra.mxu0 0.0
    %1560 = vmatprep.subr.mxu0 0.0
    %1561 = vmatpush1.msra.mxu0 0.0
    %1562 = vmatprep.subr.mxu0 0.0
    %1563 = vmatpush1.msra.mxu0 0.0
    %1564 = vmatprep.subr.mxu0 0.0
    %1565 = vmatpush1.msra.mxu0 0.0
    %1566 = vmatprep.subr.mxu0 0.0
    %1567 = vmatpush1.msra.mxu0 %v1531
    %1568 = vmatprep.subr.mxu0 0.0
    %1569 = vmatpush2.msra.mxu0 0.0
    %1570 = vmatprep.subr.mxu0 0.0
    %1571 = vmatpush2.msra.mxu0 0.0
    %1572 = vmatprep.subr.mxu0 0.0
    %1573 = vmatpush2.msra.mxu0 0.0
    %1574 = vmatprep.subr.mxu0 0.0
    %1575 = vmatpush2.msra.mxu0 0.0
    %1576 = vmatprep.subr.mxu0 0.0
    %1577 = vmatpush2.msra.mxu0 0.0
    %1578 = vmatprep.subr.mxu0 0.0
    %1579 = vmatpush2.msra.mxu0 0.0
    %1580 = vmatprep.subr.mxu0 0.0
    %1581 = vmatpush2.msra.mxu0 0.0
    %1582 = vmatprep.subr.mxu0 0.0
    %1583 = vmatpush2.msra.mxu0 0.0
    %1584 = vmatprep.subr.mxu0 0.0
    %1585 = vmatpush2.msra.mxu0 0.0
    %1586 = vmatprep.subr.mxu0 0.0
    %1587 = vmatpush2.msra.mxu0 0.0
    %1588 = vmatprep.subr.mxu0 0.0
    %1589 = vmatpush2.msra.mxu0 0.0
    %1590 = vmatprep.subr.mxu0 0.0
    %1591 = vmatpush2.msra.mxu0 0.0
    %1592 = vmatprep.subr.mxu0 0.0
    %1593 = vmatpush2.msra.mxu0 0.0
    %1594 = vmatprep.subr.mxu0 0.0
    %1595 = vmatpush2.msra.mxu0 0.0
    %1596 = vmatprep.subr.mxu0 0.0
    %1597 = vmatpush2.msra.mxu0 0.0
    %1598 = vmatprep.subr.mxu0 0.0
    %1599 = vmatpush2.msra.mxu0 0.0
    %1600 = vmatprep.mubr.f32.mxu0 0.0
    %1601 = vmatmul.mubr.f32.gmra.mxu0 %v1534
    %v1602 = vpop.f32.mrf.mxu0
    %v1603 = vadd.f32 0.0, %v1602
    %v1604 = vpop.f32.mrf.mxu0
    %1605 = vdwg.mxu0
    %1606 = vrot.lane.b32.xlu0 %v212, 100
    %v1607 = vpop.permute.xlu0 %1606
    %1608 = vrot.lane.b32.xlu0 %v297, 100
    %v1609 = vpop.permute.xlu0 %1608
    %v1610 = vsel %vm390, %v1607, 0
    %v1612 = vsel %vm390, %v1609, 0
    %1614 = vmatprep.subr.mxu0 0.0
    %1615 = vmatpush1.xpose.msra.mxu0 0.0
    %1616 = vmatprep.subr.mxu0 0.0
    %1617 = vmatpush1.xpose.msra.mxu0 0.0
    %1618 = vmatprep.subr.mxu0 0.0
    %1619 = vmatpush1.xpose.msra.mxu0 0.0
    %1620 = vmatprep.subr.mxu0 0.0
    %1621 = vmatpush1.xpose.msra.mxu0 0.0
    %1622 = vmatprep.subr.mxu0 0.0
    %1623 = vmatpush1.xpose.msra.mxu0 0.0
    %1624 = vmatprep.subr.mxu0 0.0
    %1625 = vmatpush1.xpose.msra.mxu0 0.0
    %1626 = vmatprep.subr.mxu0 0.0
    %1627 = vmatpush1.xpose.msra.mxu0 0.0
    %1628 = vmatprep.subr.mxu0 0.0
    %1629 = vmatpush1.xpose.msra.mxu0 0.0
    %1630 = vmatprep.subr.mxu0 0.0
    %1631 = vmatpush1.xpose.msra.mxu0 0.0
    %1632 = vmatprep.subr.mxu0 0.0
    %1633 = vmatpush1.xpose.msra.mxu0 0.0
    %1634 = vmatprep.subr.mxu0 0.0
    %1635 = vmatpush1.xpose.msra.mxu0 0.0
    %1636 = vmatprep.subr.mxu0 0.0
    %1637 = vmatpush1.xpose.msra.mxu0 0.0
    %1638 = vmatprep.subr.mxu0 0.0
    %1639 = vmatpush1.xpose.msra.mxu0 0.0
    %1640 = vmatprep.subr.mxu0 0.0
    %1641 = vmatpush1.xpose.msra.mxu0 0.0
    %1642 = vmatprep.subr.mxu0 0.0
    %1643 = vmatpush1.xpose.msra.mxu0 0.0
    %1644 = vmatprep.subr.mxu0 0.0
    %1645 = vmatpush1.xpose.msra.mxu0 %v1612
    %1646 = vmatprep.subr.mxu0 0.0
    %1647 = vmatpush2.xpose.msra.mxu0 0.0
    %1648 = vmatprep.subr.mxu0 0.0
    %1649 = vmatpush2.xpose.msra.mxu0 0.0
    %1650 = vmatprep.subr.mxu0 0.0
    %1651 = vmatpush2.xpose.msra.mxu0 0.0
    %1652 = vmatprep.subr.mxu0 0.0
    %1653 = vmatpush2.xpose.msra.mxu0 0.0
    %1654 = vmatprep.subr.mxu0 0.0
    %1655 = vmatpush2.xpose.msra.mxu0 0.0
    %1656 = vmatprep.subr.mxu0 0.0
    %1657 = vmatpush2.xpose.msra.mxu0 0.0
    %1658 = vmatprep.subr.mxu0 0.0
    %1659 = vmatpush2.xpose.msra.mxu0 0.0
    %1660 = vmatprep.subr.mxu0 0.0
    %1661 = vmatpush2.xpose.msra.mxu0 0.0
    %1662 = vmatprep.subr.mxu0 0.0
    %1663 = vmatpush2.xpose.msra.mxu0 0.0
    %1664 = vmatprep.subr.mxu0 0.0
    %1665 = vmatpush2.xpose.msra.mxu0 0.0
    %1666 = vmatprep.subr.mxu0 0.0
    %1667 = vmatpush2.xpose.msra.mxu0 0.0
    %1668 = vmatprep.subr.mxu0 0.0
    %1669 = vmatpush2.xpose.msra.mxu0 0.0
    %1670 = vmatprep.subr.mxu0 0.0
    %1671 = vmatpush2.xpose.msra.mxu0 0.0
    %1672 = vmatprep.subr.mxu0 0.0
    %1673 = vmatpush2.xpose.msra.mxu0 0.0
    %1674 = vmatprep.subr.mxu0 0.0
    %1675 = vmatpush2.xpose.msra.mxu0 0.0
    %1676 = vmatprep.subr.mxu0 0.0
    %1677 = vmatpush2.xpose.msra.mxu0 0.0
    %1678 = vmatprep.mubr.f32.mxu0 0.0
    %1679 = vmatmul.mubr.f32.gmra.mxu0 %v1610
    %v1680 = vpop.f32.mrf.mxu0
    %v1681 = vadd.f32 0.0, %v1680
    %v1682 = vpop.f32.mrf.mxu0
    %1683 = vdwg.mxu0
    %v1684 = vmul.f32 %v1681, 0.5
    %v1685 = vsel %vm468, %v1684, -inf
    %v1686 = vrot.slane %v1685, 4
    %v1687 = vmax.f32 %v1685, %v1686
    %v1688 = vrot.slane %v1687, 2
    %v1689 = vmax.f32 %v1687, %v1688
    %v1690 = vrot.slane %v1689, 1
    %v1691 = vmax.f32 %v1689, %v1690
    %v1692 = vsub.f32 %v1684, %v1691
    %v1693 = vmul.f32 %v1692, 1.442695
    %v1694 = vpow.pop %v1693
    %v1695 = vsel %vm468, %v1694, 0.0
    %v1696 = vrot.slane %v1695, 4
    %v1697 = vadd.f32 %v1695, %v1696
    %v1698 = vrot.slane %v1697, 2
    %v1699 = vadd.f32 %v1697, %v1698
    %v1700 = vrot.slane %v1699, 1
    %v1701 = vadd.f32 %v1699, %v1700
    %v1702 = vrcp.pop %v1701
    %v1703 = vmul.f32 %v1694, %v1702
    %1704 = vrot.lane.b32.xlu0 %v382, 100
    %v1705 = vpop.permute.xlu0 %1704
    %v1708 = vsel %vm468, %v1703, 0
    %1710 = vmatprep.subr.mxu0 0.0
    %1711 = vmatpush1.msra.mxu0 0.0
    %1712 = vmatprep.subr.mxu0 0.0
    %1713 = vmatpush1.msra.mxu0 0.0
    %1714 = vmatprep.subr.mxu0 0.0
    %1715 = vmatpush1.msra.mxu0 0.0
    %1716 = vmatprep.subr.mxu0 0.0
    %1717 = vmatpush1.msra.mxu0 0.0
    %1718 = vmatprep.subr.mxu0 0.0
    %1719 = vmatpush1.msra.mxu0 0.0
    %1720 = vmatprep.subr.mxu0 0.0
    %1721 = vmatpush1.msra.mxu0 0.0
    %1722 = vmatprep.subr.mxu0 0.0
    %1723 = vmatpush1.msra.mxu0 0.0
    %1724 = vmatprep.subr.mxu0 0.0
    %1725 = vmatpush1.msra.mxu0 0.0
    %1726 = vmatprep.subr.mxu0 0.0
    %1727 = vmatpush1.msra.mxu0 0.0
    %1728 = vmatprep.subr.mxu0 0.0
    %1729 = vmatpush1.msra.mxu0 0.0
    %1730 = vmatprep.subr.mxu0 0.0
    %1731 = vmatpush1.msra.mxu0 0.0
    %1732 = vmatprep.subr.mxu0 0.0
    %1733 = vmatpush1.msra.mxu0 0.0
    %1734 = vmatprep.subr.mxu0 0.0
    %1735 = vmatpush1.msra.mxu0 0.0
    %1736 = vmatprep.subr.mxu0 0.0
    %1737 = vmatpush1.msra.mxu0 0.0
    %1738 = vmatprep.subr.mxu0 0.0
    %1739 = vmatpush1.msra.mxu0 0.0
    %1740 = vmatprep.subr.mxu0 0.0
    %1741 = vmatpush1.msra.mxu0 %v1705
    %1742 = vmatprep.subr.mxu0 0.0
    %1743 = vmatpush2.msra.mxu0 0.0
    %1744 = vmatprep.subr.mxu0 0.0
    %1745 = vmatpush2.msra.mxu0 0.0
    %1746 = vmatprep.subr.mxu0 0.0
    %1747 = vmatpush2.msra.mxu0 0.0
    %1748 = vmatprep.subr.mxu0 0.0
    %1749 = vmatpush2.msra.mxu0 0.0
    %1750 = vmatprep.subr.mxu0 0.0
    %1751 = vmatpush2.msra.mxu0 0.0
    %1752 = vmatprep.subr.mxu0 0.0
    %1753 = vmatpush2.msra.mxu0 0.0
    %1754 = vmatprep.subr.mxu0 0.0
    %1755 = vmatpush2.msra.mxu0 0.0
    %1756 = vmatprep.subr.mxu0 0.0
    %1757 = vmatpush2.msra.mxu0 0.0
    %1758 = vmatprep.subr.mxu0 0.0
    %1759 = vmatpush2.msra.mxu0 0.0
    %1760 = vmatprep.subr.mxu0 0.0
    %1761 = vmatpush2.msra.mxu0 0.0
    %1762 = vmatprep.subr.mxu0 0.0
    %1763 = vmatpush2.msra.mxu0 0.0
    %1764 = vmatprep.subr.mxu0 0.0
    %1765 = vmatpush2.msra.mxu0 0.0
    %1766 = vmatprep.subr.mxu0 0.0
    %1767 = vmatpush2.msra.mxu0 0.0
    %1768 = vmatprep.subr.mxu0 0.0
    %1769 = vmatpush2.msra.mxu0 0.0
    %1770 = vmatprep.subr.mxu0 0.0
    %1771 = vmatpush2.msra.mxu0 0.0
    %1772 = vmatprep.subr.mxu0 0.0
    %1773 = vmatpush2.msra.mxu0 0.0
    %1774 = vmatprep.mubr.f32.mxu0 0.0
    %1775 = vmatmul.mubr.f32.gmra.mxu0 %v1708
    %v1776 = vpop.f32.mrf.mxu0
    %v1777 = vadd.f32 0.0, %v1776
    %v1778 = vpop.f32.mrf.mxu0
    %1779 = vdwg.mxu0
    %1781 = vrot.lane.b32.xlu0 %v733, 4
    %v1782 = vpop.permute.xlu0 %1781
    %1785 = vrot.lane.b32.xlu0 %v907, 8
    %v1786 = vpop.permute.xlu0 %1785
    %1789 = vrot.lane.b32.xlu0 %v1081, 12
    %v1790 = vpop.permute.xlu0 %1789
    %1793 = vrot.lane.b32.xlu0 %v1255, 16
    %v1794 = vpop.permute.xlu0 %1793
    %1797 = vrot.lane.b32.xlu0 %v1429, 20
    %v1798 = vpop.permute.xlu0 %1797
    %1801 = vrot.lane.b32.xlu0 %v1603, 24
    %v1802 = vpop.permute.xlu0 %1801
    %1805 = vrot.lane.b32.xlu0 %v1777, 28
    %v1806 = vpop.permute.xlu0 %1805
    %v1808 = vsel %vm390, %v558, %v1782
    %v1809 = vsel %vm468, %v1808, %v1786
    %vm1810 = vcmask 97280
    %v1811 = vsel %vm1810, %v1809, %v1790
    %vm1812 = vcmask 130048
    %v1813 = vsel %vm1812, %v1811, %v1794
    %vm1814 = vcmask 162816
    %v1815 = vsel %vm1814, %v1813, %v1798
    %vm1816 = vcmask 195584
    %v1817 = vsel %vm1816, %v1815, %v1802
    %vm1818 = vcmask 228352
    %v1819 = vsel %vm1818, %v1817, %v1806
    %v1821 = vsel %vm390, %v217, 0
    %v1824 = vsel %vm390, %v302, 0
    %1826 = vmatprep.subr.mxu0 0.0
    %1827 = vmatpush1.xpose.msra.mxu0 0.0
    %1828 = vmatprep.subr.mxu0 0.0
    %1829 = vmatpush1.xpose.msra.mxu0 0.0
    %1830 = vmatprep.subr.mxu0 0.0
    %1831 = vmatpush1.xpose.msra.mxu0 0.0
    %1832 = vmatprep.subr.mxu0 0.0
    %1833 = vmatpush1.xpose.msra.mxu0 0.0
    %1834 = vmatprep.subr.mxu0 0.0
    %1835 = vmatpush1.xpose.msra.mxu0 0.0
    %1836 = vmatprep.subr.mxu0 0.0
    %1837 = vmatpush1.xpose.msra.mxu0 0.0
    %1838 = vmatprep.subr.mxu0 0.0
    %1839 = vmatpush1.xpose.msra.mxu0 0.0
    %1840 = vmatprep.subr.mxu0 0.0
    %1841 = vmatpush1.xpose.msra.mxu0 0.0
    %1842 = vmatprep.subr.mxu0 0.0
    %1843 = vmatpush1.xpose.msra.mxu0 0.0
    %1844 = vmatprep.subr.mxu0 0.0
    %1845 = vmatpush1.xpose.msra.mxu0 0.0
    %1846 = vmatprep.subr.mxu0 0.0
    %1847 = vmatpush1.xpose.msra.mxu0 0.0
    %1848 = vmatprep.subr.mxu0 0.0
    %1849 = vmatpush1.xpose.msra.mxu0 0.0
    %1850 = vmatprep.subr.mxu0 0.0
    %1851 = vmatpush1.xpose.msra.mxu0 0.0
    %1852 = vmatprep.subr.mxu0 0.0
    %1853 = vmatpush1.xpose.msra.mxu0 0.0
    %1854 = vmatprep.subr.mxu0 0.0
    %1855 = vmatpush1.xpose.msra.mxu0 0.0
    %1856 = vmatprep.subr.mxu0 0.0
    %1857 = vmatpush1.xpose.msra.mxu0 %v1824
    %1858 = vmatprep.subr.mxu0 0.0
    %1859 = vmatpush2.xpose.msra.mxu0 0.0
    %1860 = vmatprep.subr.mxu0 0.0
    %1861 = vmatpush2.xpose.msra.mxu0 0.0
    %1862 = vmatprep.subr.mxu0 0.0
    %1863 = vmatpush2.xpose.msra.mxu0 0.0
    %1864 = vmatprep.subr.mxu0 0.0
    %1865 = vmatpush2.xpose.msra.mxu0 0.0
    %1866 = vmatprep.subr.mxu0 0.0
    %1867 = vmatpush2.xpose.msra.mxu0 0.0
    %1868 = vmatprep.subr.mxu0 0.0
    %1869 = vmatpush2.xpose.msra.mxu0 0.0
    %1870 = vmatprep.subr.mxu0 0.0
    %1871 = vmatpush2.xpose.msra.mxu0 0.0
    %1872 = vmatprep.subr.mxu0 0.0
    %1873 = vmatpush2.xpose.msra.mxu0 0.0
    %1874 = vmatprep.subr.mxu0 0.0
    %1875 = vmatpush2.xpose.msra.mxu0 0.0
    %1876 = vmatprep.subr.mxu0 0.0
    %1877 = vmatpush2.xpose.msra.mxu0 0.0
    %1878 = vmatprep.subr.mxu0 0.0
    %1879 = vmatpush2.xpose.msra.mxu0 0.0
    %1880 = vmatprep.subr.mxu0 0.0
    %1881 = vmatpush2.xpose.msra.mxu0 0.0
    %1882 = vmatprep.subr.mxu0 0.0
    %1883 = vmatpush2.xpose.msra.mxu0 0.0
    %1884 = vmatprep.subr.mxu0 0.0
    %1885 = vmatpush2.xpose.msra.mxu0 0.0
    %1886 = vmatprep.subr.mxu0 0.0
    %1887 = vmatpush2.xpose.msra.mxu0 0.0
    %1888 = vmatprep.subr.mxu0 0.0
    %1889 = vmatpush2.xpose.msra.mxu0 0.0
    %1890 = vmatprep.mubr.f32.mxu0 0.0
    %1891 = vmatmul.mubr.f32.gmra.mxu0 %v1821
    %v1892 = vpop.f32.mrf.mxu0
    %v1893 = vadd.f32 0.0, %v1892
    %v1894 = vpop.f32.mrf.mxu0
    %1895 = vdwg.mxu0
    %v1896 = vmul.f32 %v1893, 0.5
    %v1897 = vsel %vm468, %v1896, -inf
    %v1898 = vrot.slane %v1897, 4
    %v1899 = vmax.f32 %v1897, %v1898
    %v1900 = vrot.slane %v1899, 2
    %v1901 = vmax.f32 %v1899, %v1900
    %v1902 = vrot.slane %v1901, 1
    %v1903 = vmax.f32 %v1901, %v1902
    %v1904 = vsub.f32 %v1896, %v1903
    %v1905 = vmul.f32 %v1904, 1.442695
    %v1906 = vpow.pop %v1905
    %v1907 = vsel %vm468, %v1906, 0.0
    %v1908 = vrot.slane %v1907, 4
    %v1909 = vadd.f32 %v1907, %v1908
    %v1910 = vrot.slane %v1909, 2
    %v1911 = vadd.f32 %v1909, %v1910
    %v1912 = vrot.slane %v1911, 1
    %v1913 = vadd.f32 %v1911, %v1912
    %v1914 = vrcp.pop %v1913
    %v1915 = vmul.f32 %v1906, %v1914
    %v1917 = vsel %vm468, %v1915, 0
    %1919 = vmatprep.subr.mxu0 0.0
    %1920 = vmatpush1.msra.mxu0 0.0
    %1921 = vmatprep.subr.mxu0 0.0
    %1922 = vmatpush1.msra.mxu0 0.0
    %1923 = vmatprep.subr.mxu0 0.0
    %1924 = vmatpush1.msra.mxu0 0.0
    %1925 = vmatprep.subr.mxu0 0.0
    %1926 = vmatpush1.msra.mxu0 0.0
    %1927 = vmatprep.subr.mxu0 0.0
    %1928 = vmatpush1.msra.mxu0 0.0
    %1929 = vmatprep.subr.mxu0 0.0
    %1930 = vmatpush1.msra.mxu0 0.0
    %1931 = vmatprep.subr.mxu0 0.0
    %1932 = vmatpush1.msra.mxu0 0.0
    %1933 = vmatprep.subr.mxu0 0.0
    %1934 = vmatpush1.msra.mxu0 0.0
    %1935 = vmatprep.subr.mxu0 0.0
    %1936 = vmatpush1.msra.mxu0 0.0
    %1937 = vmatprep.subr.mxu0 0.0
    %1938 = vmatpush1.msra.mxu0 0.0
    %1939 = vmatprep.subr.mxu0 0.0
    %1940 = vmatpush1.msra.mxu0 0.0
    %1941 = vmatprep.subr.mxu0 0.0
    %1942 = vmatpush1.msra.mxu0 0.0
    %1943 = vmatprep.subr.mxu0 0.0
    %1944 = vmatpush1.msra.mxu0 0.0
    %1945 = vmatprep.subr.mxu0 0.0
    %1946 = vmatpush1.msra.mxu0 0.0
    %1947 = vmatprep.subr.mxu0 0.0
    %1948 = vmatpush1.msra.mxu0 0.0
    %1949 = vmatprep.subr.mxu0 0.0
    %1950 = vmatpush1.msra.mxu0 %v387
    %1951 = vmatprep.subr.mxu0 0.0
    %1952 = vmatpush2.msra.mxu0 0.0
    %1953 = vmatprep.subr.mxu0 0.0
    %1954 = vmatpush2.msra.mxu0 0.0
    %1955 = vmatprep.subr.mxu0 0.0
    %1956 = vmatpush2.msra.mxu0 0.0
    %1957 = vmatprep.subr.mxu0 0.0
    %1958 = vmatpush2.msra.mxu0 0.0
    %1959 = vmatprep.subr.mxu0 0.0
    %1960 = vmatpush2.msra.mxu0 0.0
    %1961 = vmatprep.subr.mxu0 0.0
    %1962 = vmatpush2.msra.mxu0 0.0
    %1963 = vmatprep.subr.mxu0 0.0
    %1964 = vmatpush2.msra.mxu0 0.0
    %1965 = vmatprep.subr.mxu0 0.0
    %1966 = vmatpush2.msra.mxu0 0.0
    %1967 = vmatprep.subr.mxu0 0.0
    %1968 = vmatpush2.msra.mxu0 0.0
    %1969 = vmatprep.subr.mxu0 0.0
    %1970 = vmatpush2.msra.mxu0 0.0
    %1971 = vmatprep.subr.mxu0 0.0
    %1972 = vmatpush2.msra.mxu0 0.0
    %1973 = vmatprep.subr.mxu0 0.0
    %1974 = vmatpush2.msra.mxu0 0.0
    %1975 = vmatprep.subr.mxu0 0.0
    %1976 = vmatpush2.msra.mxu0 0.0
    %1977 = vmatprep.subr.mxu0 0.0
    %1978 = vmatpush2.msra.mxu0 0.0
    %1979 = vmatprep.subr.mxu0 0.0
    %1980 = vmatpush2.msra.mxu0 0.0
    %1981 = vmatprep.subr.mxu0 0.0
    %1982 = vmatpush2.msra.mxu0 0.0
    %1983 = vmatprep.mubr.f32.mxu0 0.0
    %1984 = vmatmul.mubr.f32.gmra.mxu0 %v1917
    %v1985 = vpop.f32.mrf.mxu0
    %v1986 = vadd.f32 0.0, %v1985
    %v1987 = vpop.f32.mrf.mxu0
    %1988 = vdwg.mxu0
    %1989 = vrot.lane.b32.xlu0 %v217, 124
    %v1990 = vpop.permute.xlu0 %1989
    %1991 = vrot.lane.b32.xlu0 %v302, 124
    %v1992 = vpop.permute.xlu0 %1991
    %v1993 = vsel %vm390, %v1990, 0
    %v1995 = vsel %vm390, %v1992, 0
    %1997 = vmatprep.subr.mxu0 0.0
    %1998 = vmatpush1.xpose.msra.mxu0 0.0
    %1999 = vmatprep.subr.mxu0 0.0
    %2000 = vmatpush1.xpose.msra.mxu0 0.0
    %2001 = vmatprep.subr.mxu0 0.0
    %2002 = vmatpush1.xpose.msra.mxu0 0.0
    %2003 = vmatprep.subr.mxu0 0.0
    %2004 = vmatpush1.xpose.msra.mxu0 0.0
    %2005 = vmatprep.subr.mxu0 0.0
    %2006 = vmatpush1.xpose.msra.mxu0 0.0
    %2007 = vmatprep.subr.mxu0 0.0
    %2008 = vmatpush1.xpose.msra.mxu0 0.0
    %2009 = vmatprep.subr.mxu0 0.0
    %2010 = vmatpush1.xpose.msra.mxu0 0.0
    %2011 = vmatprep.subr.mxu0 0.0
    %2012 = vmatpush1.xpose.msra.mxu0 0.0
    %2013 = vmatprep.subr.mxu0 0.0
    %2014 = vmatpush1.xpose.msra.mxu0 0.0
    %2015 = vmatprep.subr.mxu0 0.0
    %2016 = vmatpush1.xpose.msra.mxu0 0.0
    %2017 = vmatprep.subr.mxu0 0.0
    %2018 = vmatpush1.xpose.msra.mxu0 0.0
    %2019 = vmatprep.subr.mxu0 0.0
    %2020 = vmatpush1.xpose.msra.mxu0 0.0
    %2021 = vmatprep.subr.mxu0 0.0
    %2022 = vmatpush1.xpose.msra.mxu0 0.0
    %2023 = vmatprep.subr.mxu0 0.0
    %2024 = vmatpush1.xpose.msra.mxu0 0.0
    %2025 = vmatprep.subr.mxu0 0.0
    %2026 = vmatpush1.xpose.msra.mxu0 0.0
    %2027 = vmatprep.subr.mxu0 0.0
    %2028 = vmatpush1.xpose.msra.mxu0 %v1995
    %2029 = vmatprep.subr.mxu0 0.0
    %2030 = vmatpush2.xpose.msra.mxu0 0.0
    %2031 = vmatprep.subr.mxu0 0.0
    %2032 = vmatpush2.xpose.msra.mxu0 0.0
    %2033 = vmatprep.subr.mxu0 0.0
    %2034 = vmatpush2.xpose.msra.mxu0 0.0
    %2035 = vmatprep.subr.mxu0 0.0
    %2036 = vmatpush2.xpose.msra.mxu0 0.0
    %2037 = vmatprep.subr.mxu0 0.0
    %2038 = vmatpush2.xpose.msra.mxu0 0.0
    %2039 = vmatprep.subr.mxu0 0.0
    %2040 = vmatpush2.xpose.msra.mxu0 0.0
    %2041 = vmatprep.subr.mxu0 0.0
    %2042 = vmatpush2.xpose.msra.mxu0 0.0
    %2043 = vmatprep.subr.mxu0 0.0
    %2044 = vmatpush2.xpose.msra.mxu0 0.0
    %2045 = vmatprep.subr.mxu0 0.0
    %2046 = vmatpush2.xpose.msra.mxu0 0.0
    %2047 = vmatprep.subr.mxu0 0.0
    %2048 = vmatpush2.xpose.msra.mxu0 0.0
    %2049 = vmatprep.subr.mxu0 0.0
    %2050 = vmatpush2.xpose.msra.mxu0 0.0
    %2051 = vmatprep.subr.mxu0 0.0
    %2052 = vmatpush2.xpose.msra.mxu0 0.0
    %2053 = vmatprep.subr.mxu0 0.0
    %2054 = vmatpush2.xpose.msra.mxu0 0.0
    %2055 = vmatprep.subr.mxu0 0.0
    %2056 = vmatpush2.xpose.msra.mxu0 0.0
    %2057 = vmatprep.subr.mxu0 0.0
    %2058 = vmatpush2.xpose.msra.mxu0 0.0
    %2059 = vmatprep.subr.mxu0 0.0
    %2060 = vmatpush2.xpose.msra.mxu0 0.0
    %2061 = vmatprep.mubr.f32.mxu0 0.0
    %2062 = vmatmul.mubr.f32.gmra.mxu0 %v1993
    %v2063 = vpop.f32.mrf.mxu0
    %v2064 = vadd.f32 0.0, %v2063
    %v2065 = vpop.f32.mrf.mxu0
    %2066 = vdwg.mxu0
    %v2067 = vmul.f32 %v2064, 0.5
    %v2068 = vsel %vm468, %v2067, -inf
    %v2069 = vrot.slane %v2068, 4
    %v2070 = vmax.f32 %v2068, %v2069
    %v2071 = vrot.slane %v2070, 2
    %v2072 = vmax.f32 %v2070, %v2071
    %v2073 = vrot.slane %v2072, 1
    %v2074 = vmax.f32 %v2072, %v2073
    %v2075 = vsub.f32 %v2067, %v2074
    %v2076 = vmul.f32 %v2075, 1.442695
    %v2077 = vpow.pop %v2076
    %v2078 = vsel %vm468, %v2077, 0.0
    %v2079 = vrot.slane %v2078, 4
    %v2080 = vadd.f32 %v2078, %v2079
    %v2081 = vrot.slane %v2080, 2
    %v2082 = vadd.f32 %v2080, %v2081
    %v2083 = vrot.slane %v2082, 1
    %v2084 = vadd.f32 %v2082, %v2083
    %v2085 = vrcp.pop %v2084
    %v2086 = vmul.f32 %v2077, %v2085
    %2088 = vrot.lane.b32.xlu0 %v387, 124
    %v2089 = vpop.permute.xlu0 %2088
    %v2092 = vsel %vm468, %v2086, 0
    %2094 = vmatprep.subr.mxu0 0.0
    %2095 = vmatpush1.msra.mxu0 0.0
    %2096 = vmatprep.subr.mxu0 0.0
    %2097 = vmatpush1.msra.mxu0 0.0
    %2098 = vmatprep.subr.mxu0 0.0
    %2099 = vmatpush1.msra.mxu0 0.0
    %2100 = vmatprep.subr.mxu0 0.0
    %2101 = vmatpush1.msra.mxu0 0.0
    %2102 = vmatprep.subr.mxu0 0.0
    %2103 = vmatpush1.msra.mxu0 0.0
    %2104 = vmatprep.subr.mxu0 0.0
    %2105 = vmatpush1.msra.mxu0 0.0
    %2106 = vmatprep.subr.mxu0 0.0
    %2107 = vmatpush1.msra.mxu0 0.0
    %2108 = vmatprep.subr.mxu0 0.0
    %2109 = vmatpush1.msra.mxu0 0.0
    %2110 = vmatprep.subr.mxu0 0.0
    %2111 = vmatpush1.msra.mxu0 0.0
    %2112 = vmatprep.subr.mxu0 0.0
    %2113 = vmatpush1.msra.mxu0 0.0
    %2114 = vmatprep.subr.mxu0 0.0
    %2115 = vmatpush1.msra.mxu0 0.0
    %2116 = vmatprep.subr.mxu0 0.0
    %2117 = vmatpush1.msra.mxu0 0.0
    %2118 = vmatprep.subr.mxu0 0.0
    %2119 = vmatpush1.msra.mxu0 0.0
    %2120 = vmatprep.subr.mxu0 0.0
    %2121 = vmatpush1.msra.mxu0 0.0
    %2122 = vmatprep.subr.mxu0 0.0
    %2123 = vmatpush1.msra.mxu0 0.0
    %2124 = vmatprep.subr.mxu0 0.0
    %2125 = vmatpush1.msra.mxu0 %v2089
    %2126 = vmatprep.subr.mxu0 0.0
    %2127 = vmatpush2.msra.mxu0 0.0
    %2128 = vmatprep.subr.mxu0 0.0
    %2129 = vmatpush2.msra.mxu0 0.0
    %2130 = vmatprep.subr.mxu0 0.0
    %2131 = vmatpush2.msra.mxu0 0.0
    %2132 = vmatprep.subr.mxu0 0.0
    %2133 = vmatpush2.msra.mxu0 0.0
    %2134 = vmatprep.subr.mxu0 0.0
    %2135 = vmatpush2.msra.mxu0 0.0
    %2136 = vmatprep.subr.mxu0 0.0
    %2137 = vmatpush2.msra.mxu0 0.0
    %2138 = vmatprep.subr.mxu0 0.0
    %2139 = vmatpush2.msra.mxu0 0.0
    %2140 = vmatprep.subr.mxu0 0.0
    %2141 = vmatpush2.msra.mxu0 0.0
    %2142 = vmatprep.subr.mxu0 0.0
    %2143 = vmatpush2.msra.mxu0 0.0
    %2144 = vmatprep.subr.mxu0 0.0
    %2145 = vmatpush2.msra.mxu0 0.0
    %2146 = vmatprep.subr.mxu0 0.0
    %2147 = vmatpush2.msra.mxu0 0.0
    %2148 = vmatprep.subr.mxu0 0.0
    %2149 = vmatpush2.msra.mxu0 0.0
    %2150 = vmatprep.subr.mxu0 0.0
    %2151 = vmatpush2.msra.mxu0 0.0
    %2152 = vmatprep.subr.mxu0 0.0
    %2153 = vmatpush2.msra.mxu0 0.0
    %2154 = vmatprep.subr.mxu0 0.0
    %2155 = vmatpush2.msra.mxu0 0.0
    %2156 = vmatprep.subr.mxu0 0.0
    %2157 = vmatpush2.msra.mxu0 0.0
    %2158 = vmatprep.mubr.f32.mxu0 0.0
    %2159 = vmatmul.mubr.f32.gmra.mxu0 %v2092
    %v2160 = vpop.f32.mrf.mxu0
    %v2161 = vadd.f32 0.0, %v2160
    %v2162 = vpop.f32.mrf.mxu0
    %2163 = vdwg.mxu0
    %2164 = vrot.lane.b32.xlu0 %v217, 120
    %v2165 = vpop.permute.xlu0 %2164
    %2166 = vrot.lane.b32.xlu0 %v302, 120
    %v2167 = vpop.permute.xlu0 %2166
    %v2168 = vsel %vm390, %v2165, 0
    %v2170 = vsel %vm390, %v2167, 0
    %2172 = vmatprep.subr.mxu0 0.0
    %2173 = vmatpush1.xpose.msra.mxu0 0.0
    %2174 = vmatprep.subr.mxu0 0.0
    %2175 = vmatpush1.xpose.msra.mxu0 0.0
    %2176 = vmatprep.subr.mxu0 0.0
    %2177 = vmatpush1.xpose.msra.mxu0 0.0
    %2178 = vmatprep.subr.mxu0 0.0
    %2179 = vmatpush1.xpose.msra.mxu0 0.0
    %2180 = vmatprep.subr.mxu0 0.0
    %2181 = vmatpush1.xpose.msra.mxu0 0.0
    %2182 = vmatprep.subr.mxu0 0.0
    %2183 = vmatpush1.xpose.msra.mxu0 0.0
    %2184 = vmatprep.subr.mxu0 0.0
    %2185 = vmatpush1.xpose.msra.mxu0 0.0
    %2186 = vmatprep.subr.mxu0 0.0
    %2187 = vmatpush1.xpose.msra.mxu0 0.0
    %2188 = vmatprep.subr.mxu0 0.0
    %2189 = vmatpush1.xpose.msra.mxu0 0.0
    %2190 = vmatprep.subr.mxu0 0.0
    %2191 = vmatpush1.xpose.msra.mxu0 0.0
    %2192 = vmatprep.subr.mxu0 0.0
    %2193 = vmatpush1.xpose.msra.mxu0 0.0
    %2194 = vmatprep.subr.mxu0 0.0
    %2195 = vmatpush1.xpose.msra.mxu0 0.0
    %2196 = vmatprep.subr.mxu0 0.0
    %2197 = vmatpush1.xpose.msra.mxu0 0.0
    %2198 = vmatprep.subr.mxu0 0.0
    %2199 = vmatpush1.xpose.msra.mxu0 0.0
    %2200 = vmatprep.subr.mxu0 0.0
    %2201 = vmatpush1.xpose.msra.mxu0 0.0
    %2202 = vmatprep.subr.mxu0 0.0
    %2203 = vmatpush1.xpose.msra.mxu0 %v2170
    %2204 = vmatprep.subr.mxu0 0.0
    %2205 = vmatpush2.xpose.msra.mxu0 0.0
    %2206 = vmatprep.subr.mxu0 0.0
    %2207 = vmatpush2.xpose.msra.mxu0 0.0
    %2208 = vmatprep.subr.mxu0 0.0
    %2209 = vmatpush2.xpose.msra.mxu0 0.0
    %2210 = vmatprep.subr.mxu0 0.0
    %2211 = vmatpush2.xpose.msra.mxu0 0.0
    %2212 = vmatprep.subr.mxu0 0.0
    %2213 = vmatpush2.xpose.msra.mxu0 0.0
    %2214 = vmatprep.subr.mxu0 0.0
    %2215 = vmatpush2.xpose.msra.mxu0 0.0
    %2216 = vmatprep.subr.mxu0 0.0
    %2217 = vmatpush2.xpose.msra.mxu0 0.0
    %2218 = vmatprep.subr.mxu0 0.0
    %2219 = vmatpush2.xpose.msra.mxu0 0.0
    %2220 = vmatprep.subr.mxu0 0.0
    %2221 = vmatpush2.xpose.msra.mxu0 0.0
    %2222 = vmatprep.subr.mxu0 0.0
    %2223 = vmatpush2.xpose.msra.mxu0 0.0
    %2224 = vmatprep.subr.mxu0 0.0
    %2225 = vmatpush2.xpose.msra.mxu0 0.0
    %2226 = vmatprep.subr.mxu0 0.0
    %2227 = vmatpush2.xpose.msra.mxu0 0.0
    %2228 = vmatprep.subr.mxu0 0.0
    %2229 = vmatpush2.xpose.msra.mxu0 0.0
    %2230 = vmatprep.subr.mxu0 0.0
    %2231 = vmatpush2.xpose.msra.mxu0 0.0
    %2232 = vmatprep.subr.mxu0 0.0
    %2233 = vmatpush2.xpose.msra.mxu0 0.0
    %2234 = vmatprep.subr.mxu0 0.0
    %2235 = vmatpush2.xpose.msra.mxu0 0.0
    %2236 = vmatprep.mubr.f32.mxu0 0.0
    %2237 = vmatmul.mubr.f32.gmra.mxu0 %v2168
    %v2238 = vpop.f32.mrf.mxu0
    %v2239 = vadd.f32 0.0, %v2238
    %v2240 = vpop.f32.mrf.mxu0
    %2241 = vdwg.mxu0
    %v2242 = vmul.f32 %v2239, 0.5
    %v2243 = vsel %vm468, %v2242, -inf
    %v2244 = vrot.slane %v2243, 4
    %v2245 = vmax.f32 %v2243, %v2244
    %v2246 = vrot.slane %v2245, 2
    %v2247 = vmax.f32 %v2245, %v2246
    %v2248 = vrot.slane %v2247, 1
    %v2249 = vmax.f32 %v2247, %v2248
    %v2250 = vsub.f32 %v2242, %v2249
    %v2251 = vmul.f32 %v2250, 1.442695
    %v2252 = vpow.pop %v2251
    %v2253 = vsel %vm468, %v2252, 0.0
    %v2254 = vrot.slane %v2253, 4
    %v2255 = vadd.f32 %v2253, %v2254
    %v2256 = vrot.slane %v2255, 2
    %v2257 = vadd.f32 %v2255, %v2256
    %v2258 = vrot.slane %v2257, 1
    %v2259 = vadd.f32 %v2257, %v2258
    %v2260 = vrcp.pop %v2259
    %v2261 = vmul.f32 %v2252, %v2260
    %2262 = vrot.lane.b32.xlu0 %v387, 120
    %v2263 = vpop.permute.xlu0 %2262
    %v2266 = vsel %vm468, %v2261, 0
    %2268 = vmatprep.subr.mxu0 0.0
    %2269 = vmatpush1.msra.mxu0 0.0
    %2270 = vmatprep.subr.mxu0 0.0
    %2271 = vmatpush1.msra.mxu0 0.0
    %2272 = vmatprep.subr.mxu0 0.0
    %2273 = vmatpush1.msra.mxu0 0.0
    %2274 = vmatprep.subr.mxu0 0.0
    %2275 = vmatpush1.msra.mxu0 0.0
    %2276 = vmatprep.subr.mxu0 0.0
    %2277 = vmatpush1.msra.mxu0 0.0
    %2278 = vmatprep.subr.mxu0 0.0
    %2279 = vmatpush1.msra.mxu0 0.0
    %2280 = vmatprep.subr.mxu0 0.0
    %2281 = vmatpush1.msra.mxu0 0.0
    %2282 = vmatprep.subr.mxu0 0.0
    %2283 = vmatpush1.msra.mxu0 0.0
    %2284 = vmatprep.subr.mxu0 0.0
    %2285 = vmatpush1.msra.mxu0 0.0
    %2286 = vmatprep.subr.mxu0 0.0
    %2287 = vmatpush1.msra.mxu0 0.0
    %2288 = vmatprep.subr.mxu0 0.0
    %2289 = vmatpush1.msra.mxu0 0.0
    %2290 = vmatprep.subr.mxu0 0.0
    %2291 = vmatpush1.msra.mxu0 0.0
    %2292 = vmatprep.subr.mxu0 0.0
    %2293 = vmatpush1.msra.mxu0 0.0
    %2294 = vmatprep.subr.mxu0 0.0
    %2295 = vmatpush1.msra.mxu0 0.0
    %2296 = vmatprep.subr.mxu0 0.0
    %2297 = vmatpush1.msra.mxu0 0.0
    %2298 = vmatprep.subr.mxu0 0.0
    %2299 = vmatpush1.msra.mxu0 %v2263
    %2300 = vmatprep.subr.mxu0 0.0
    %2301 = vmatpush2.msra.mxu0 0.0
    %2302 = vmatprep.subr.mxu0 0.0
    %2303 = vmatpush2.msra.mxu0 0.0
    %2304 = vmatprep.subr.mxu0 0.0
    %2305 = vmatpush2.msra.mxu0 0.0
    %2306 = vmatprep.subr.mxu0 0.0
    %2307 = vmatpush2.msra.mxu0 0.0
    %2308 = vmatprep.subr.mxu0 0.0
    %2309 = vmatpush2.msra.mxu0 0.0
    %2310 = vmatprep.subr.mxu0 0.0
    %2311 = vmatpush2.msra.mxu0 0.0
    %2312 = vmatprep.subr.mxu0 0.0
    %2313 = vmatpush2.msra.mxu0 0.0
    %2314 = vmatprep.subr.mxu0 0.0
    %2315 = vmatpush2.msra.mxu0 0.0
    %2316 = vmatprep.subr.mxu0 0.0
    %2317 = vmatpush2.msra.mxu0 0.0
    %2318 = vmatprep.subr.mxu0 0.0
    %2319 = vmatpush2.msra.mxu0 0.0
    %2320 = vmatprep.subr.mxu0 0.0
    %2321 = vmatpush2.msra.mxu0 0.0
    %2322 = vmatprep.subr.mxu0 0.0
    %2323 = vmatpush2.msra.mxu0 0.0
    %2324 = vmatprep.subr.mxu0 0.0
    %2325 = vmatpush2.msra.mxu0 0.0
    %2326 = vmatprep.subr.mxu0 0.0
    %2327 = vmatpush2.msra.mxu0 0.0
    %2328 = vmatprep.subr.mxu0 0.0
    %2329 = vmatpush2.msra.mxu0 0.0
    %2330 = vmatprep.subr.mxu0 0.0
    %2331 = vmatpush2.msra.mxu0 0.0
    %2332 = vmatprep.mubr.f32.mxu0 0.0
    %2333 = vmatmul.mubr.f32.gmra.mxu0 %v2266
    %v2334 = vpop.f32.mrf.mxu0
    %v2335 = vadd.f32 0.0, %v2334
    %v2336 = vpop.f32.mrf.mxu0
    %2337 = vdwg.mxu0
    %2338 = vrot.lane.b32.xlu0 %v217, 116
    %v2339 = vpop.permute.xlu0 %2338
    %2340 = vrot.lane.b32.xlu0 %v302, 116
    %v2341 = vpop.permute.xlu0 %2340
    %v2342 = vsel %vm390, %v2339, 0
    %v2344 = vsel %vm390, %v2341, 0
    %2346 = vmatprep.subr.mxu0 0.0
    %2347 = vmatpush1.xpose.msra.mxu0 0.0
    %2348 = vmatprep.subr.mxu0 0.0
    %2349 = vmatpush1.xpose.msra.mxu0 0.0
    %2350 = vmatprep.subr.mxu0 0.0
    %2351 = vmatpush1.xpose.msra.mxu0 0.0
    %2352 = vmatprep.subr.mxu0 0.0
    %2353 = vmatpush1.xpose.msra.mxu0 0.0
    %2354 = vmatprep.subr.mxu0 0.0
    %2355 = vmatpush1.xpose.msra.mxu0 0.0
    %2356 = vmatprep.subr.mxu0 0.0
    %2357 = vmatpush1.xpose.msra.mxu0 0.0
    %2358 = vmatprep.subr.mxu0 0.0
    %2359 = vmatpush1.xpose.msra.mxu0 0.0
    %2360 = vmatprep.subr.mxu0 0.0
    %2361 = vmatpush1.xpose.msra.mxu0 0.0
    %2362 = vmatprep.subr.mxu0 0.0
    %2363 = vmatpush1.xpose.msra.mxu0 0.0
    %2364 = vmatprep.subr.mxu0 0.0
    %2365 = vmatpush1.xpose.msra.mxu0 0.0
    %2366 = vmatprep.subr.mxu0 0.0
    %2367 = vmatpush1.xpose.msra.mxu0 0.0
    %2368 = vmatprep.subr.mxu0 0.0
    %2369 = vmatpush1.xpose.msra.mxu0 0.0
    %2370 = vmatprep.subr.mxu0 0.0
    %2371 = vmatpush1.xpose.msra.mxu0 0.0
    %2372 = vmatprep.subr.mxu0 0.0
    %2373 = vmatpush1.xpose.msra.mxu0 0.0
    %2374 = vmatprep.subr.mxu0 0.0
    %2375 = vmatpush1.xpose.msra.mxu0 0.0
    %2376 = vmatprep.subr.mxu0 0.0
    %2377 = vmatpush1.xpose.msra.mxu0 %v2344
    %2378 = vmatprep.subr.mxu0 0.0
    %2379 = vmatpush2.xpose.msra.mxu0 0.0
    %2380 = vmatprep.subr.mxu0 0.0
    %2381 = vmatpush2.xpose.msra.mxu0 0.0
    %2382 = vmatprep.subr.mxu0 0.0
    %2383 = vmatpush2.xpose.msra.mxu0 0.0
    %2384 = vmatprep.subr.mxu0 0.0
    %2385 = vmatpush2.xpose.msra.mxu0 0.0
    %2386 = vmatprep.subr.mxu0 0.0
    %2387 = vmatpush2.xpose.msra.mxu0 0.0
    %2388 = vmatprep.subr.mxu0 0.0
    %2389 = vmatpush2.xpose.msra.mxu0 0.0
    %2390 = vmatprep.subr.mxu0 0.0
    %2391 = vmatpush2.xpose.msra.mxu0 0.0
    %2392 = vmatprep.subr.mxu0 0.0
    %2393 = vmatpush2.xpose.msra.mxu0 0.0
    %2394 = vmatprep.subr.mxu0 0.0
    %2395 = vmatpush2.xpose.msra.mxu0 0.0
    %2396 = vmatprep.subr.mxu0 0.0
    %2397 = vmatpush2.xpose.msra.mxu0 0.0
    %2398 = vmatprep.subr.mxu0 0.0
    %2399 = vmatpush2.xpose.msra.mxu0 0.0
    %2400 = vmatprep.subr.mxu0 0.0
    %2401 = vmatpush2.xpose.msra.mxu0 0.0
    %2402 = vmatprep.subr.mxu0 0.0
    %2403 = vmatpush2.xpose.msra.mxu0 0.0
    %2404 = vmatprep.subr.mxu0 0.0
    %2405 = vmatpush2.xpose.msra.mxu0 0.0
    %2406 = vmatprep.subr.mxu0 0.0
    %2407 = vmatpush2.xpose.msra.mxu0 0.0
    %2408 = vmatprep.subr.mxu0 0.0
    %2409 = vmatpush2.xpose.msra.mxu0 0.0
    %2410 = vmatprep.mubr.f32.mxu0 0.0
    %2411 = vmatmul.mubr.f32.gmra.mxu0 %v2342
    %v2412 = vpop.f32.mrf.mxu0
    %v2413 = vadd.f32 0.0, %v2412
    %v2414 = vpop.f32.mrf.mxu0
    %2415 = vdwg.mxu0
    %v2416 = vmul.f32 %v2413, 0.5
    %v2417 = vsel %vm468, %v2416, -inf
    %v2418 = vrot.slane %v2417, 4
    %v2419 = vmax.f32 %v2417, %v2418
    %v2420 = vrot.slane %v2419, 2
    %v2421 = vmax.f32 %v2419, %v2420
    %v2422 = vrot.slane %v2421, 1
    %v2423 = vmax.f32 %v2421, %v2422
    %v2424 = vsub.f32 %v2416, %v2423
    %v2425 = vmul.f32 %v2424, 1.442695
    %v2426 = vpow.pop %v2425
    %v2427 = vsel %vm468, %v2426, 0.0
    %v2428 = vrot.slane %v2427, 4
    %v2429 = vadd.f32 %v2427, %v2428
    %v2430 = vrot.slane %v2429, 2
    %v2431 = vadd.f32 %v2429, %v2430
    %v2432 = vrot.slane %v2431, 1
    %v2433 = vadd.f32 %v2431, %v2432
    %v2434 = vrcp.pop %v2433
    %v2435 = vmul.f32 %v2426, %v2434
    %2436 = vrot.lane.b32.xlu0 %v387, 116
    %v2437 = vpop.permute.xlu0 %2436
    %v2440 = vsel %vm468, %v2435, 0
    %2442 = vmatprep.subr.mxu0 0.0
    %2443 = vmatpush1.msra.mxu0 0.0
    %2444 = vmatprep.subr.mxu0 0.0
    %2445 = vmatpush1.msra.mxu0 0.0
    %2446 = vmatprep.subr.mxu0 0.0
    %2447 = vmatpush1.msra.mxu0 0.0
    %2448 = vmatprep.subr.mxu0 0.0
    %2449 = vmatpush1.msra.mxu0 0.0
    %2450 = vmatprep.subr.mxu0 0.0
    %2451 = vmatpush1.msra.mxu0 0.0
    %2452 = vmatprep.subr.mxu0 0.0
    %2453 = vmatpush1.msra.mxu0 0.0
    %2454 = vmatprep.subr.mxu0 0.0
    %2455 = vmatpush1.msra.mxu0 0.0
    %2456 = vmatprep.subr.mxu0 0.0
    %2457 = vmatpush1.msra.mxu0 0.0
    %2458 = vmatprep.subr.mxu0 0.0
    %2459 = vmatpush1.msra.mxu0 0.0
    %2460 = vmatprep.subr.mxu0 0.0
    %2461 = vmatpush1.msra.mxu0 0.0
    %2462 = vmatprep.subr.mxu0 0.0
    %2463 = vmatpush1.msra.mxu0 0.0
    %2464 = vmatprep.subr.mxu0 0.0
    %2465 = vmatpush1.msra.mxu0 0.0
    %2466 = vmatprep.subr.mxu0 0.0
    %2467 = vmatpush1.msra.mxu0 0.0
    %2468 = vmatprep.subr.mxu0 0.0
    %2469 = vmatpush1.msra.mxu0 0.0
    %2470 = vmatprep.subr.mxu0 0.0
    %2471 = vmatpush1.msra.mxu0 0.0
    %2472 = vmatprep.subr.mxu0 0.0
    %2473 = vmatpush1.msra.mxu0 %v2437
    %2474 = vmatprep.subr.mxu0 0.0
    %2475 = vmatpush2.msra.mxu0 0.0
    %2476 = vmatprep.subr.mxu0 0.0
    %2477 = vmatpush2.msra.mxu0 0.0
    %2478 = vmatprep.subr.mxu0 0.0
    %2479 = vmatpush2.msra.mxu0 0.0
    %2480 = vmatprep.subr.mxu0 0.0
    %2481 = vmatpush2.msra.mxu0 0.0
    %2482 = vmatprep.subr.mxu0 0.0
    %2483 = vmatpush2.msra.mxu0 0.0
    %2484 = vmatprep.subr.mxu0 0.0
    %2485 = vmatpush2.msra.mxu0 0.0
    %2486 = vmatprep.subr.mxu0 0.0
    %2487 = vmatpush2.msra.mxu0 0.0
    %2488 = vmatprep.subr.mxu0 0.0
    %2489 = vmatpush2.msra.mxu0 0.0
    %2490 = vmatprep.subr.mxu0 0.0
    %2491 = vmatpush2.msra.mxu0 0.0
    %2492 = vmatprep.subr.mxu0 0.0
    %2493 = vmatpush2.msra.mxu0 0.0
    %2494 = vmatprep.subr.mxu0 0.0
    %2495 = vmatpush2.msra.mxu0 0.0
    %2496 = vmatprep.subr.mxu0 0.0
    %2497 = vmatpush2.msra.mxu0 0.0
    %2498 = vmatprep.subr.mxu0 0.0
    %2499 = vmatpush2.msra.mxu0 0.0
    %2500 = vmatprep.subr.mxu0 0.0
    %2501 = vmatpush2.msra.mxu0 0.0
    %2502 = vmatprep.subr.mxu0 0.0
    %2503 = vmatpush2.msra.mxu0 0.0
    %2504 = vmatprep.subr.mxu0 0.0
    %2505 = vmatpush2.msra.mxu0 0.0
    %2506 = vmatprep.mubr.f32.mxu0 0.0
    %2507 = vmatmul.mubr.f32.gmra.mxu0 %v2440
    %v2508 = vpop.f32.mrf.mxu0
    %v2509 = vadd.f32 0.0, %v2508
    %v2510 = vpop.f32.mrf.mxu0
    %2511 = vdwg.mxu0
    %2512 = vrot.lane.b32.xlu0 %v217, 112
    %v2513 = vpop.permute.xlu0 %2512
    %2514 = vrot.lane.b32.xlu0 %v302, 112
    %v2515 = vpop.permute.xlu0 %2514
    %v2516 = vsel %vm390, %v2513, 0
    %v2518 = vsel %vm390, %v2515, 0
    %2520 = vmatprep.subr.mxu0 0.0
    %2521 = vmatpush1.xpose.msra.mxu0 0.0
    %2522 = vmatprep.subr.mxu0 0.0
    %2523 = vmatpush1.xpose.msra.mxu0 0.0
    %2524 = vmatprep.subr.mxu0 0.0
    %2525 = vmatpush1.xpose.msra.mxu0 0.0
    %2526 = vmatprep.subr.mxu0 0.0
    %2527 = vmatpush1.xpose.msra.mxu0 0.0
    %2528 = vmatprep.subr.mxu0 0.0
    %2529 = vmatpush1.xpose.msra.mxu0 0.0
    %2530 = vmatprep.subr.mxu0 0.0
    %2531 = vmatpush1.xpose.msra.mxu0 0.0
    %2532 = vmatprep.subr.mxu0 0.0
    %2533 = vmatpush1.xpose.msra.mxu0 0.0
    %2534 = vmatprep.subr.mxu0 0.0
    %2535 = vmatpush1.xpose.msra.mxu0 0.0
    %2536 = vmatprep.subr.mxu0 0.0
    %2537 = vmatpush1.xpose.msra.mxu0 0.0
    %2538 = vmatprep.subr.mxu0 0.0
    %2539 = vmatpush1.xpose.msra.mxu0 0.0
    %2540 = vmatprep.subr.mxu0 0.0
    %2541 = vmatpush1.xpose.msra.mxu0 0.0
    %2542 = vmatprep.subr.mxu0 0.0
    %2543 = vmatpush1.xpose.msra.mxu0 0.0
    %2544 = vmatprep.subr.mxu0 0.0
    %2545 = vmatpush1.xpose.msra.mxu0 0.0
    %2546 = vmatprep.subr.mxu0 0.0
    %2547 = vmatpush1.xpose.msra.mxu0 0.0
    %2548 = vmatprep.subr.mxu0 0.0
    %2549 = vmatpush1.xpose.msra.mxu0 0.0
    %2550 = vmatprep.subr.mxu0 0.0
    %2551 = vmatpush1.xpose.msra.mxu0 %v2518
    %2552 = vmatprep.subr.mxu0 0.0
    %2553 = vmatpush2.xpose.msra.mxu0 0.0
    %2554 = vmatprep.subr.mxu0 0.0
    %2555 = vmatpush2.xpose.msra.mxu0 0.0
    %2556 = vmatprep.subr.mxu0 0.0
    %2557 = vmatpush2.xpose.msra.mxu0 0.0
    %2558 = vmatprep.subr.mxu0 0.0
    %2559 = vmatpush2.xpose.msra.mxu0 0.0
    %2560 = vmatprep.subr.mxu0 0.0
    %2561 = vmatpush2.xpose.msra.mxu0 0.0
    %2562 = vmatprep.subr.mxu0 0.0
    %2563 = vmatpush2.xpose.msra.mxu0 0.0
    %2564 = vmatprep.subr.mxu0 0.0
    %2565 = vmatpush2.xpose.msra.mxu0 0.0
    %2566 = vmatprep.subr.mxu0 0.0
    %2567 = vmatpush2.xpose.msra.mxu0 0.0
    %2568 = vmatprep.subr.mxu0 0.0
    %2569 = vmatpush2.xpose.msra.mxu0 0.0
    %2570 = vmatprep.subr.mxu0 0.0
    %2571 = vmatpush2.xpose.msra.mxu0 0.0
    %2572 = vmatprep.subr.mxu0 0.0
    %2573 = vmatpush2.xpose.msra.mxu0 0.0
    %2574 = vmatprep.subr.mxu0 0.0
    %2575 = vmatpush2.xpose.msra.mxu0 0.0
    %2576 = vmatprep.subr.mxu0 0.0
    %2577 = vmatpush2.xpose.msra.mxu0 0.0
    %2578 = vmatprep.subr.mxu0 0.0
    %2579 = vmatpush2.xpose.msra.mxu0 0.0
    %2580 = vmatprep.subr.mxu0 0.0
    %2581 = vmatpush2.xpose.msra.mxu0 0.0
    %2582 = vmatprep.subr.mxu0 0.0
    %2583 = vmatpush2.xpose.msra.mxu0 0.0
    %2584 = vmatprep.mubr.f32.mxu0 0.0
    %2585 = vmatmul.mubr.f32.gmra.mxu0 %v2516
    %v2586 = vpop.f32.mrf.mxu0
    %v2587 = vadd.f32 0.0, %v2586
    %v2588 = vpop.f32.mrf.mxu0
    %2589 = vdwg.mxu0
    %v2590 = vmul.f32 %v2587, 0.5
    %v2591 = vsel %vm468, %v2590, -inf
    %v2592 = vrot.slane %v2591, 4
    %v2593 = vmax.f32 %v2591, %v2592
    %v2594 = vrot.slane %v2593, 2
    %v2595 = vmax.f32 %v2593, %v2594
    %v2596 = vrot.slane %v2595, 1
    %v2597 = vmax.f32 %v2595, %v2596
    %v2598 = vsub.f32 %v2590, %v2597
    %v2599 = vmul.f32 %v2598, 1.442695
    %v2600 = vpow.pop %v2599
    %v2601 = vsel %vm468, %v2600, 0.0
    %v2602 = vrot.slane %v2601, 4
    %v2603 = vadd.f32 %v2601, %v2602
    %v2604 = vrot.slane %v2603, 2
    %v2605 = vadd.f32 %v2603, %v2604
    %v2606 = vrot.slane %v2605, 1
    %v2607 = vadd.f32 %v2605, %v2606
    %v2608 = vrcp.pop %v2607
    %v2609 = vmul.f32 %v2600, %v2608
    %2610 = vrot.lane.b32.xlu0 %v387, 112
    %v2611 = vpop.permute.xlu0 %2610
    %v2614 = vsel %vm468, %v2609, 0
    %2616 = vmatprep.subr.mxu0 0.0
    %2617 = vmatpush1.msra.mxu0 0.0
    %2618 = vmatprep.subr.mxu0 0.0
    %2619 = vmatpush1.msra.mxu0 0.0
    %2620 = vmatprep.subr.mxu0 0.0
    %2621 = vmatpush1.msra.mxu0 0.0
    %2622 = vmatprep.subr.mxu0 0.0
    %2623 = vmatpush1.msra.mxu0 0.0
    %2624 = vmatprep.subr.mxu0 0.0
    %2625 = vmatpush1.msra.mxu0 0.0
    %2626 = vmatprep.subr.mxu0 0.0
    %2627 = vmatpush1.msra.mxu0 0.0
    %2628 = vmatprep.subr.mxu0 0.0
    %2629 = vmatpush1.msra.mxu0 0.0
    %2630 = vmatprep.subr.mxu0 0.0
    %2631 = vmatpush1.msra.mxu0 0.0
    %2632 = vmatprep.subr.mxu0 0.0
    %2633 = vmatpush1.msra.mxu0 0.0
    %2634 = vmatprep.subr.mxu0 0.0
    %2635 = vmatpush1.msra.mxu0 0.0
    %2636 = vmatprep.subr.mxu0 0.0
    %2637 = vmatpush1.msra.mxu0 0.0
    %2638 = vmatprep.subr.mxu0 0.0
    %2639 = vmatpush1.msra.mxu0 0.0
    %2640 = vmatprep.subr.mxu0 0.0
    %2641 = vmatpush1.msra.mxu0 0.0
    %2642 = vmatprep.subr.mxu0 0.0
    %2643 = vmatpush1.msra.mxu0 0.0
    %2644 = vmatprep.subr.mxu0 0.0
    %2645 = vmatpush1.msra.mxu0 0.0
    %2646 = vmatprep.subr.mxu0 0.0
    %2647 = vmatpush1.msra.mxu0 %v2611
    %2648 = vmatprep.subr.mxu0 0.0
    %2649 = vmatpush2.msra.mxu0 0.0
    %2650 = vmatprep.subr.mxu0 0.0
    %2651 = vmatpush2.msra.mxu0 0.0
    %2652 = vmatprep.subr.mxu0 0.0
    %2653 = vmatpush2.msra.mxu0 0.0
    %2654 = vmatprep.subr.mxu0 0.0
    %2655 = vmatpush2.msra.mxu0 0.0
    %2656 = vmatprep.subr.mxu0 0.0
    %2657 = vmatpush2.msra.mxu0 0.0
    %2658 = vmatprep.subr.mxu0 0.0
    %2659 = vmatpush2.msra.mxu0 0.0
    %2660 = vmatprep.subr.mxu0 0.0
    %2661 = vmatpush2.msra.mxu0 0.0
    %2662 = vmatprep.subr.mxu0 0.0
    %2663 = vmatpush2.msra.mxu0 0.0
    %2664 = vmatprep.subr.mxu0 0.0
    %2665 = vmatpush2.msra.mxu0 0.0
    %2666 = vmatprep.subr.mxu0 0.0
    %2667 = vmatpush2.msra.mxu0 0.0
    %2668 = vmatprep.subr.mxu0 0.0
    %2669 = vmatpush2.msra.mxu0 0.0
    %2670 = vmatprep.subr.mxu0 0.0
    %2671 = vmatpush2.msra.mxu0 0.0
    %2672 = vmatprep.subr.mxu0 0.0
    %2673 = vmatpush2.msra.mxu0 0.0
    %2674 = vmatprep.subr.mxu0 0.0
    %2675 = vmatpush2.msra.mxu0 0.0
    %2676 = vmatprep.subr.mxu0 0.0
    %2677 = vmatpush2.msra.mxu0 0.0
    %2678 = vmatprep.subr.mxu0 0.0
    %2679 = vmatpush2.msra.mxu0 0.0
    %2680 = vmatprep.mubr.f32.mxu0 0.0
    %2681 = vmatmul.mubr.f32.gmra.mxu0 %v2614
    %v2682 = vpop.f32.mrf.mxu0
    %v2683 = vadd.f32 0.0, %v2682
    %v2684 = vpop.f32.mrf.mxu0
    %2685 = vdwg.mxu0
    %2686 = vrot.lane.b32.xlu0 %v217, 108
    %v2687 = vpop.permute.xlu0 %2686
    %2688 = vrot.lane.b32.xlu0 %v302, 108
    %v2689 = vpop.permute.xlu0 %2688
    %v2690 = vsel %vm390, %v2687, 0
    %v2692 = vsel %vm390, %v2689, 0
    %2694 = vmatprep.subr.mxu0 0.0
    %2695 = vmatpush1.xpose.msra.mxu0 0.0
    %2696 = vmatprep.subr.mxu0 0.0
    %2697 = vmatpush1.xpose.msra.mxu0 0.0
    %2698 = vmatprep.subr.mxu0 0.0
    %2699 = vmatpush1.xpose.msra.mxu0 0.0
    %2700 = vmatprep.subr.mxu0 0.0
    %2701 = vmatpush1.xpose.msra.mxu0 0.0
    %2702 = vmatprep.subr.mxu0 0.0
    %2703 = vmatpush1.xpose.msra.mxu0 0.0
    %2704 = vmatprep.subr.mxu0 0.0
    %2705 = vmatpush1.xpose.msra.mxu0 0.0
    %2706 = vmatprep.subr.mxu0 0.0
    %2707 = vmatpush1.xpose.msra.mxu0 0.0
    %2708 = vmatprep.subr.mxu0 0.0
    %2709 = vmatpush1.xpose.msra.mxu0 0.0
    %2710 = vmatprep.subr.mxu0 0.0
    %2711 = vmatpush1.xpose.msra.mxu0 0.0
    %2712 = vmatprep.subr.mxu0 0.0
    %2713 = vmatpush1.xpose.msra.mxu0 0.0
    %2714 = vmatprep.subr.mxu0 0.0
    %2715 = vmatpush1.xpose.msra.mxu0 0.0
    %2716 = vmatprep.subr.mxu0 0.0
    %2717 = vmatpush1.xpose.msra.mxu0 0.0
    %2718 = vmatprep.subr.mxu0 0.0
    %2719 = vmatpush1.xpose.msra.mxu0 0.0
    %2720 = vmatprep.subr.mxu0 0.0
    %2721 = vmatpush1.xpose.msra.mxu0 0.0
    %2722 = vmatprep.subr.mxu0 0.0
    %2723 = vmatpush1.xpose.msra.mxu0 0.0
    %2724 = vmatprep.subr.mxu0 0.0
    %2725 = vmatpush1.xpose.msra.mxu0 %v2692
    %2726 = vmatprep.subr.mxu0 0.0
    %2727 = vmatpush2.xpose.msra.mxu0 0.0
    %2728 = vmatprep.subr.mxu0 0.0
    %2729 = vmatpush2.xpose.msra.mxu0 0.0
    %2730 = vmatprep.subr.mxu0 0.0
    %2731 = vmatpush2.xpose.msra.mxu0 0.0
    %2732 = vmatprep.subr.mxu0 0.0
    %2733 = vmatpush2.xpose.msra.mxu0 0.0
    %2734 = vmatprep.subr.mxu0 0.0
    %2735 = vmatpush2.xpose.msra.mxu0 0.0
    %2736 = vmatprep.subr.mxu0 0.0
    %2737 = vmatpush2.xpose.msra.mxu0 0.0
    %2738 = vmatprep.subr.mxu0 0.0
    %2739 = vmatpush2.xpose.msra.mxu0 0.0
    %2740 = vmatprep.subr.mxu0 0.0
    %2741 = vmatpush2.xpose.msra.mxu0 0.0
    %2742 = vmatprep.subr.mxu0 0.0
    %2743 = vmatpush2.xpose.msra.mxu0 0.0
    %2744 = vmatprep.subr.mxu0 0.0
    %2745 = vmatpush2.xpose.msra.mxu0 0.0
    %2746 = vmatprep.subr.mxu0 0.0
    %2747 = vmatpush2.xpose.msra.mxu0 0.0
    %2748 = vmatprep.subr.mxu0 0.0
    %2749 = vmatpush2.xpose.msra.mxu0 0.0
    %2750 = vmatprep.subr.mxu0 0.0
    %2751 = vmatpush2.xpose.msra.mxu0 0.0
    %2752 = vmatprep.subr.mxu0 0.0
    %2753 = vmatpush2.xpose.msra.mxu0 0.0
    %2754 = vmatprep.subr.mxu0 0.0
    %2755 = vmatpush2.xpose.msra.mxu0 0.0
    %2756 = vmatprep.subr.mxu0 0.0
    %2757 = vmatpush2.xpose.msra.mxu0 0.0
    %2758 = vmatprep.mubr.f32.mxu0 0.0
    %2759 = vmatmul.mubr.f32.gmra.mxu0 %v2690
    %v2760 = vpop.f32.mrf.mxu0
    %v2761 = vadd.f32 0.0, %v2760
    %v2762 = vpop.f32.mrf.mxu0
    %2763 = vdwg.mxu0
    %v2764 = vmul.f32 %v2761, 0.5
    %v2765 = vsel %vm468, %v2764, -inf
    %v2766 = vrot.slane %v2765, 4
    %v2767 = vmax.f32 %v2765, %v2766
    %v2768 = vrot.slane %v2767, 2
    %v2769 = vmax.f32 %v2767, %v2768
    %v2770 = vrot.slane %v2769, 1
    %v2771 = vmax.f32 %v2769, %v2770
    %v2772 = vsub.f32 %v2764, %v2771
    %v2773 = vmul.f32 %v2772, 1.442695
    %v2774 = vpow.pop %v2773
    %v2775 = vsel %vm468, %v2774, 0.0
    %v2776 = vrot.slane %v2775, 4
    %v2777 = vadd.f32 %v2775, %v2776
    %v2778 = vrot.slane %v2777, 2
    %v2779 = vadd.f32 %v2777, %v2778
    %v2780 = vrot.slane %v2779, 1
    %v2781 = vadd.f32 %v2779, %v2780
    %v2782 = vrcp.pop %v2781
    %v2783 = vmul.f32 %v2774, %v2782
    %2784 = vrot.lane.b32.xlu0 %v387, 108
    %v2785 = vpop.permute.xlu0 %2784
    %v2788 = vsel %vm468, %v2783, 0
    %2790 = vmatprep.subr.mxu0 0.0
    %2791 = vmatpush1.msra.mxu0 0.0
    %2792 = vmatprep.subr.mxu0 0.0
    %2793 = vmatpush1.msra.mxu0 0.0
    %2794 = vmatprep.subr.mxu0 0.0
    %2795 = vmatpush1.msra.mxu0 0.0
    %2796 = vmatprep.subr.mxu0 0.0
    %2797 = vmatpush1.msra.mxu0 0.0
    %2798 = vmatprep.subr.mxu0 0.0
    %2799 = vmatpush1.msra.mxu0 0.0
    %2800 = vmatprep.subr.mxu0 0.0
    %2801 = vmatpush1.msra.mxu0 0.0
    %2802 = vmatprep.subr.mxu0 0.0
    %2803 = vmatpush1.msra.mxu0 0.0
    %2804 = vmatprep.subr.mxu0 0.0
    %2805 = vmatpush1.msra.mxu0 0.0
    %2806 = vmatprep.subr.mxu0 0.0
    %2807 = vmatpush1.msra.mxu0 0.0
    %2808 = vmatprep.subr.mxu0 0.0
    %2809 = vmatpush1.msra.mxu0 0.0
    %2810 = vmatprep.subr.mxu0 0.0
    %2811 = vmatpush1.msra.mxu0 0.0
    %2812 = vmatprep.subr.mxu0 0.0
    %2813 = vmatpush1.msra.mxu0 0.0
    %2814 = vmatprep.subr.mxu0 0.0
    %2815 = vmatpush1.msra.mxu0 0.0
    %2816 = vmatprep.subr.mxu0 0.0
    %2817 = vmatpush1.msra.mxu0 0.0
    %2818 = vmatprep.subr.mxu0 0.0
    %2819 = vmatpush1.msra.mxu0 0.0
    %2820 = vmatprep.subr.mxu0 0.0
    %2821 = vmatpush1.msra.mxu0 %v2785
    %2822 = vmatprep.subr.mxu0 0.0
    %2823 = vmatpush2.msra.mxu0 0.0
    %2824 = vmatprep.subr.mxu0 0.0
    %2825 = vmatpush2.msra.mxu0 0.0
    %2826 = vmatprep.subr.mxu0 0.0
    %2827 = vmatpush2.msra.mxu0 0.0
    %2828 = vmatprep.subr.mxu0 0.0
    %2829 = vmatpush2.msra.mxu0 0.0
    %2830 = vmatprep.subr.mxu0 0.0
    %2831 = vmatpush2.msra.mxu0 0.0
    %2832 = vmatprep.subr.mxu0 0.0
    %2833 = vmatpush2.msra.mxu0 0.0
    %2834 = vmatprep.subr.mxu0 0.0
    %2835 = vmatpush2.msra.mxu0 0.0
    %2836 = vmatprep.subr.mxu0 0.0
    %2837 = vmatpush2.msra.mxu0 0.0
    %2838 = vmatprep.subr.mxu0 0.0
    %2839 = vmatpush2.msra.mxu0 0.0
    %2840 = vmatprep.subr.mxu0 0.0
    %2841 = vmatpush2.msra.mxu0 0.0
    %2842 = vmatprep.subr.mxu0 0.0
    %2843 = vmatpush2.msra.mxu0 0.0
    %2844 = vmatprep.subr.mxu0 0.0
    %2845 = vmatpush2.msra.mxu0 0.0
    %2846 = vmatprep.subr.mxu0 0.0
    %2847 = vmatpush2.msra.mxu0 0.0
    %2848 = vmatprep.subr.mxu0 0.0
    %2849 = vmatpush2.msra.mxu0 0.0
    %2850 = vmatprep.subr.mxu0 0.0
    %2851 = vmatpush2.msra.mxu0 0.0
    %2852 = vmatprep.subr.mxu0 0.0
    %2853 = vmatpush2.msra.mxu0 0.0
    %2854 = vmatprep.mubr.f32.mxu0 0.0
    %2855 = vmatmul.mubr.f32.gmra.mxu0 %v2788
    %v2856 = vpop.f32.mrf.mxu0
    %v2857 = vadd.f32 0.0, %v2856
    %v2858 = vpop.f32.mrf.mxu0
    %2859 = vdwg.mxu0
    %2860 = vrot.lane.b32.xlu0 %v217, 104
    %v2861 = vpop.permute.xlu0 %2860
    %2862 = vrot.lane.b32.xlu0 %v302, 104
    %v2863 = vpop.permute.xlu0 %2862
    %v2864 = vsel %vm390, %v2861, 0
    %v2866 = vsel %vm390, %v2863, 0
    %2868 = vmatprep.subr.mxu0 0.0
    %2869 = vmatpush1.xpose.msra.mxu0 0.0
    %2870 = vmatprep.subr.mxu0 0.0
    %2871 = vmatpush1.xpose.msra.mxu0 0.0
    %2872 = vmatprep.subr.mxu0 0.0
    %2873 = vmatpush1.xpose.msra.mxu0 0.0
    %2874 = vmatprep.subr.mxu0 0.0
    %2875 = vmatpush1.xpose.msra.mxu0 0.0
    %2876 = vmatprep.subr.mxu0 0.0
    %2877 = vmatpush1.xpose.msra.mxu0 0.0
    %2878 = vmatprep.subr.mxu0 0.0
    %2879 = vmatpush1.xpose.msra.mxu0 0.0
    %2880 = vmatprep.subr.mxu0 0.0
    %2881 = vmatpush1.xpose.msra.mxu0 0.0
    %2882 = vmatprep.subr.mxu0 0.0
    %2883 = vmatpush1.xpose.msra.mxu0 0.0
    %2884 = vmatprep.subr.mxu0 0.0
    %2885 = vmatpush1.xpose.msra.mxu0 0.0
    %2886 = vmatprep.subr.mxu0 0.0
    %2887 = vmatpush1.xpose.msra.mxu0 0.0
    %2888 = vmatprep.subr.mxu0 0.0
    %2889 = vmatpush1.xpose.msra.mxu0 0.0
    %2890 = vmatprep.subr.mxu0 0.0
    %2891 = vmatpush1.xpose.msra.mxu0 0.0
    %2892 = vmatprep.subr.mxu0 0.0
    %2893 = vmatpush1.xpose.msra.mxu0 0.0
    %2894 = vmatprep.subr.mxu0 0.0
    %2895 = vmatpush1.xpose.msra.mxu0 0.0
    %2896 = vmatprep.subr.mxu0 0.0
    %2897 = vmatpush1.xpose.msra.mxu0 0.0
    %2898 = vmatprep.subr.mxu0 0.0
    %2899 = vmatpush1.xpose.msra.mxu0 %v2866
    %2900 = vmatprep.subr.mxu0 0.0
    %2901 = vmatpush2.xpose.msra.mxu0 0.0
    %2902 = vmatprep.subr.mxu0 0.0
    %2903 = vmatpush2.xpose.msra.mxu0 0.0
    %2904 = vmatprep.subr.mxu0 0.0
    %2905 = vmatpush2.xpose.msra.mxu0 0.0
    %2906 = vmatprep.subr.mxu0 0.0
    %2907 = vmatpush2.xpose.msra.mxu0 0.0
    %2908 = vmatprep.subr.mxu0 0.0
    %2909 = vmatpush2.xpose.msra.mxu0 0.0
    %2910 = vmatprep.subr.mxu0 0.0
    %2911 = vmatpush2.xpose.msra.mxu0 0.0
    %2912 = vmatprep.subr.mxu0 0.0
    %2913 = vmatpush2.xpose.msra.mxu0 0.0
    %2914 = vmatprep.subr.mxu0 0.0
    %2915 = vmatpush2.xpose.msra.mxu0 0.0
    %2916 = vmatprep.subr.mxu0 0.0
    %2917 = vmatpush2.xpose.msra.mxu0 0.0
    %2918 = vmatprep.subr.mxu0 0.0
    %2919 = vmatpush2.xpose.msra.mxu0 0.0
    %2920 = vmatprep.subr.mxu0 0.0
    %2921 = vmatpush2.xpose.msra.mxu0 0.0
    %2922 = vmatprep.subr.mxu0 0.0
    %2923 = vmatpush2.xpose.msra.mxu0 0.0
    %2924 = vmatprep.subr.mxu0 0.0
    %2925 = vmatpush2.xpose.msra.mxu0 0.0
    %2926 = vmatprep.subr.mxu0 0.0
    %2927 = vmatpush2.xpose.msra.mxu0 0.0
    %2928 = vmatprep.subr.mxu0 0.0
    %2929 = vmatpush2.xpose.msra.mxu0 0.0
    %2930 = vmatprep.subr.mxu0 0.0
    %2931 = vmatpush2.xpose.msra.mxu0 0.0
    %2932 = vmatprep.mubr.f32.mxu0 0.0
    %2933 = vmatmul.mubr.f32.gmra.mxu0 %v2864
    %v2934 = vpop.f32.mrf.mxu0
    %v2935 = vadd.f32 0.0, %v2934
    %v2936 = vpop.f32.mrf.mxu0
    %2937 = vdwg.mxu0
    %v2938 = vmul.f32 %v2935, 0.5
    %v2939 = vsel %vm468, %v2938, -inf
    %v2940 = vrot.slane %v2939, 4
    %v2941 = vmax.f32 %v2939, %v2940
    %v2942 = vrot.slane %v2941, 2
    %v2943 = vmax.f32 %v2941, %v2942
    %v2944 = vrot.slane %v2943, 1
    %v2945 = vmax.f32 %v2943, %v2944
    %v2946 = vsub.f32 %v2938, %v2945
    %v2947 = vmul.f32 %v2946, 1.442695
    %v2948 = vpow.pop %v2947
    %v2949 = vsel %vm468, %v2948, 0.0
    %v2950 = vrot.slane %v2949, 4
    %v2951 = vadd.f32 %v2949, %v2950
    %v2952 = vrot.slane %v2951, 2
    %v2953 = vadd.f32 %v2951, %v2952
    %v2954 = vrot.slane %v2953, 1
    %v2955 = vadd.f32 %v2953, %v2954
    %v2956 = vrcp.pop %v2955
    %v2957 = vmul.f32 %v2948, %v2956
    %2958 = vrot.lane.b32.xlu0 %v387, 104
    %v2959 = vpop.permute.xlu0 %2958
    %v2962 = vsel %vm468, %v2957, 0
    %2964 = vmatprep.subr.mxu0 0.0
    %2965 = vmatpush1.msra.mxu0 0.0
    %2966 = vmatprep.subr.mxu0 0.0
    %2967 = vmatpush1.msra.mxu0 0.0
    %2968 = vmatprep.subr.mxu0 0.0
    %2969 = vmatpush1.msra.mxu0 0.0
    %2970 = vmatprep.subr.mxu0 0.0
    %2971 = vmatpush1.msra.mxu0 0.0
    %2972 = vmatprep.subr.mxu0 0.0
    %2973 = vmatpush1.msra.mxu0 0.0
    %2974 = vmatprep.subr.mxu0 0.0
    %2975 = vmatpush1.msra.mxu0 0.0
    %2976 = vmatprep.subr.mxu0 0.0
    %2977 = vmatpush1.msra.mxu0 0.0
    %2978 = vmatprep.subr.mxu0 0.0
    %2979 = vmatpush1.msra.mxu0 0.0
    %2980 = vmatprep.subr.mxu0 0.0
    %2981 = vmatpush1.msra.mxu0 0.0
    %2982 = vmatprep.subr.mxu0 0.0
    %2983 = vmatpush1.msra.mxu0 0.0
    %2984 = vmatprep.subr.mxu0 0.0
    %2985 = vmatpush1.msra.mxu0 0.0
    %2986 = vmatprep.subr.mxu0 0.0
    %2987 = vmatpush1.msra.mxu0 0.0
    %2988 = vmatprep.subr.mxu0 0.0
    %2989 = vmatpush1.msra.mxu0 0.0
    %2990 = vmatprep.subr.mxu0 0.0
    %2991 = vmatpush1.msra.mxu0 0.0
    %2992 = vmatprep.subr.mxu0 0.0
    %2993 = vmatpush1.msra.mxu0 0.0
    %2994 = vmatprep.subr.mxu0 0.0
    %2995 = vmatpush1.msra.mxu0 %v2959
    %2996 = vmatprep.subr.mxu0 0.0
    %2997 = vmatpush2.msra.mxu0 0.0
    %2998 = vmatprep.subr.mxu0 0.0
    %2999 = vmatpush2.msra.mxu0 0.0
    %3000 = vmatprep.subr.mxu0 0.0
    %3001 = vmatpush2.msra.mxu0 0.0
    %3002 = vmatprep.subr.mxu0 0.0
    %3003 = vmatpush2.msra.mxu0 0.0
    %3004 = vmatprep.subr.mxu0 0.0
    %3005 = vmatpush2.msra.mxu0 0.0
    %3006 = vmatprep.subr.mxu0 0.0
    %3007 = vmatpush2.msra.mxu0 0.0
    %3008 = vmatprep.subr.mxu0 0.0
    %3009 = vmatpush2.msra.mxu0 0.0
    %3010 = vmatprep.subr.mxu0 0.0
    %3011 = vmatpush2.msra.mxu0 0.0
    %3012 = vmatprep.subr.mxu0 0.0
    %3013 = vmatpush2.msra.mxu0 0.0
    %3014 = vmatprep.subr.mxu0 0.0
    %3015 = vmatpush2.msra.mxu0 0.0
    %3016 = vmatprep.subr.mxu0 0.0
    %3017 = vmatpush2.msra.mxu0 0.0
    %3018 = vmatprep.subr.mxu0 0.0
    %3019 = vmatpush2.msra.mxu0 0.0
    %3020 = vmatprep.subr.mxu0 0.0
    %3021 = vmatpush2.msra.mxu0 0.0
    %3022 = vmatprep.subr.mxu0 0.0
    %3023 = vmatpush2.msra.mxu0 0.0
    %3024 = vmatprep.subr.mxu0 0.0
    %3025 = vmatpush2.msra.mxu0 0.0
    %3026 = vmatprep.subr.mxu0 0.0
    %3027 = vmatpush2.msra.mxu0 0.0
    %3028 = vmatprep.mubr.f32.mxu0 0.0
    %3029 = vmatmul.mubr.f32.gmra.mxu0 %v2962
    %v3030 = vpop.f32.mrf.mxu0
    %v3031 = vadd.f32 0.0, %v3030
    %v3032 = vpop.f32.mrf.mxu0
    %3033 = vdwg.mxu0
    %3034 = vrot.lane.b32.xlu0 %v217, 100
    %v3035 = vpop.permute.xlu0 %3034
    %3036 = vrot.lane.b32.xlu0 %v302, 100
    %v3037 = vpop.permute.xlu0 %3036
    %v3038 = vsel %vm390, %v3035, 0
    %v3040 = vsel %vm390, %v3037, 0
    %3042 = vmatprep.subr.mxu0 0.0
    %3043 = vmatpush1.xpose.msra.mxu0 0.0
    %3044 = vmatprep.subr.mxu0 0.0
    %3045 = vmatpush1.xpose.msra.mxu0 0.0
    %3046 = vmatprep.subr.mxu0 0.0
    %3047 = vmatpush1.xpose.msra.mxu0 0.0
    %3048 = vmatprep.subr.mxu0 0.0
    %3049 = vmatpush1.xpose.msra.mxu0 0.0
    %3050 = vmatprep.subr.mxu0 0.0
    %3051 = vmatpush1.xpose.msra.mxu0 0.0
    %3052 = vmatprep.subr.mxu0 0.0
    %3053 = vmatpush1.xpose.msra.mxu0 0.0
    %3054 = vmatprep.subr.mxu0 0.0
    %3055 = vmatpush1.xpose.msra.mxu0 0.0
    %3056 = vmatprep.subr.mxu0 0.0
    %3057 = vmatpush1.xpose.msra.mxu0 0.0
    %3058 = vmatprep.subr.mxu0 0.0
    %3059 = vmatpush1.xpose.msra.mxu0 0.0
    %3060 = vmatprep.subr.mxu0 0.0
    %3061 = vmatpush1.xpose.msra.mxu0 0.0
    %3062 = vmatprep.subr.mxu0 0.0
    %3063 = vmatpush1.xpose.msra.mxu0 0.0
    %3064 = vmatprep.subr.mxu0 0.0
    %3065 = vmatpush1.xpose.msra.mxu0 0.0
    %3066 = vmatprep.subr.mxu0 0.0
    %3067 = vmatpush1.xpose.msra.mxu0 0.0
    %3068 = vmatprep.subr.mxu0 0.0
    %3069 = vmatpush1.xpose.msra.mxu0 0.0
    %3070 = vmatprep.subr.mxu0 0.0
    %3071 = vmatpush1.xpose.msra.mxu0 0.0
    %3072 = vmatprep.subr.mxu0 0.0
    %3073 = vmatpush1.xpose.msra.mxu0 %v3040
    %3074 = vmatprep.subr.mxu0 0.0
    %3075 = vmatpush2.xpose.msra.mxu0 0.0
    %3076 = vmatprep.subr.mxu0 0.0
    %3077 = vmatpush2.xpose.msra.mxu0 0.0
    %3078 = vmatprep.subr.mxu0 0.0
    %3079 = vmatpush2.xpose.msra.mxu0 0.0
    %3080 = vmatprep.subr.mxu0 0.0
    %3081 = vmatpush2.xpose.msra.mxu0 0.0
    %3082 = vmatprep.subr.mxu0 0.0
    %3083 = vmatpush2.xpose.msra.mxu0 0.0
    %3084 = vmatprep.subr.mxu0 0.0
    %3085 = vmatpush2.xpose.msra.mxu0 0.0
    %3086 = vmatprep.subr.mxu0 0.0
    %3087 = vmatpush2.xpose.msra.mxu0 0.0
    %3088 = vmatprep.subr.mxu0 0.0
    %3089 = vmatpush2.xpose.msra.mxu0 0.0
    %3090 = vmatprep.subr.mxu0 0.0
    %3091 = vmatpush2.xpose.msra.mxu0 0.0
    %3092 = vmatprep.subr.mxu0 0.0
    %3093 = vmatpush2.xpose.msra.mxu0 0.0
    %3094 = vmatprep.subr.mxu0 0.0
    %3095 = vmatpush2.xpose.msra.mxu0 0.0
    %3096 = vmatprep.subr.mxu0 0.0
    %3097 = vmatpush2.xpose.msra.mxu0 0.0
    %3098 = vmatprep.subr.mxu0 0.0
    %3099 = vmatpush2.xpose.msra.mxu0 0.0
    %3100 = vmatprep.subr.mxu0 0.0
    %3101 = vmatpush2.xpose.msra.mxu0 0.0
    %3102 = vmatprep.subr.mxu0 0.0
    %3103 = vmatpush2.xpose.msra.mxu0 0.0
    %3104 = vmatprep.subr.mxu0 0.0
    %3105 = vmatpush2.xpose.msra.mxu0 0.0
    %3106 = vmatprep.mubr.f32.mxu0 0.0
    %3107 = vmatmul.mubr.f32.gmra.mxu0 %v3038
    %v3108 = vpop.f32.mrf.mxu0
    %v3109 = vadd.f32 0.0, %v3108
    %v3110 = vpop.f32.mrf.mxu0
    %3111 = vdwg.mxu0
    %v3112 = vmul.f32 %v3109, 0.5
    %v3113 = vsel %vm468, %v3112, -inf
    %v3114 = vrot.slane %v3113, 4
    %v3115 = vmax.f32 %v3113, %v3114
    %v3116 = vrot.slane %v3115, 2
    %v3117 = vmax.f32 %v3115, %v3116
    %v3118 = vrot.slane %v3117, 1
    %v3119 = vmax.f32 %v3117, %v3118
    %v3120 = vsub.f32 %v3112, %v3119
    %v3121 = vmul.f32 %v3120, 1.442695
    %v3122 = vpow.pop %v3121
    %v3123 = vsel %vm468, %v3122, 0.0
    %v3124 = vrot.slane %v3123, 4
    %v3125 = vadd.f32 %v3123, %v3124
    %v3126 = vrot.slane %v3125, 2
    %v3127 = vadd.f32 %v3125, %v3126
    %v3128 = vrot.slane %v3127, 1
    %v3129 = vadd.f32 %v3127, %v3128
    %v3130 = vrcp.pop %v3129
    %v3131 = vmul.f32 %v3122, %v3130
    %3132 = vrot.lane.b32.xlu0 %v387, 100
    %v3133 = vpop.permute.xlu0 %3132
    %v3136 = vsel %vm468, %v3131, 0
    %3138 = vmatprep.subr.mxu0 0.0
    %3139 = vmatpush1.msra.mxu0 0.0
    %3140 = vmatprep.subr.mxu0 0.0
    %3141 = vmatpush1.msra.mxu0 0.0
    %3142 = vmatprep.subr.mxu0 0.0
    %3143 = vmatpush1.msra.mxu0 0.0
    %3144 = vmatprep.subr.mxu0 0.0
    %3145 = vmatpush1.msra.mxu0 0.0
    %3146 = vmatprep.subr.mxu0 0.0
    %3147 = vmatpush1.msra.mxu0 0.0
    %3148 = vmatprep.subr.mxu0 0.0
    %3149 = vmatpush1.msra.mxu0 0.0
    %3150 = vmatprep.subr.mxu0 0.0
    %3151 = vmatpush1.msra.mxu0 0.0
    %3152 = vmatprep.subr.mxu0 0.0
    %3153 = vmatpush1.msra.mxu0 0.0
    %3154 = vmatprep.subr.mxu0 0.0
    %3155 = vmatpush1.msra.mxu0 0.0
    %3156 = vmatprep.subr.mxu0 0.0
    %3157 = vmatpush1.msra.mxu0 0.0
    %3158 = vmatprep.subr.mxu0 0.0
    %3159 = vmatpush1.msra.mxu0 0.0
    %3160 = vmatprep.subr.mxu0 0.0
    %3161 = vmatpush1.msra.mxu0 0.0
    %3162 = vmatprep.subr.mxu0 0.0
    %3163 = vmatpush1.msra.mxu0 0.0
    %3164 = vmatprep.subr.mxu0 0.0
    %3165 = vmatpush1.msra.mxu0 0.0
    %3166 = vmatprep.subr.mxu0 0.0
    %3167 = vmatpush1.msra.mxu0 0.0
    %3168 = vmatprep.subr.mxu0 0.0
    %3169 = vmatpush1.msra.mxu0 %v3133
    %3170 = vmatprep.subr.mxu0 0.0
    %3171 = vmatpush2.msra.mxu0 0.0
    %3172 = vmatprep.subr.mxu0 0.0
    %3173 = vmatpush2.msra.mxu0 0.0
    %3174 = vmatprep.subr.mxu0 0.0
    %3175 = vmatpush2.msra.mxu0 0.0
    %3176 = vmatprep.subr.mxu0 0.0
    %3177 = vmatpush2.msra.mxu0 0.0
    %3178 = vmatprep.subr.mxu0 0.0
    %3179 = vmatpush2.msra.mxu0 0.0
    %3180 = vmatprep.subr.mxu0 0.0
    %3181 = vmatpush2.msra.mxu0 0.0
    %3182 = vmatprep.subr.mxu0 0.0
    %3183 = vmatpush2.msra.mxu0 0.0
    %3184 = vmatprep.subr.mxu0 0.0
    %3185 = vmatpush2.msra.mxu0 0.0
    %3186 = vmatprep.subr.mxu0 0.0
    %3187 = vmatpush2.msra.mxu0 0.0
    %3188 = vmatprep.subr.mxu0 0.0
    %3189 = vmatpush2.msra.mxu0 0.0
    %3190 = vmatprep.subr.mxu0 0.0
    %3191 = vmatpush2.msra.mxu0 0.0
    %3192 = vmatprep.subr.mxu0 0.0
    %3193 = vmatpush2.msra.mxu0 0.0
    %3194 = vmatprep.subr.mxu0 0.0
    %3195 = vmatpush2.msra.mxu0 0.0
    %3196 = vmatprep.subr.mxu0 0.0
    %3197 = vmatpush2.msra.mxu0 0.0
    %3198 = vmatprep.subr.mxu0 0.0
    %3199 = vmatpush2.msra.mxu0 0.0
    %3200 = vmatprep.subr.mxu0 0.0
    %3201 = vmatpush2.msra.mxu0 0.0
    %3202 = vmatprep.mubr.f32.mxu0 0.0
    %3203 = vmatmul.mubr.f32.gmra.mxu0 %v3136
    %v3204 = vpop.f32.mrf.mxu0
    %v3205 = vadd.f32 0.0, %v3204
    %v3206 = vpop.f32.mrf.mxu0
    %3207 = vdwg.mxu0
    %3209 = vrot.lane.b32.xlu0 %v2161, 4
    %v3210 = vpop.permute.xlu0 %3209
    %3213 = vrot.lane.b32.xlu0 %v2335, 8
    %v3214 = vpop.permute.xlu0 %3213
    %3217 = vrot.lane.b32.xlu0 %v2509, 12
    %v3218 = vpop.permute.xlu0 %3217
    %3221 = vrot.lane.b32.xlu0 %v2683, 16
    %v3222 = vpop.permute.xlu0 %3221
    %3225 = vrot.lane.b32.xlu0 %v2857, 20
    %v3226 = vpop.permute.xlu0 %3225
    %3229 = vrot.lane.b32.xlu0 %v3031, 24
    %v3230 = vpop.permute.xlu0 %3229
    %3233 = vrot.lane.b32.xlu0 %v3205, 28
    %v3234 = vpop.permute.xlu0 %3233
    %v3236 = vsel %vm390, %v1986, %v3210
    %v3237 = vsel %vm468, %v3236, %v3214
    %v3238 = vsel %vm1810, %v3237, %v3218
    %v3239 = vsel %vm1812, %v3238, %v3222
    %v3240 = vsel %vm1814, %v3239, %v3226
    %v3241 = vsel %vm1816, %v3240, %v3230
    %v3242 = vsel %vm1818, %v3241, %v3234
    %v3243 = vld [vmem:[#allocation13] sm:$0xff]
    %v3244 = vld [vmem:[#allocation13 + $0x8] sm:$0xff]
    %v3245 = vld [vmem:[#allocation13 + $0x10] sm:$0xff]
    %v3246 = vld [vmem:[#allocation13 + $0x18] sm:$0xff]
    %v3248 = vsel %vm138, %v1819, 0
    %v3251 = vsel %vm138, %v3242, 0
    %3253 = vmatprep.subr.mxu0 0.0
    %3254 = vmatpush1.msra.mxu0 0.0
    %3255 = vmatprep.subr.mxu0 0.0
    %3256 = vmatpush1.msra.mxu0 0.0
    %3257 = vmatprep.subr.mxu0 0.0
    %3258 = vmatpush1.msra.mxu0 0.0
    %3259 = vmatprep.subr.mxu0 0.0
    %3260 = vmatpush1.msra.mxu0 0.0
    %3261 = vmatprep.subr.mxu0 0.0
    %3262 = vmatpush1.msra.mxu0 0.0
    %3263 = vmatprep.subr.mxu0 0.0
    %3264 = vmatpush1.msra.mxu0 0.0
    %3265 = vmatprep.subr.mxu0 0.0
    %3266 = vmatpush1.msra.mxu0 0.0
    %3267 = vmatprep.subr.mxu0 0.0
    %3268 = vmatpush1.msra.mxu0 0.0
    %3269 = vmatprep.subr.mxu0 0.0
    %3270 = vmatpush1.msra.mxu0 0.0
    %3271 = vmatprep.subr.mxu0 0.0
    %3272 = vmatpush1.msra.mxu0 0.0
    %3273 = vmatprep.subr.mxu0 0.0
    %3274 = vmatpush1.msra.mxu0 0.0
    %3275 = vmatprep.subr.mxu0 0.0
    %3276 = vmatpush1.msra.mxu0 0.0
    %3277 = vmatprep.subr.mxu0 0.0
    %3278 = vmatpush1.msra.mxu0 %v3246
    %3279 = vmatprep.subr.mxu0 0.0
    %3280 = vmatpush1.msra.mxu0 %v3245
    %3281 = vmatprep.subr.mxu0 0.0
    %3282 = vmatpush1.msra.mxu0 %v3244
    %3283 = vmatprep.subr.mxu0 0.0
    %3284 = vmatpush1.msra.mxu0 %v3243
    %3285 = vmatprep.subr.mxu0 0.0
    %3286 = vmatpush2.msra.mxu0 0.0
    %3287 = vmatprep.subr.mxu0 0.0
    %3288 = vmatpush2.msra.mxu0 0.0
    %3289 = vmatprep.subr.mxu0 0.0
    %3290 = vmatpush2.msra.mxu0 0.0
    %3291 = vmatprep.subr.mxu0 0.0
    %3292 = vmatpush2.msra.mxu0 0.0
    %3293 = vmatprep.subr.mxu0 0.0
    %3294 = vmatpush2.msra.mxu0 0.0
    %3295 = vmatprep.subr.mxu0 0.0
    %3296 = vmatpush2.msra.mxu0 0.0
    %3297 = vmatprep.subr.mxu0 0.0
    %3298 = vmatpush2.msra.mxu0 0.0
    %3299 = vmatprep.subr.mxu0 0.0
    %3300 = vmatpush2.msra.mxu0 0.0
    %3301 = vmatprep.subr.mxu0 0.0
    %3302 = vmatpush2.msra.mxu0 0.0
    %3303 = vmatprep.subr.mxu0 0.0
    %3304 = vmatpush2.msra.mxu0 0.0
    %3305 = vmatprep.subr.mxu0 0.0
    %3306 = vmatpush2.msra.mxu0 0.0
    %3307 = vmatprep.subr.mxu0 0.0
    %3308 = vmatpush2.msra.mxu0 0.0
    %3309 = vmatprep.subr.mxu0 0.0
    %3310 = vmatpush2.msra.mxu0 0.0
    %3311 = vmatprep.subr.mxu0 0.0
    %3312 = vmatpush2.msra.mxu0 0.0
    %3313 = vmatprep.subr.mxu0 0.0
    %3314 = vmatpush2.msra.mxu0 0.0
    %3315 = vmatprep.subr.mxu0 0.0
    %3316 = vmatpush2.msra.mxu0 0.0
    %3317 = vmatprep.mubr.f32.mxu0 0.0
    %3318 = vmatmul.mubr.f32.gmra.mxu0 %v3248
    %v3319 = vpop.f32.mrf.mxu0
    %v3320 = vadd.f32 0.0, %v3319
    %v3321 = vpop.f32.mrf.mxu0
    %3322 = vmatprep.mubr.f32.mxu0 0.0
    %3323 = vmatmul.mubr.f32.gmra.mxu0 %v3251
    %v3324 = vpop.f32.mrf.mxu0
    %v3325 = vadd.f32 0.0, %v3324
    %v3326 = vpop.f32.mrf.mxu0
    %3327 = vdwg.mxu0
    %v3328 = vadd.f32 %v128, %v3320
    %v3329 = vadd.f32 %v129, %v3325
    %v3330 = vsel %vm138, %v3328, 0.0
    %3331 = vadd.xlane.f32.xlu0 %v3330
    %v3332 = vpop.xlane.xlu0 %3331
    %v3333 = vsel %vm138, %v3329, 0.0
    %3334 = vadd.xlane.f32.xlu0 %v3333
    %v3335 = vpop.xlane.xlu0 %3334
    %v3336 = vrcp.pop 32.0
    %v3337 = vmul.f32 %v3332, %v3336
    %v3338 = vmul.f32 %v3335, %v3336
    %v3339 = vsub.f32 %v3328, %v3337
    %v3340 = vsub.f32 %v3329, %v3338
    %v3341 = vmul.f32 %v3339, %v3339
    %v3342 = vmul.f32 %v3340, %v3340
    %v3343 = vsel %vm138, %v3341, 0.0
    %3344 = vadd.xlane.f32.xlu0 %v3343
    %v3345 = vpop.xlane.xlu0 %3344
    %v3346 = vsel %vm138, %v3342, 0.0
    %3347 = vadd.xlane.f32.xlu0 %v3346
    %v3348 = vpop.xlane.xlu0 %3347
    %v3349 = vmul.f32 %v3345, %v3336
    %v3350 = vmul.f32 %v3348, %v3336
    %v3351 = vadd.f32 %v3349, 1e-05
    %v3352 = vadd.f32 %v3350, 1e-05
    %v3353 = vrsqrt.pop %v3351
    %v3354 = vrsqrt.pop %v3352
    %v3355 = vmul.f32 %v3339, %v3353
    %v3356 = vmul.f32 %v3340, %v3354
    %v3357 = vld [vmem:[%s7] sm:$0x1]
    %v3359 = vlaneseq
    %v3360 = vshrl.u32 %v3359, 7
    %v3361 = vsub.s32 0, %v3360
    %v3362 = vrot.slane %v3357, %v3361
    %v3364 = vmul.f32 %v3355, %v3362
    %v3365 = vmul.f32 %v3356, %v3362
    %v3366 = vld [vmem:[%s8] sm:$0x1]
    %v3368 = vlaneseq
    %v3369 = vshrl.u32 %v3368, 7
    %v3370 = vsub.s32 0, %v3369
    %v3371 = vrot.slane %v3366, %v3370
    %v3373 = vadd.f32 %v3364, %v3371
    %v3374 = vadd.f32 %v3365, %v3371
    %3375 = vst.msk [vmem:[#allocation14] sm:$0xff] %vm138, %v3373
    %3376 = vst.msk [vmem:[#allocation14 + $0x8] sm:$0xff] %vm138, %v3374
    // Predicated region
    $region66: #{tpu_custom_call.1} parent=1 // pred_check
      _
    $region67: #{tpu_custom_call.1} parent=1 // pred_check_branch
      %3378 = sbr.rel (0) target = $region69
    $region68: #{tpu_custom_call.1} parent=1 // pred_region
      %s3380 = ssub.s32 256, 256
      %3381 = vsyncadd [#allocation4], %s3380
      %s3382 = sshll.u32 [#allocation14], 4
      %s3383 = int_to_ptr.vmem [resolvable:$true] %s3382
      %3388 = dma.vmem_to_hbm [thread:$0]  %s3383, 256, %s9, [#allocation4], 128, 128, 8
    $region69: #{tpu_custom_call.1} parent=1 // pred_fallthru
      _
    // Predicated region
    $region70: #{tpu_custom_call.1} parent=1 // pred_check
      _
    $region71: #{tpu_custom_call.1} parent=1 // pred_check_branch
      %3390 = sbr.rel (0) target = $region73
    $region72: #{tpu_custom_call.1} parent=1 // pred_region
      %3391 = dma.done [#allocation4], 256
    $region73: #{tpu_custom_call.1} parent=1 // pred_fallthru
      _
    %3392 = vsyncpa [#allocation3], 1
    %3393 = vsyncpa [#allocation6], 1
    %3394 = vsyncpa [#allocation9], 1
    %3395 = vsyncpa [#allocation12], 1
    %3396 = vsyncpa [#allocation4], 1

</llo_original>
